<compile_context>
chip_gen: v5e
topology: v5e:2x2
jax: 0.10.0
libtpu: 0.0.40
codegen_flags: <defaults>
</compile_context>

<pallas_src>
import math

import numpy as np

import jax
import jax.numpy as jnp
from jax import lax
from jax.experimental import pallas as pl
from jax.experimental.pallas import tpu as pltpu

# ----------------------------- configuration --------------------------------
VOCAB = 100            # GBST num_tokens == bert vocab_size
DIM = 32               # hidden_size
N_HEADS = 2
HEAD_DIM = DIM // N_HEADS
INTER = 64             # intermediate_size
N_LAYERS = 2
NUM_LABELS = 2
MAX_POS = 16
LN_EPS = 1e-12

DS = 4                 # downsample_factor == max_block_size (ds_factor=4)
K_CONV = DS            # pos_conv kernel size = max_block_size
N_BLOCKS = DS          # block sizes 1..DS, offsets all 0

B = 2                  # batch
N_CHARS = 16           # character sequence length
S_OUT = N_CHARS // DS  # 4 (BERT sequence length after downsampling)
BN = B * N_CHARS       # flattened char positions (32)
BS = B * S_OUT         # flattened BERT positions (8)
HB = N_HEADS * BS      # head-stacked BERT rows (16)
DATA_ROWS = BN + 8     # runtime data buffer rows (ids/mask cols + mask row)

NEG_MAX = float(-jnp.finfo(jnp.float32).max)   # GBST masked_fill value
MASK_MIN = float(jnp.finfo(jnp.float32).min)   # BERT extended attention mask value


# ------------------------------ in-kernel helpers ----------------------------
def _softmax_rows(x):
    m = jnp.max(x, axis=-1, keepdims=True)
    e = jnp.exp(x - m)
    return e * pl.reciprocal(jnp.sum(e, axis=-1, keepdims=True), approx=False)


def _layer_norm(x, g, b):
    mu = jnp.mean(x, axis=-1, keepdims=True)
    xc = x - mu
    var = jnp.mean(xc * xc, axis=-1, keepdims=True)
    return xc * lax.rsqrt(var + LN_EPS) * g + b


def _erf(x):
    # Abramowitz & Stegun 7.1.26 (max abs error ~1.5e-7)
    a1, a2, a3, a4, a5 = 0.254829592, -0.284496736, 1.421413741, -1.453152027, 1.061405429
    pp = 0.3275911
    sgn = jnp.where(x >= 0.0, 1.0, -1.0)
    ax = jnp.abs(x)
    t = pl.reciprocal(1.0 + pp * ax, approx=False)
    poly = ((((a5 * t + a4) * t + a3) * t + a2) * t + a1) * t
    return sgn * (1.0 - poly * jnp.exp(-ax * ax))


def _gelu(x):
    return 0.5 * x * (1.0 + _erf(x * (1.0 / math.sqrt(2.0))))


# --------------------- host-precomputed constant structure -------------------
def build_structure_constants():
    """All mask / membership / pooling matrices, built once on the host."""
    r = np.arange(BN)
    ex = r // N_CHARS
    pos = r % N_CHARS
    same_seq = ex[:, None] == ex[None, :]                               # (BN, BN)

    # pos_conv shift-by-k tap matrices, k = 1..K-1 (k=0 is the identity)
    taps = np.concatenate(
        [((r[None, :] == r[:, None] + k) & same_seq).astype(np.float32)
         for k in range(1, K_CONV)], axis=0)                            # ((K-1)*BN, BN)

    # GBST block-membership matrices for block sizes 2..DS (blk=1 is identity)
    sblk = np.concatenate(
        [((pos[:, None] // blk == pos[None, :] // blk) & same_seq).astype(np.float32)
         for blk in range(2, N_BLOCKS + 1)], axis=0)                    # ((NB-1)*BN, BN)

    # downsample (mean-pool) group membership, block-diagonal over the batch
    s = np.arange(BS)
    ds_pool = ((s[:, None] // S_OUT == ex[None, :])
               & (s[:, None] % S_OUT == pos[None, :] // DS)).astype(np.float32)  # (BS, BN)

    # fused-head attention structural mask: same head AND same example
    hq = np.arange(HB)
    head, hpos = hq // BS, hq % BS
    hex_ = hpos // S_OUT
    head_struct = ((head[:, None] == head[None, :])
                   & (hex_[:, None] == hex_[None, :])).astype(np.float32)        # (HB, HB)

    # CLS-token row selector for the pooler
    sel_cls = np.zeros((B, BS), np.float32)
    sel_cls[np.arange(B), np.arange(B) * S_OUT] = 1.0

    return {
        "taps": taps, "sblk": sblk, "same_seq": same_seq.astype(np.float32),
        "ds_pool": ds_pool, "head_struct": head_struct, "sel_cls": sel_cls,
    }


# ------------------------------- parameters ----------------------------------
def init_params(key):
    keys = [key]

    def nxt():
        keys[0], sub = jax.random.split(keys[0])
        return sub

    def w(shape, scale=0.02):
        return scale * jax.random.normal(nxt(), shape, jnp.float32)

    p = {
        # GBST
        "tok_emb": w((VOCAB, DIM)),
        "dw_w": w((K_CONV, 1, DIM)),       # depthwise Conv1d weight (tap, 1, channel)
        "dw_b": w((1, DIM)),
        "pw_w": w((DIM, DIM)),             # 1x1 conv as (Din, Dout) matmul
        "pw_b": w((1, DIM)),
        "score_w": w((DIM, 1)),
        "score_b": w((1, 1)),
        # BERT embeddings
        "pos_emb": w((MAX_POS, DIM)),
        "type_emb": w((2, DIM)),
        "emb_ln_g": jnp.ones((1, DIM), jnp.float32),
        "emb_ln_b": jnp.zeros((1, DIM), jnp.float32),
        # heads
        "pool_w": w((DIM, DIM)), "pool_b": w((1, DIM)),
        "cls_w": w((DIM, NUM_LABELS)), "cls_b": w((1, NUM_LABELS)),
    }
    layers = []
    for _ in range(N_LAYERS):
        layers.append({
            "wq": w((DIM, DIM)), "bq": w((1, DIM)),
            "wk": w((DIM, DIM)), "bk": w((1, DIM)),
            "wv": w((DIM, DIM)), "bv": w((1, DIM)),
            "wo": w((DIM, DIM)), "bo": w((1, DIM)),
            "ln1_g": jnp.ones((1, DIM), jnp.float32), "ln1_b": jnp.zeros((1, DIM), jnp.float32),
            "wi": w((DIM, INTER)), "bi": w((1, INTER)),
            "wf": w((INTER, DIM)), "bf": w((1, DIM)),
            "ln2_g": jnp.ones((1, DIM), jnp.float32), "ln2_b": jnp.zeros((1, DIM), jnp.float32),
        })
    p["layers"] = layers
    return p


def _pack(entries, width):
    """Pack (name, 2D array) entries into one (rows, width) f32 buffer.
    Each section is zero-padded to `width` columns and 8-row aligned.
    Returns (buffer, {name: static python-int row offset})."""
    offsets, chunks, row = {}, [], 0
    for name, arr in entries:
        a = jnp.asarray(arr, jnp.float32)
        r, c = a.shape
        if c < width:
            a = jnp.pad(a, ((0, 0), (0, width - c)))
        offsets[name] = row
        chunks.append(a)
        pad = (-r) % 8
        if pad:
            chunks.append(jnp.zeros((pad, width), jnp.float32))
        row += r + pad
    return jnp.concatenate(chunks, axis=0), offsets


def pack_params(p):
    """Pack all weights + constant structure matrices into 2 contiguous buffers."""
    consts = build_structure_constants()
    L = p["layers"]

    e32 = [
        ("tok_emb", p["tok_emb"]),
        ("dw_w", p["dw_w"].reshape(K_CONV, DIM)),
        ("dw_b", p["dw_b"]),
        ("pw_w", p["pw_w"]),
        ("pw_b", p["pw_b"]),
        ("score_w", p["score_w"]),                       # (DIM, 1)
        ("score_b", p["score_b"]),                       # (1, 1)
        ("pos_emb", jnp.tile(p["pos_emb"][:S_OUT], (B, 1))),   # B-replicated on host
        ("type_emb", p["type_emb"][0:1]),
        ("eln_g", p["emb_ln_g"]),
        ("eln_b", p["emb_ln_b"]),
        ("pool_w", p["pool_w"]),
        ("pool_b", p["pool_b"]),
        ("cls_w", p["cls_w"]),                           # (DIM, NUM_LABELS)
        ("cls_b", p["cls_b"]),                           # (1, NUM_LABELS)
    ]
    for l, lp in enumerate(L):
        e32 += [
            (f"wo{l}", lp["wo"]), (f"bo{l}", lp["bo"]),
            (f"ln1g{l}", lp["ln1_g"]), (f"ln1b{l}", lp["ln1_b"]),
            (f"wf{l}", lp["wf"]), (f"bf{l}", lp["bf"]),
            (f"ln2g{l}", lp["ln2_g"]), (f"ln2b{l}", lp["ln2_b"]),
        ]
    for k in ("taps", "sblk", "same_seq", "ds_pool", "head_struct", "sel_cls"):
        e32.append((k, consts[k]))
    p32, o32 = _pack(e32, DIM)                            # width 32 (== BN)

    e96 = []
    for l, lp in enumerate(L):
        e96 += [
            (f"wqkv{l}", jnp.concatenate([lp["wq"], lp["wk"], lp["wv"]], axis=1)),
            (f"bqkv{l}", jnp.concatenate([lp["bq"], lp["bk"], lp["bv"]], axis=1)),
            (f"wi{l}", lp["wi"]),
            (f"bi{l}", lp["bi"]),
        ]
    pw96, o96 = _pack(e96, 3 * DIM)                       # width 96
    return p32, o32, pw96, o96


# ------------------------------- fused kernel --------------------------------
def make_kernel(o32, o96):
    def kernel(data_ref, p32_ref, pw_ref, out_ref):
        f32 = jnp.float32

        def P(name, rows, cols=DIM):
            off = o32[name]
            return p32_ref[off:off + rows, 0:cols]

        def W(name, rows, cols=3 * DIM):
            off = o96[name]
            return pw_ref[off:off + rows, 0:cols]

        ids_col = data_ref[0:BN, 0:1]                     # (BN, 1) integer-valued f32
        m_col = data_ref[0:BN, 1:2]                       # (BN, 1)
        m_row = data_ref[BN:BN + 1, 0:BN]                 # (1, BN)

        # ---------------- character embedding (one-hot matmul gather) ----------------
        vocab_iota = lax.broadcasted_iota(jnp.int32, (BN, VOCAB), 1).astype(f32)
        onehot = (ids_col == vocab_iota).astype(f32)
        emb = jnp.dot(onehot, P("tok_emb", VOCAB), preferred_element_type=f32)  # (BN, D)

        # -------- GBST pos_conv: depthwise taps (one stacked matmul) + 1x1 conv -------
        dw = P("dw_w", K_CONV)                                                   # (K, D)
        shifted = jnp.dot(P("taps", (K_CONV - 1) * BN, BN), emb,
                          preferred_element_type=f32)                            # ((K-1)BN, D)
        acc = emb * dw[0:1, :]
        for k in range(1, K_CONV):
            acc = acc + shifted[(k - 1) * BN:k * BN, :] * dw[k:k + 1, :]
        acc = acc + P("dw_b", 1)
        xc = jnp.dot(acc, P("pw_w", DIM), preferred_element_type=f32) + P("pw_b", 1)

        # --------------------------------- GBST core ----------------------------------
        xm = xc * m_col                                                          # (BN, D)
        score_w = P("score_w", DIM, 1)                                           # (D, 1)
        score_b = P("score_b", 1, 1)                                             # (1, 1)

        # block sizes 2..DS in one stacked matmul; block size 1 is the identity.
        sblk = P("sblk", (N_BLOCKS - 1) * BN, BN)
        num_all = jnp.dot(sblk, xm, preferred_element_type=f32)                  # (3BN, D)
        cnt_all = jnp.dot(sblk, m_col, preferred_element_type=f32)               # (3BN, 1)
        inv_cnt = pl.reciprocal(jnp.maximum(cnt_all, 1.0), approx=False)
        rep_all = jnp.where(cnt_all > 0.0, num_all * inv_cnt, 0.0)               # masked mean
        sc_all = jnp.dot(rep_all, score_w, preferred_element_type=f32) + score_b
        sc_all = jnp.where(cnt_all > 0.0, sc_all, NEG_MAX)

        sc1 = jnp.dot(xm, score_w, preferred_element_type=f32) + score_b         # (BN, 1)
        sc1 = jnp.where(m_col > 0.0, sc1, NEG_MAX)

        scores = _softmax_rows(jnp.concatenate(
            [sc1] + [sc_all[i * BN:(i + 1) * BN, :] for i in range(N_BLOCKS - 1)],
            axis=1))                                                              # (BN, NB)

        # score consensus attention (block-diagonal per example)
        sim = lax.dot_general(scores, scores, (((1,), (1,)), ((), ())),
                              preferred_element_type=f32)                         # (BN, BN)
        sim = jnp.where(m_col * m_row > 0.0, sim, NEG_MAX)
        sim = jnp.where(P("same_seq", BN, BN) > 0.0, sim, -jnp.inf)
        scores = jnp.dot(_softmax_rows(sim), scores, preferred_element_type=f32)

        # weight block representations by position scores, then mean-pool by DS
        xw = xm * scores[:, 0:1]
        for i in range(1, N_BLOCKS):
            xw = xw + rep_all[(i - 1) * BN:i * BN, :] * scores[:, i:i + 1]
        ds_pool = P("ds_pool", BS, BN)
        embed = jnp.dot(ds_pool, xw, preferred_element_type=f32) * (1.0 / DS)     # (BS, D)

        # downsampled key validity -> additive extended attention mask (row over keys)
        grp_cnt = lax.dot_general(m_row, ds_pool, (((1,), (1,)), ((), ())),
                                  preferred_element_type=f32)                     # (1, BS)
        key_bias = jnp.where(grp_cnt > 0.0, 0.0, MASK_MIN)
        key_bias_h = jnp.concatenate([key_bias] * N_HEADS, axis=1)                # (1, HB)

        # -------------------------------- BERT encoder --------------------------------
        h = embed + P("pos_emb", BS) + P("type_emb", 1)
        h = _layer_norm(h, P("eln_g", 1), P("eln_b", 1))

        head_struct = P("head_struct", HB, HB)
        scale = 1.0 / math.sqrt(HEAD_DIM)

        for l in range(N_LAYERS):
            # fused QKV projection: (BS, D) @ (D, 3D)
            qkv = (jnp.dot(h, W(f"wqkv{l}", DIM), preferred_element_type=f32)
                   + W(f"bqkv{l}", 1))

            # stack heads along sublanes -> one score matmul + one context matmul
            q_s = jnp.concatenate(
                [qkv[:, hh * HEAD_DIM:(hh + 1) * HEAD_DIM] for hh in range(N_HEADS)], axis=0)
            k_s = jnp.concatenate(
                [qkv[:, DIM + hh * HEAD_DIM:DIM + (hh + 1) * HEAD_DIM]
                 for hh in range(N_HEADS)], axis=0)
            v_s = jnp.concatenate(
                [qkv[:, 2 * DIM + hh * HEAD_DIM:2 * DIM + (hh + 1) * HEAD_DIM]
                 for hh in range(N_HEADS)], axis=0)                               # (HB, HEAD_DIM)

            s = lax.dot_general(q_s, k_s, (((1,), (1,)), ((), ())),
                                preferred_element_type=f32) * scale + key_bias_h  # (HB, HB)
            s = jnp.where(head_struct > 0.0, s, -jnp.inf)    # same head & same example only
            ctx_s = jnp.dot(_softmax_rows(s), v_s, preferred_element_type=f32)    # (HB, HEAD_DIM)
            ctx = jnp.concatenate(
                [ctx_s[hh * BS:(hh + 1) * BS, :] for hh in range(N_HEADS)], axis=1)  # (BS, D)

            attn_out = (jnp.dot(ctx, P(f"wo{l}", DIM), preferred_element_type=f32)
                        + P(f"bo{l}", 1))
            h1 = _layer_norm(attn_out + h, P(f"ln1g{l}", 1), P(f"ln1b{l}", 1))

            inter = _gelu(jnp.dot(h1, W(f"wi{l}", DIM, INTER), preferred_element_type=f32)
                          + W(f"bi{l}", 1, INTER))
            ffn = (jnp.dot(inter, P(f"wf{l}", INTER), preferred_element_type=f32)
                   + P(f"bf{l}", 1))
            h = _layer_norm(ffn + h1, P(f"ln2g{l}", 1), P(f"ln2b{l}", 1))

        # ---------------------------- pooler + classifier -----------------------------
        h_cls = jnp.dot(P("sel_cls", B, BS), h, preferred_element_type=f32)       # (B, D)
        pooled = jnp.tanh(jnp.dot(h_cls, P("pool_w", DIM), preferred_element_type=f32)
                          + P("pool_b", 1))
        out_ref[...] = (jnp.dot(pooled, P("cls_w", DIM, NUM_LABELS),
                                preferred_element_type=f32)
                        + P("cls_b", 1, NUM_LABELS))

    return kernel


# ------------------------------- model wrapper --------------------------------
def make_forward(o32, o96):
    kernel = make_kernel(o32, o96)

    def forward(p32, pw96, input_ids, attention_mask):
        ids_f = input_ids.reshape(BN).astype(jnp.float32)
        msk_f = attention_mask.reshape(BN).astype(jnp.float32)
        # single runtime input buffer: rows 0..BN-1 hold [ids, mask] columns,
        # row BN holds the mask as a lane-row (avoids an in-kernel transpose).
        data = jnp.zeros((DATA_ROWS, BN), jnp.float32)
        data = data.at[:BN, 0].set(ids_f).at[:BN, 1].set(msk_f).at[BN, :].set(msk_f)

        return pl.pallas_call(
            kernel,
            out_shape=jax.ShapeDtypeStruct((B, NUM_LABELS), jnp.float32),
            in_specs=[pl.BlockSpec(memory_space=pltpu.MemorySpace.VMEM)] * 3,
            out_specs=pl.BlockSpec(memory_space=pltpu.MemorySpace.VMEM),
            cost_estimate=pl.CostEstimate(flops=1_500_000, transcendentals=4_000,
                                          bytes_accessed=250_000),
        )(data, p32, pw96)

    return forward


# ----------------------------------- main -------------------------------------
if __name__ == "__main__":
    key = jax.random.PRNGKey(0)
    pkey, ikey = jax.random.split(key)
    params = init_params(pkey)
    p32, o32, pw96, o96 = pack_params(params)

    input_ids = jax.random.randint(ikey, (B, N_CHARS), 0, VOCAB, dtype=jnp.int32)
    attention_mask = jnp.ones((B, N_CHARS), jnp.int32)

    fwd = jax.jit(make_forward(o32, o96))
    logits = fwd(p32, pw96, input_ids, attention_mask)
    jax.block_until_ready(logits)

    assert logits.shape == (B, NUM_LABELS), logits.shape
    assert bool(jnp.all(jnp.isfinite(logits)))
    print("KERNEL_OK")
</pallas_src>

<mosaic_0001>
module attributes {stable_mosaic.version = 11 : i64} {
  func.func @kernel(%arg0: memref<40x32xf32, #tpu.memory_space<vmem>>, %arg1: memref<856x32xf32, #tpu.memory_space<vmem>>, %arg2: memref<160x96xf32, #tpu.memory_space<vmem>>, %arg3: memref<2x2xf32, #tpu.memory_space<vmem>>) attributes {dimension_semantics = [], scalar_prefetch = 0 : i64, scratch_operands = 0 : i64, tpu.core_type = #tpu.core_type<tc>} {
    %c0 = arith.constant 0 : index
    %c0_0 = arith.constant 0 : index
    %0 = vector.load %arg0[%c0, %c0_0] : memref<40x32xf32, #tpu.memory_space<vmem>>, vector<32x1xf32>
    %c0_1 = arith.constant 0 : index
    %c1 = arith.constant 1 : index
    %1 = vector.load %arg0[%c0_1, %c1] : memref<40x32xf32, #tpu.memory_space<vmem>>, vector<32x1xf32>
    %c32 = arith.constant 32 : index
    %c0_2 = arith.constant 0 : index
    %2 = vector.load %arg0[%c32, %c0_2] : memref<40x32xf32, #tpu.memory_space<vmem>>, vector<1x32xf32>
    %3 = tpu.iota {dimensions = array<i32: 1>} : vector<32x100xi32>
    %4 = arith.sitofp %3 : vector<32x100xi32> to vector<32x100xf32>
    %5 = vector.broadcast %0 : vector<32x1xf32> to vector<32x100xf32>
    %6 = arith.cmpf oeq, %5, %4 : vector<32x100xf32>
    %7 = arith.extui %6 : vector<32x100xi1> to vector<32x100xi32>
    %8 = arith.sitofp %7 : vector<32x100xi32> to vector<32x100xf32>
    %c0_3 = arith.constant 0 : index
    %c0_4 = arith.constant 0 : index
    %9 = vector.load %arg1[%c0_3, %c0_4] : memref<856x32xf32, #tpu.memory_space<vmem>>, vector<100x32xf32>
    %cst = arith.constant dense<0.000000e+00> : vector<32x32xf32>
    %10 = tpu.matmul %8, %9, %cst {dimension_numbers = #tpu.dot_dimension_numbers<[1], [0], [0], [1], [0, 0, 1, 1], [], []>} : vector<32x100xf32>, vector<100x32xf32>, vector<32x32xf32> -> vector<32x32xf32>
    %c104 = arith.constant 104 : index
    %c0_5 = arith.constant 0 : index
    %11 = vector.load %arg1[%c104, %c0_5] : memref<856x32xf32, #tpu.memory_space<vmem>>, vector<4x32xf32>
    %c600 = arith.constant 600 : index
    %c0_6 = arith.constant 0 : index
    %12 = vector.load %arg1[%c600, %c0_6] : memref<856x32xf32, #tpu.memory_space<vmem>>, vector<96x32xf32>
    %cst_7 = arith.constant dense<0.000000e+00> : vector<96x32xf32>
    %13 = tpu.matmul %12, %10, %cst_7 {dimension_numbers = #tpu.dot_dimension_numbers<[1], [0], [0], [1], [0, 0, 1, 1], [], []>} : vector<96x32xf32>, vector<32x32xf32>, vector<96x32xf32> -> vector<96x32xf32>
    %14 = vector.extract_strided_slice %11 {offsets = [0, 0], sizes = [1, 32], strides = [1, 1]} : vector<4x32xf32> to vector<1x32xf32>
    %15 = vector.broadcast %14 : vector<1x32xf32> to vector<32x32xf32>
    %16 = arith.mulf %10, %15 : vector<32x32xf32>
    %17 = vector.extract_strided_slice %13 {offsets = [0, 0], sizes = [32, 32], strides = [1, 1]} : vector<96x32xf32> to vector<32x32xf32>
    %18 = vector.extract_strided_slice %11 {offsets = [1, 0], sizes = [1, 32], strides = [1, 1]} : vector<4x32xf32> to vector<1x32xf32>
    %19 = vector.broadcast %18 : vector<1x32xf32> to vector<32x32xf32>
    %20 = arith.mulf %17, %19 : vector<32x32xf32>
    %21 = arith.addf %16, %20 : vector<32x32xf32>
    %22 = vector.extract_strided_slice %13 {offsets = [32, 0], sizes = [32, 32], strides = [1, 1]} : vector<96x32xf32> to vector<32x32xf32>
    %23 = vector.extract_strided_slice %11 {offsets = [2, 0], sizes = [1, 32], strides = [1, 1]} : vector<4x32xf32> to vector<1x32xf32>
    %24 = vector.broadcast %23 : vector<1x32xf32> to vector<32x32xf32>
    %25 = arith.mulf %22, %24 : vector<32x32xf32>
    %26 = arith.addf %21, %25 : vector<32x32xf32>
    %27 = vector.extract_strided_slice %13 {offsets = [64, 0], sizes = [32, 32], strides = [1, 1]} : vector<96x32xf32> to vector<32x32xf32>
    %28 = vector.extract_strided_slice %11 {offsets = [3, 0], sizes = [1, 32], strides = [1, 1]} : vector<4x32xf32> to vector<1x32xf32>
    %29 = vector.broadcast %28 : vector<1x32xf32> to vector<32x32xf32>
    %30 = arith.mulf %27, %29 : vector<32x32xf32>
    %31 = arith.addf %26, %30 : vector<32x32xf32>
    %c112 = arith.constant 112 : index
    %c0_8 = arith.constant 0 : index
    %32 = vector.load %arg1[%c112, %c0_8] : memref<856x32xf32, #tpu.memory_space<vmem>>, vector<1x32xf32>
    %33 = vector.broadcast %32 : vector<1x32xf32> to vector<32x32xf32>
    %34 = arith.addf %31, %33 : vector<32x32xf32>
    %c120 = arith.constant 120 : index
    %c0_9 = arith.constant 0 : index
    %35 = vector.load %arg1[%c120, %c0_9] : memref<856x32xf32, #tpu.memory_space<vmem>>, vector<32x32xf32>
    %cst_10 = arith.constant dense<0.000000e+00> : vector<32x32xf32>
    %36 = tpu.matmul %34, %35, %cst_10 {dimension_numbers = #tpu.dot_dimension_numbers<[1], [0], [0], [1], [0, 0, 1, 1], [], []>} : vector<32x32xf32>, vector<32x32xf32>, vector<32x32xf32> -> vector<32x32xf32>
    %c152 = arith.constant 152 : index
    %c0_11 = arith.constant 0 : index
    %37 = vector.load %arg1[%c152, %c0_11] : memref<856x32xf32, #tpu.memory_space<vmem>>, vector<1x32xf32>
    %38 = vector.broadcast %37 : vector<1x32xf32> to vector<32x32xf32>
    %39 = arith.addf %36, %38 : vector<32x32xf32>
    %40 = vector.broadcast %1 : vector<32x1xf32> to vector<32x32xf32>
    %41 = arith.mulf %39, %40 : vector<32x32xf32>
    %c160 = arith.constant 160 : index
    %c0_12 = arith.constant 0 : index
    %42 = vector.load %arg1[%c160, %c0_12] : memref<856x32xf32, #tpu.memory_space<vmem>>, vector<32x1xf32>
    %c192 = arith.constant 192 : index
    %c0_13 = arith.constant 0 : index
    %43 = vector.load %arg1[%c192, %c0_13] : memref<856x32xf32, #tpu.memory_space<vmem>>, vector<1x1xf32>
    %c696 = arith.constant 696 : index
    %c0_14 = arith.constant 0 : index
    %44 = vector.load %arg1[%c696, %c0_14] : memref<856x32xf32, #tpu.memory_space<vmem>>, vector<96x32xf32>
    %cst_15 = arith.constant dense<0.000000e+00> : vector<96x32xf32>
    %45 = tpu.matmul %44, %41, %cst_15 {dimension_numbers = #tpu.dot_dimension_numbers<[1], [0], [0], [1], [0, 0, 1, 1], [], []>} : vector<96x32xf32>, vector<32x32xf32>, vector<96x32xf32> -> vector<96x32xf32>
    %cst_16 = arith.constant dense<0.000000e+00> : vector<96x1xf32>
    %46 = tpu.matmul %44, %1, %cst_16 {dimension_numbers = #tpu.dot_dimension_numbers<[1], [0], [0], [1], [0, 0, 1, 1], [], []>} : vector<96x32xf32>, vector<32x1xf32>, vector<96x1xf32> -> vector<96x1xf32>
    %cst_17 = arith.constant 1.000000e+00 : f32
    %47 = vector.broadcast %cst_17 : f32 to vector<96x1xf32>
    %48 = arith.maximumf %46, %47 : vector<96x1xf32>
    %49 = tpu.reciprocal %48 : vector<96x1xf32> -> vector<96x1xf32>
    %cst_18 = arith.constant 0.000000e+00 : f32
    %50 = vector.broadcast %cst_18 : f32 to vector<96x1xf32>
    %51 = arith.cmpf ogt, %46, %50 : vector<96x1xf32>
    %52 = vector.broadcast %49 : vector<96x1xf32> to vector<96x32xf32>
    %53 = arith.mulf %45, %52 : vector<96x32xf32>
    %cst_19 = arith.constant 0.000000e+00 : f32
    %54 = vector.shape_cast %51 : vector<96x1xi1> to vector<96x1xi1>
    %55 = vector.broadcast %54 : vector<96x1xi1> to vector<96x32xi1>
    %56 = vector.broadcast %cst_19 : f32 to vector<96x32xf32>
    %57 = arith.select %55, %53, %56 : vector<96x32xi1>, vector<96x32xf32>
    %cst_20 = arith.constant dense<0.000000e+00> : vector<96x1xf32>
    %58 = tpu.matmul %57, %42, %cst_20 {dimension_numbers = #tpu.dot_dimension_numbers<[1], [0], [0], [1], [0, 0, 1, 1], [], []>} : vector<96x32xf32>, vector<32x1xf32>, vector<96x1xf32> -> vector<96x1xf32>
    %59 = vector.broadcast %43 : vector<1x1xf32> to vector<96x1xf32>
    %60 = arith.addf %58, %59 : vector<96x1xf32>
    %cst_21 = arith.constant 0.000000e+00 : f32
    %61 = vector.broadcast %cst_21 : f32 to vector<96x1xf32>
    %62 = arith.cmpf ogt, %46, %61 : vector<96x1xf32>
    %cst_22 = arith.constant -3.40282347E+38 : f32
    %63 = vector.broadcast %cst_22 : f32 to vector<96x1xf32>
    %64 = arith.select %62, %60, %63 : vector<96x1xi1>, vector<96x1xf32>
    %cst_23 = arith.constant dense<0.000000e+00> : vector<32x1xf32>
    %65 = tpu.matmul %41, %42, %cst_23 {dimension_numbers = #tpu.dot_dimension_numbers<[1], [0], [0], [1], [0, 0, 1, 1], [], []>} : vector<32x32xf32>, vector<32x1xf32>, vector<32x1xf32> -> vector<32x1xf32>
    %66 = vector.broadcast %43 : vector<1x1xf32> to vector<32x1xf32>
    %67 = arith.addf %65, %66 : vector<32x1xf32>
    %cst_24 = arith.constant 0.000000e+00 : f32
    %68 = vector.broadcast %cst_24 : f32 to vector<32x1xf32>
    %69 = arith.cmpf ogt, %1, %68 : vector<32x1xf32>
    %cst_25 = arith.constant -3.40282347E+38 : f32
    %70 = vector.broadcast %cst_25 : f32 to vector<32x1xf32>
    %71 = arith.select %69, %67, %70 : vector<32x1xi1>, vector<32x1xf32>
    %72 = vector.extract_strided_slice %64 {offsets = [0, 0], sizes = [32, 1], strides = [1, 1]} : vector<96x1xf32> to vector<32x1xf32>
    %73 = vector.extract_strided_slice %64 {offsets = [32, 0], sizes = [32, 1], strides = [1, 1]} : vector<96x1xf32> to vector<32x1xf32>
    %74 = vector.extract_strided_slice %64 {offsets = [64, 0], sizes = [32, 1], strides = [1, 1]} : vector<96x1xf32> to vector<32x1xf32>
    %75 = tpu.concatenate %71, %72, %73, %74 in 1 : vector<32x1xf32>, vector<32x1xf32>, vector<32x1xf32>, vector<32x1xf32> -> vector<32x4xf32>
    %cst_26 = arith.constant dense<0xFF800000> : vector<32xf32>
    %76 = vector.multi_reduction <maximumf>, %75, %cst_26 [1] : vector<32x4xf32> to vector<32xf32>
    %77 = vector.shape_cast %76 : vector<32xf32> to vector<32x1xf32>
    %78 = vector.broadcast %77 : vector<32x1xf32> to vector<32x4xf32>
    %79 = arith.subf %75, %78 : vector<32x4xf32>
    %80 = math.exp %79 : vector<32x4xf32>
    %cst_27 = arith.constant dense<0.000000e+00> : vector<32xf32>
    %81 = vector.multi_reduction <add>, %80, %cst_27 [1] : vector<32x4xf32> to vector<32xf32>
    %82 = vector.shape_cast %81 : vector<32xf32> to vector<32x1xf32>
    %83 = tpu.reciprocal %82 : vector<32x1xf32> -> vector<32x1xf32>
    %84 = vector.broadcast %83 : vector<32x1xf32> to vector<32x4xf32>
    %85 = arith.mulf %80, %84 : vector<32x4xf32>
    %cst_28 = arith.constant dense<0.000000e+00> : vector<32x32xf32>
    %86 = tpu.matmul %85, %85, %cst_28 {dimension_numbers = #tpu.dot_dimension_numbers<[1], [1], [0], [0], [0, 0, 1, 0], [], []>} : vector<32x4xf32>, vector<32x4xf32>, vector<32x32xf32> -> vector<32x32xf32>
    %87 = vector.broadcast %1 : vector<32x1xf32> to vector<32x32xf32>
    %88 = vector.broadcast %2 : vector<1x32xf32> to vector<32x32xf32>
    %89 = arith.mulf %87, %88 : vector<32x32xf32>
    %cst_29 = arith.constant 0.000000e+00 : f32
    %90 = vector.broadcast %cst_29 : f32 to vector<32x32xf32>
    %91 = arith.cmpf ogt, %89, %90 : vector<32x32xf32>
    %cst_30 = arith.constant -3.40282347E+38 : f32
    %92 = vector.broadcast %cst_30 : f32 to vector<32x32xf32>
    %93 = arith.select %91, %86, %92 : vector<32x32xi1>, vector<32x32xf32>
    %c792 = arith.constant 792 : index
    %c0_31 = arith.constant 0 : index
    %94 = vector.load %arg1[%c792, %c0_31] : memref<856x32xf32, #tpu.memory_space<vmem>>, vector<32x32xf32>
    %cst_32 = arith.constant 0.000000e+00 : f32
    %95 = vector.broadcast %cst_32 : f32 to vector<32x32xf32>
    %96 = arith.cmpf ogt, %94, %95 : vector<32x32xf32>
    %cst_33 = arith.constant 0xFF800000 : f32
    %97 = vector.broadcast %cst_33 : f32 to vector<32x32xf32>
    %98 = arith.select %96, %93, %97 : vector<32x32xi1>, vector<32x32xf32>
    %cst_34 = arith.constant dense<0xFF800000> : vector<32xf32>
    %99 = vector.multi_reduction <maximumf>, %98, %cst_34 [1] : vector<32x32xf32> to vector<32xf32>
    %100 = vector.shape_cast %99 : vector<32xf32> to vector<32x1xf32>
    %101 = vector.broadcast %100 : vector<32x1xf32> to vector<32x32xf32>
    %102 = arith.subf %98, %101 : vector<32x32xf32>
    %103 = math.exp %102 : vector<32x32xf32>
    %cst_35 = arith.constant dense<0.000000e+00> : vector<32xf32>
    %104 = vector.multi_reduction <add>, %103, %cst_35 [1] : vector<32x32xf32> to vector<32xf32>
    %105 = vector.shape_cast %104 : vector<32xf32> to vector<32x1xf32>
    %106 = tpu.reciprocal %105 : vector<32x1xf32> -> vector<32x1xf32>
    %107 = vector.broadcast %106 : vector<32x1xf32> to vector<32x32xf32>
    %108 = arith.mulf %103, %107 : vector<32x32xf32>
    %cst_36 = arith.constant dense<0.000000e+00> : vector<32x4xf32>
    %109 = tpu.matmul %108, %85, %cst_36 {dimension_numbers = #tpu.dot_dimension_numbers<[1], [0], [0], [1], [0, 0, 1, 1], [], []>} : vector<32x32xf32>, vector<32x4xf32>, vector<32x4xf32> -> vector<32x4xf32>
    %110 = vector.extract_strided_slice %109 {offsets = [0, 0], sizes = [32, 1], strides = [1, 1]} : vector<32x4xf32> to vector<32x1xf32>
    %111 = vector.broadcast %110 : vector<32x1xf32> to vector<32x32xf32>
    %112 = arith.mulf %41, %111 : vector<32x32xf32>
    %113 = vector.extract_strided_slice %57 {offsets = [0, 0], sizes = [32, 32], strides = [1, 1]} : vector<96x32xf32> to vector<32x32xf32>
    %114 = vector.extract_strided_slice %109 {offsets = [0, 1], sizes = [32, 1], strides = [1, 1]} : vector<32x4xf32> to vector<32x1xf32>
    %115 = vector.broadcast %114 : vector<32x1xf32> to vector<32x32xf32>
    %116 = arith.mulf %113, %115 : vector<32x32xf32>
    %117 = arith.addf %112, %116 : vector<32x32xf32>
    %118 = vector.extract_strided_slice %57 {offsets = [32, 0], sizes = [32, 32], strides = [1, 1]} : vector<96x32xf32> to vector<32x32xf32>
    %119 = vector.extract_strided_slice %109 {offsets = [0, 2], sizes = [32, 1], strides = [1, 1]} : vector<32x4xf32> to vector<32x1xf32>
    %120 = vector.broadcast %119 : vector<32x1xf32> to vector<32x32xf32>
    %121 = arith.mulf %118, %120 : vector<32x32xf32>
    %122 = arith.addf %117, %121 : vector<32x32xf32>
    %123 = vector.extract_strided_slice %57 {offsets = [64, 0], sizes = [32, 32], strides = [1, 1]} : vector<96x32xf32> to vector<32x32xf32>
    %124 = vector.extract_strided_slice %109 {offsets = [0, 3], sizes = [32, 1], strides = [1, 1]} : vector<32x4xf32> to vector<32x1xf32>
    %125 = vector.broadcast %124 : vector<32x1xf32> to vector<32x32xf32>
    %126 = arith.mulf %123, %125 : vector<32x32xf32>
    %127 = arith.addf %122, %126 : vector<32x32xf32>
    %c824 = arith.constant 824 : index
    %c0_37 = arith.constant 0 : index
    %128 = vector.load %arg1[%c824, %c0_37] : memref<856x32xf32, #tpu.memory_space<vmem>>, vector<8x32xf32>
    %cst_38 = arith.constant dense<0.000000e+00> : vector<8x32xf32>
    %129 = tpu.matmul %128, %127, %cst_38 {dimension_numbers = #tpu.dot_dimension_numbers<[1], [0], [0], [1], [0, 0, 1, 1], [], []>} : vector<8x32xf32>, vector<32x32xf32>, vector<8x32xf32> -> vector<8x32xf32>
    %cst_39 = arith.constant 2.500000e-01 : f32
    %130 = vector.broadcast %cst_39 : f32 to vector<8x32xf32>
    %131 = arith.mulf %129, %130 : vector<8x32xf32>
    %cst_40 = arith.constant dense<0.000000e+00> : vector<1x8xf32>
    %132 = tpu.matmul %2, %128, %cst_40 {dimension_numbers = #tpu.dot_dimension_numbers<[1], [1], [0], [0], [0, 0, 1, 0], [], []>} : vector<1x32xf32>, vector<8x32xf32>, vector<1x8xf32> -> vector<1x8xf32>
    %cst_41 = arith.constant 0.000000e+00 : f32
    %133 = vector.broadcast %cst_41 : f32 to vector<1x8xf32>
    %134 = arith.cmpf ogt, %132, %133 : vector<1x8xf32>
    %cst_42 = arith.constant 0.000000e+00 : f32
    %cst_43 = arith.constant -3.40282347E+38 : f32
    %135 = vector.broadcast %cst_42 : f32 to vector<1x8xf32>
    %136 = vector.broadcast %cst_43 : f32 to vector<1x8xf32>
    %137 = arith.select %134, %135, %136 : vector<1x8xi1>, vector<1x8xf32>
    %138 = tpu.concatenate %137, %137 in 1 : vector<1x8xf32>, vector<1x8xf32> -> vector<1x16xf32>
    %c200 = arith.constant 200 : index
    %c0_44 = arith.constant 0 : index
    %139 = vector.load %arg1[%c200, %c0_44] : memref<856x32xf32, #tpu.memory_space<vmem>>, vector<8x32xf32>
    %140 = arith.addf %131, %139 : vector<8x32xf32>
    %c208 = arith.constant 208 : index
    %c0_45 = arith.constant 0 : index
    %141 = vector.load %arg1[%c208, %c0_45] : memref<856x32xf32, #tpu.memory_space<vmem>>, vector<1x32xf32>
    %142 = vector.broadcast %141 : vector<1x32xf32> to vector<8x32xf32>
    %143 = arith.addf %140, %142 : vector<8x32xf32>
    %c216 = arith.constant 216 : index
    %c0_46 = arith.constant 0 : index
    %144 = vector.load %arg1[%c216, %c0_46] : memref<856x32xf32, #tpu.memory_space<vmem>>, vector<1x32xf32>
    %c224 = arith.constant 224 : index
    %c0_47 = arith.constant 0 : index
    %145 = vector.load %arg1[%c224, %c0_47] : memref<856x32xf32, #tpu.memory_space<vmem>>, vector<1x32xf32>
    %cst_48 = arith.constant dense<0.000000e+00> : vector<8xf32>
    %146 = vector.multi_reduction <add>, %143, %cst_48 [1] : vector<8x32xf32> to vector<8xf32>
    %147 = vector.shape_cast %146 : vector<8xf32> to vector<8x1xf32>
    %cst_49 = arith.constant 3.200000e+01 : f32
    %148 = vector.broadcast %cst_49 : f32 to vector<8x1xf32>
    %149 = arith.divf %147, %148 : vector<8x1xf32>
    %150 = vector.broadcast %149 : vector<8x1xf32> to vector<8x32xf32>
    %151 = arith.subf %143, %150 : vector<8x32xf32>
    %152 = arith.mulf %151, %151 : vector<8x32xf32>
    %cst_50 = arith.constant dense<0.000000e+00> : vector<8xf32>
    %153 = vector.multi_reduction <add>, %152, %cst_50 [1] : vector<8x32xf32> to vector<8xf32>
    %154 = vector.shape_cast %153 : vector<8xf32> to vector<8x1xf32>
    %cst_51 = arith.constant 3.200000e+01 : f32
    %155 = vector.broadcast %cst_51 : f32 to vector<8x1xf32>
    %156 = arith.divf %154, %155 : vector<8x1xf32>
    %cst_52 = arith.constant 9.99999996E-13 : f32
    %157 = vector.broadcast %cst_52 : f32 to vector<8x1xf32>
    %158 = arith.addf %156, %157 : vector<8x1xf32>
    %159 = math.rsqrt %158 : vector<8x1xf32>
    %160 = vector.broadcast %159 : vector<8x1xf32> to vector<8x32xf32>
    %161 = arith.mulf %151, %160 : vector<8x32xf32>
    %162 = vector.broadcast %144 : vector<1x32xf32> to vector<8x32xf32>
    %163 = arith.mulf %161, %162 : vector<8x32xf32>
    %164 = vector.broadcast %145 : vector<1x32xf32> to vector<8x32xf32>
    %165 = arith.addf %163, %164 : vector<8x32xf32>
    %c832 = arith.constant 832 : index
    %c0_53 = arith.constant 0 : index
    %166 = vector.load %arg1[%c832, %c0_53] : memref<856x32xf32, #tpu.memory_space<vmem>>, vector<16x16xf32>
    %c0_54 = arith.constant 0 : index
    %c0_55 = arith.constant 0 : index
    %167 = vector.load %arg2[%c0_54, %c0_55] : memref<160x96xf32, #tpu.memory_space<vmem>>, vector<32x96xf32>
    %cst_56 = arith.constant dense<0.000000e+00> : vector<8x96xf32>
    %168 = tpu.matmul %165, %167, %cst_56 {dimension_numbers = #tpu.dot_dimension_numbers<[1], [0], [0], [1], [0, 0, 1, 1], [], []>} : vector<8x32xf32>, vector<32x96xf32>, vector<8x96xf32> -> vector<8x96xf32>
    %c32_57 = arith.constant 32 : index
    %c0_58 = arith.constant 0 : index
    %169 = vector.load %arg2[%c32_57, %c0_58] : memref<160x96xf32, #tpu.memory_space<vmem>>, vector<1x96xf32>
    %170 = vector.broadcast %169 : vector<1x96xf32> to vector<8x96xf32>
    %171 = arith.addf %168, %170 : vector<8x96xf32>
    %172 = vector.extract_strided_slice %171 {offsets = [0, 0], sizes = [8, 16], strides = [1, 1]} : vector<8x96xf32> to vector<8x16xf32>
    %173 = vector.extract_strided_slice %171 {offsets = [0, 16], sizes = [8, 16], strides = [1, 1]} : vector<8x96xf32> to vector<8x16xf32>
    %174 = tpu.concatenate %172, %173 in 0 : vector<8x16xf32>, vector<8x16xf32> -> vector<16x16xf32>
    %175 = vector.extract_strided_slice %171 {offsets = [0, 32], sizes = [8, 16], strides = [1, 1]} : vector<8x96xf32> to vector<8x16xf32>
    %176 = vector.extract_strided_slice %171 {offsets = [0, 48], sizes = [8, 16], strides = [1, 1]} : vector<8x96xf32> to vector<8x16xf32>
    %177 = tpu.concatenate %175, %176 in 0 : vector<8x16xf32>, vector<8x16xf32> -> vector<16x16xf32>
    %178 = vector.extract_strided_slice %171 {offsets = [0, 64], sizes = [8, 16], strides = [1, 1]} : vector<8x96xf32> to vector<8x16xf32>
    %179 = vector.extract_strided_slice %171 {offsets = [0, 80], sizes = [8, 16], strides = [1, 1]} : vector<8x96xf32> to vector<8x16xf32>
    %180 = tpu.concatenate %178, %179 in 0 : vector<8x16xf32>, vector<8x16xf32> -> vector<16x16xf32>
    %cst_59 = arith.constant dense<0.000000e+00> : vector<16x16xf32>
    %181 = tpu.matmul %174, %177, %cst_59 {dimension_numbers = #tpu.dot_dimension_numbers<[1], [1], [0], [0], [0, 0, 1, 0], [], []>} : vector<16x16xf32>, vector<16x16xf32>, vector<16x16xf32> -> vector<16x16xf32>
    %cst_60 = arith.constant 2.500000e-01 : f32
    %182 = vector.broadcast %cst_60 : f32 to vector<16x16xf32>
    %183 = arith.mulf %181, %182 : vector<16x16xf32>
    %184 = vector.broadcast %138 : vector<1x16xf32> to vector<16x16xf32>
    %185 = arith.addf %183, %184 : vector<16x16xf32>
    %cst_61 = arith.constant 0.000000e+00 : f32
    %186 = vector.broadcast %cst_61 : f32 to vector<16x16xf32>
    %187 = arith.cmpf ogt, %166, %186 : vector<16x16xf32>
    %cst_62 = arith.constant 0xFF800000 : f32
    %188 = vector.broadcast %cst_62 : f32 to vector<16x16xf32>
    %189 = arith.select %187, %185, %188 : vector<16x16xi1>, vector<16x16xf32>
    %cst_63 = arith.constant dense<0xFF800000> : vector<16xf32>
    %190 = vector.multi_reduction <maximumf>, %189, %cst_63 [1] : vector<16x16xf32> to vector<16xf32>
    %191 = vector.shape_cast %190 : vector<16xf32> to vector<16x1xf32>
    %192 = vector.broadcast %191 : vector<16x1xf32> to vector<16x16xf32>
    %193 = arith.subf %189, %192 : vector<16x16xf32>
    %194 = math.exp %193 : vector<16x16xf32>
    %cst_64 = arith.constant dense<0.000000e+00> : vector<16xf32>
    %195 = vector.multi_reduction <add>, %194, %cst_64 [1] : vector<16x16xf32> to vector<16xf32>
    %196 = vector.shape_cast %195 : vector<16xf32> to vector<16x1xf32>
    %197 = tpu.reciprocal %196 : vector<16x1xf32> -> vector<16x1xf32>
    %198 = vector.broadcast %197 : vector<16x1xf32> to vector<16x16xf32>
    %199 = arith.mulf %194, %198 : vector<16x16xf32>
    %cst_65 = arith.constant dense<0.000000e+00> : vector<16x16xf32>
    %200 = tpu.matmul %199, %180, %cst_65 {dimension_numbers = #tpu.dot_dimension_numbers<[1], [0], [0], [1], [0, 0, 1, 1], [], []>} : vector<16x16xf32>, vector<16x16xf32>, vector<16x16xf32> -> vector<16x16xf32>
    %201 = vector.extract_strided_slice %200 {offsets = [0, 0], sizes = [8, 16], strides = [1, 1]} : vector<16x16xf32> to vector<8x16xf32>
    %202 = vector.extract_strided_slice %200 {offsets = [8, 0], sizes = [8, 16], strides = [1, 1]} : vector<16x16xf32> to vector<8x16xf32>
    %203 = tpu.concatenate %201, %202 in 1 : vector<8x16xf32>, vector<8x16xf32> -> vector<8x32xf32>
    %c312 = arith.constant 312 : index
    %c0_66 = arith.constant 0 : index
    %204 = vector.load %arg1[%c312, %c0_66] : memref<856x32xf32, #tpu.memory_space<vmem>>, vector<32x32xf32>
    %cst_67 = arith.constant dense<0.000000e+00> : vector<8x32xf32>
    %205 = tpu.matmul %203, %204, %cst_67 {dimension_numbers = #tpu.dot_dimension_numbers<[1], [0], [0], [1], [0, 0, 1, 1], [], []>} : vector<8x32xf32>, vector<32x32xf32>, vector<8x32xf32> -> vector<8x32xf32>
    %c344 = arith.constant 344 : index
    %c0_68 = arith.constant 0 : index
    %206 = vector.load %arg1[%c344, %c0_68] : memref<856x32xf32, #tpu.memory_space<vmem>>, vector<1x32xf32>
    %207 = vector.broadcast %206 : vector<1x32xf32> to vector<8x32xf32>
    %208 = arith.addf %205, %207 : vector<8x32xf32>
    %209 = arith.addf %208, %165 : vector<8x32xf32>
    %c352 = arith.constant 352 : index
    %c0_69 = arith.constant 0 : index
    %210 = vector.load %arg1[%c352, %c0_69] : memref<856x32xf32, #tpu.memory_space<vmem>>, vector<1x32xf32>
    %c360 = arith.constant 360 : index
    %c0_70 = arith.constant 0 : index
    %211 = vector.load %arg1[%c360, %c0_70] : memref<856x32xf32, #tpu.memory_space<vmem>>, vector<1x32xf32>
    %cst_71 = arith.constant dense<0.000000e+00> : vector<8xf32>
    %212 = vector.multi_reduction <add>, %209, %cst_71 [1] : vector<8x32xf32> to vector<8xf32>
    %213 = vector.shape_cast %212 : vector<8xf32> to vector<8x1xf32>
    %cst_72 = arith.constant 3.200000e+01 : f32
    %214 = vector.broadcast %cst_72 : f32 to vector<8x1xf32>
    %215 = arith.divf %213, %214 : vector<8x1xf32>
    %216 = vector.broadcast %215 : vector<8x1xf32> to vector<8x32xf32>
    %217 = arith.subf %209, %216 : vector<8x32xf32>
    %218 = arith.mulf %217, %217 : vector<8x32xf32>
    %cst_73 = arith.constant dense<0.000000e+00> : vector<8xf32>
    %219 = vector.multi_reduction <add>, %218, %cst_73 [1] : vector<8x32xf32> to vector<8xf32>
    %220 = vector.shape_cast %219 : vector<8xf32> to vector<8x1xf32>
    %cst_74 = arith.constant 3.200000e+01 : f32
    %221 = vector.broadcast %cst_74 : f32 to vector<8x1xf32>
    %222 = arith.divf %220, %221 : vector<8x1xf32>
    %cst_75 = arith.constant 9.99999996E-13 : f32
    %223 = vector.broadcast %cst_75 : f32 to vector<8x1xf32>
    %224 = arith.addf %222, %223 : vector<8x1xf32>
    %225 = math.rsqrt %224 : vector<8x1xf32>
    %226 = vector.broadcast %225 : vector<8x1xf32> to vector<8x32xf32>
    %227 = arith.mulf %217, %226 : vector<8x32xf32>
    %228 = vector.broadcast %210 : vector<1x32xf32> to vector<8x32xf32>
    %229 = arith.mulf %227, %228 : vector<8x32xf32>
    %230 = vector.broadcast %211 : vector<1x32xf32> to vector<8x32xf32>
    %231 = arith.addf %229, %230 : vector<8x32xf32>
    %c40 = arith.constant 40 : index
    %c0_76 = arith.constant 0 : index
    %232 = vector.load %arg2[%c40, %c0_76] : memref<160x96xf32, #tpu.memory_space<vmem>>, vector<32x64xf32>
    %cst_77 = arith.constant dense<0.000000e+00> : vector<8x64xf32>
    %233 = tpu.matmul %231, %232, %cst_77 {dimension_numbers = #tpu.dot_dimension_numbers<[1], [0], [0], [1], [0, 0, 1, 1], [], []>} : vector<8x32xf32>, vector<32x64xf32>, vector<8x64xf32> -> vector<8x64xf32>
    %c72 = arith.constant 72 : index
    %c0_78 = arith.constant 0 : index
    %234 = vector.load %arg2[%c72, %c0_78] : memref<160x96xf32, #tpu.memory_space<vmem>>, vector<1x64xf32>
    %235 = vector.broadcast %234 : vector<1x64xf32> to vector<8x64xf32>
    %236 = arith.addf %233, %235 : vector<8x64xf32>
    %cst_79 = arith.constant 5.000000e-01 : f32
    %237 = vector.broadcast %cst_79 : f32 to vector<8x64xf32>
    %238 = arith.mulf %237, %236 : vector<8x64xf32>
    %cst_80 = arith.constant 0.707106769 : f32
    %239 = vector.broadcast %cst_80 : f32 to vector<8x64xf32>
    %240 = arith.mulf %236, %239 : vector<8x64xf32>
    %cst_81 = arith.constant 0.000000e+00 : f32
    %241 = vector.broadcast %cst_81 : f32 to vector<8x64xf32>
    %242 = arith.cmpf oge, %240, %241 : vector<8x64xf32>
    %cst_82 = arith.constant 1.000000e+00 : f32
    %cst_83 = arith.constant -1.000000e+00 : f32
    %243 = vector.broadcast %cst_82 : f32 to vector<8x64xf32>
    %244 = vector.broadcast %cst_83 : f32 to vector<8x64xf32>
    %245 = arith.select %242, %243, %244 : vector<8x64xi1>, vector<8x64xf32>
    %246 = math.absf %240 : vector<8x64xf32>
    %cst_84 = arith.constant 0.327591091 : f32
    %247 = vector.broadcast %cst_84 : f32 to vector<8x64xf32>
    %248 = arith.mulf %247, %246 : vector<8x64xf32>
    %cst_85 = arith.constant 1.000000e+00 : f32
    %249 = vector.broadcast %cst_85 : f32 to vector<8x64xf32>
    %250 = arith.addf %249, %248 : vector<8x64xf32>
    %251 = tpu.reciprocal %250 : vector<8x64xf32> -> vector<8x64xf32>
    %cst_86 = arith.constant 1.06140542 : f32
    %252 = vector.broadcast %cst_86 : f32 to vector<8x64xf32>
    %253 = arith.mulf %252, %251 : vector<8x64xf32>
    %cst_87 = arith.constant -1.45315206 : f32
    %254 = vector.broadcast %cst_87 : f32 to vector<8x64xf32>
    %255 = arith.addf %253, %254 : vector<8x64xf32>
    %256 = arith.mulf %255, %251 : vector<8x64xf32>
    %cst_88 = arith.constant 1.42141378 : f32
    %257 = vector.broadcast %cst_88 : f32 to vector<8x64xf32>
    %258 = arith.addf %256, %257 : vector<8x64xf32>
    %259 = arith.mulf %258, %251 : vector<8x64xf32>
    %cst_89 = arith.constant -0.284496725 : f32
    %260 = vector.broadcast %cst_89 : f32 to vector<8x64xf32>
    %261 = arith.addf %259, %260 : vector<8x64xf32>
    %262 = arith.mulf %261, %251 : vector<8x64xf32>
    %cst_90 = arith.constant 0.254829586 : f32
    %263 = vector.broadcast %cst_90 : f32 to vector<8x64xf32>
    %264 = arith.addf %262, %263 : vector<8x64xf32>
    %265 = arith.mulf %264, %251 : vector<8x64xf32>
    %cst_91 = arith.constant 0.000000e+00 : f32
    %266 = vector.broadcast %cst_91 : f32 to vector<8x64xf32>
    %267 = arith.subf %266, %246 : vector<8x64xf32>
    %268 = arith.mulf %267, %246 : vector<8x64xf32>
    %269 = math.exp %268 : vector<8x64xf32>
    %270 = arith.mulf %265, %269 : vector<8x64xf32>
    %cst_92 = arith.constant 1.000000e+00 : f32
    %271 = vector.broadcast %cst_92 : f32 to vector<8x64xf32>
    %272 = arith.subf %271, %270 : vector<8x64xf32>
    %273 = arith.mulf %245, %272 : vector<8x64xf32>
    %cst_93 = arith.constant 1.000000e+00 : f32
    %274 = vector.broadcast %cst_93 : f32 to vector<8x64xf32>
    %275 = arith.addf %274, %273 : vector<8x64xf32>
    %276 = arith.mulf %238, %275 : vector<8x64xf32>
    %c368 = arith.constant 368 : index
    %c0_94 = arith.constant 0 : index
    %277 = vector.load %arg1[%c368, %c0_94] : memref<856x32xf32, #tpu.memory_space<vmem>>, vector<64x32xf32>
    %cst_95 = arith.constant dense<0.000000e+00> : vector<8x32xf32>
    %278 = tpu.matmul %276, %277, %cst_95 {dimension_numbers = #tpu.dot_dimension_numbers<[1], [0], [0], [1], [0, 0, 1, 1], [], []>} : vector<8x64xf32>, vector<64x32xf32>, vector<8x32xf32> -> vector<8x32xf32>
    %c432 = arith.constant 432 : index
    %c0_96 = arith.constant 0 : index
    %279 = vector.load %arg1[%c432, %c0_96] : memref<856x32xf32, #tpu.memory_space<vmem>>, vector<1x32xf32>
    %280 = vector.broadcast %279 : vector<1x32xf32> to vector<8x32xf32>
    %281 = arith.addf %278, %280 : vector<8x32xf32>
    %282 = arith.addf %281, %231 : vector<8x32xf32>
    %c440 = arith.constant 440 : index
    %c0_97 = arith.constant 0 : index
    %283 = vector.load %arg1[%c440, %c0_97] : memref<856x32xf32, #tpu.memory_space<vmem>>, vector<1x32xf32>
    %c448 = arith.constant 448 : index
    %c0_98 = arith.constant 0 : index
    %284 = vector.load %arg1[%c448, %c0_98] : memref<856x32xf32, #tpu.memory_space<vmem>>, vector<1x32xf32>
    %cst_99 = arith.constant dense<0.000000e+00> : vector<8xf32>
    %285 = vector.multi_reduction <add>, %282, %cst_99 [1] : vector<8x32xf32> to vector<8xf32>
    %286 = vector.shape_cast %285 : vector<8xf32> to vector<8x1xf32>
    %cst_100 = arith.constant 3.200000e+01 : f32
    %287 = vector.broadcast %cst_100 : f32 to vector<8x1xf32>
    %288 = arith.divf %286, %287 : vector<8x1xf32>
    %289 = vector.broadcast %288 : vector<8x1xf32> to vector<8x32xf32>
    %290 = arith.subf %282, %289 : vector<8x32xf32>
    %291 = arith.mulf %290, %290 : vector<8x32xf32>
    %cst_101 = arith.constant dense<0.000000e+00> : vector<8xf32>
    %292 = vector.multi_reduction <add>, %291, %cst_101 [1] : vector<8x32xf32> to vector<8xf32>
    %293 = vector.shape_cast %292 : vector<8xf32> to vector<8x1xf32>
    %cst_102 = arith.constant 3.200000e+01 : f32
    %294 = vector.broadcast %cst_102 : f32 to vector<8x1xf32>
    %295 = arith.divf %293, %294 : vector<8x1xf32>
    %cst_103 = arith.constant 9.99999996E-13 : f32
    %296 = vector.broadcast %cst_103 : f32 to vector<8x1xf32>
    %297 = arith.addf %295, %296 : vector<8x1xf32>
    %298 = math.rsqrt %297 : vector<8x1xf32>
    %299 = vector.broadcast %298 : vector<8x1xf32> to vector<8x32xf32>
    %300 = arith.mulf %290, %299 : vector<8x32xf32>
    %301 = vector.broadcast %283 : vector<1x32xf32> to vector<8x32xf32>
    %302 = arith.mulf %300, %301 : vector<8x32xf32>
    %303 = vector.broadcast %284 : vector<1x32xf32> to vector<8x32xf32>
    %304 = arith.addf %302, %303 : vector<8x32xf32>
    %c80 = arith.constant 80 : index
    %c0_104 = arith.constant 0 : index
    %305 = vector.load %arg2[%c80, %c0_104] : memref<160x96xf32, #tpu.memory_space<vmem>>, vector<32x96xf32>
    %cst_105 = arith.constant dense<0.000000e+00> : vector<8x96xf32>
    %306 = tpu.matmul %304, %305, %cst_105 {dimension_numbers = #tpu.dot_dimension_numbers<[1], [0], [0], [1], [0, 0, 1, 1], [], []>} : vector<8x32xf32>, vector<32x96xf32>, vector<8x96xf32> -> vector<8x96xf32>
    %c112_106 = arith.constant 112 : index
    %c0_107 = arith.constant 0 : index
    %307 = vector.load %arg2[%c112_106, %c0_107] : memref<160x96xf32, #tpu.memory_space<vmem>>, vector<1x96xf32>
    %308 = vector.broadcast %307 : vector<1x96xf32> to vector<8x96xf32>
    %309 = arith.addf %306, %308 : vector<8x96xf32>
    %310 = vector.extract_strided_slice %309 {offsets = [0, 0], sizes = [8, 16], strides = [1, 1]} : vector<8x96xf32> to vector<8x16xf32>
    %311 = vector.extract_strided_slice %309 {offsets = [0, 16], sizes = [8, 16], strides = [1, 1]} : vector<8x96xf32> to vector<8x16xf32>
    %312 = tpu.concatenate %310, %311 in 0 : vector<8x16xf32>, vector<8x16xf32> -> vector<16x16xf32>
    %313 = vector.extract_strided_slice %309 {offsets = [0, 32], sizes = [8, 16], strides = [1, 1]} : vector<8x96xf32> to vector<8x16xf32>
    %314 = vector.extract_strided_slice %309 {offsets = [0, 48], sizes = [8, 16], strides = [1, 1]} : vector<8x96xf32> to vector<8x16xf32>
    %315 = tpu.concatenate %313, %314 in 0 : vector<8x16xf32>, vector<8x16xf32> -> vector<16x16xf32>
    %316 = vector.extract_strided_slice %309 {offsets = [0, 64], sizes = [8, 16], strides = [1, 1]} : vector<8x96xf32> to vector<8x16xf32>
    %317 = vector.extract_strided_slice %309 {offsets = [0, 80], sizes = [8, 16], strides = [1, 1]} : vector<8x96xf32> to vector<8x16xf32>
    %318 = tpu.concatenate %316, %317 in 0 : vector<8x16xf32>, vector<8x16xf32> -> vector<16x16xf32>
    %cst_108 = arith.constant dense<0.000000e+00> : vector<16x16xf32>
    %319 = tpu.matmul %312, %315, %cst_108 {dimension_numbers = #tpu.dot_dimension_numbers<[1], [1], [0], [0], [0, 0, 1, 0], [], []>} : vector<16x16xf32>, vector<16x16xf32>, vector<16x16xf32> -> vector<16x16xf32>
    %cst_109 = arith.constant 2.500000e-01 : f32
    %320 = vector.broadcast %cst_109 : f32 to vector<16x16xf32>
    %321 = arith.mulf %319, %320 : vector<16x16xf32>
    %322 = vector.broadcast %138 : vector<1x16xf32> to vector<16x16xf32>
    %323 = arith.addf %321, %322 : vector<16x16xf32>
    %cst_110 = arith.constant 0.000000e+00 : f32
    %324 = vector.broadcast %cst_110 : f32 to vector<16x16xf32>
    %325 = arith.cmpf ogt, %166, %324 : vector<16x16xf32>
    %cst_111 = arith.constant 0xFF800000 : f32
    %326 = vector.broadcast %cst_111 : f32 to vector<16x16xf32>
    %327 = arith.select %325, %323, %326 : vector<16x16xi1>, vector<16x16xf32>
    %cst_112 = arith.constant dense<0xFF800000> : vector<16xf32>
    %328 = vector.multi_reduction <maximumf>, %327, %cst_112 [1] : vector<16x16xf32> to vector<16xf32>
    %329 = vector.shape_cast %328 : vector<16xf32> to vector<16x1xf32>
    %330 = vector.broadcast %329 : vector<16x1xf32> to vector<16x16xf32>
    %331 = arith.subf %327, %330 : vector<16x16xf32>
    %332 = math.exp %331 : vector<16x16xf32>
    %cst_113 = arith.constant dense<0.000000e+00> : vector<16xf32>
    %333 = vector.multi_reduction <add>, %332, %cst_113 [1] : vector<16x16xf32> to vector<16xf32>
    %334 = vector.shape_cast %333 : vector<16xf32> to vector<16x1xf32>
    %335 = tpu.reciprocal %334 : vector<16x1xf32> -> vector<16x1xf32>
    %336 = vector.broadcast %335 : vector<16x1xf32> to vector<16x16xf32>
    %337 = arith.mulf %332, %336 : vector<16x16xf32>
    %cst_114 = arith.constant dense<0.000000e+00> : vector<16x16xf32>
    %338 = tpu.matmul %337, %318, %cst_114 {dimension_numbers = #tpu.dot_dimension_numbers<[1], [0], [0], [1], [0, 0, 1, 1], [], []>} : vector<16x16xf32>, vector<16x16xf32>, vector<16x16xf32> -> vector<16x16xf32>
    %339 = vector.extract_strided_slice %338 {offsets = [0, 0], sizes = [8, 16], strides = [1, 1]} : vector<16x16xf32> to vector<8x16xf32>
    %340 = vector.extract_strided_slice %338 {offsets = [8, 0], sizes = [8, 16], strides = [1, 1]} : vector<16x16xf32> to vector<8x16xf32>
    %341 = tpu.concatenate %339, %340 in 1 : vector<8x16xf32>, vector<8x16xf32> -> vector<8x32xf32>
    %c456 = arith.constant 456 : index
    %c0_115 = arith.constant 0 : index
    %342 = vector.load %arg1[%c456, %c0_115] : memref<856x32xf32, #tpu.memory_space<vmem>>, vector<32x32xf32>
    %cst_116 = arith.constant dense<0.000000e+00> : vector<8x32xf32>
    %343 = tpu.matmul %341, %342, %cst_116 {dimension_numbers = #tpu.dot_dimension_numbers<[1], [0], [0], [1], [0, 0, 1, 1], [], []>} : vector<8x32xf32>, vector<32x32xf32>, vector<8x32xf32> -> vector<8x32xf32>
    %c488 = arith.constant 488 : index
    %c0_117 = arith.constant 0 : index
    %344 = vector.load %arg1[%c488, %c0_117] : memref<856x32xf32, #tpu.memory_space<vmem>>, vector<1x32xf32>
    %345 = vector.broadcast %344 : vector<1x32xf32> to vector<8x32xf32>
    %346 = arith.addf %343, %345 : vector<8x32xf32>
    %347 = arith.addf %346, %304 : vector<8x32xf32>
    %c496 = arith.constant 496 : index
    %c0_118 = arith.constant 0 : index
    %348 = vector.load %arg1[%c496, %c0_118] : memref<856x32xf32, #tpu.memory_space<vmem>>, vector<1x32xf32>
    %c504 = arith.constant 504 : index
    %c0_119 = arith.constant 0 : index
    %349 = vector.load %arg1[%c504, %c0_119] : memref<856x32xf32, #tpu.memory_space<vmem>>, vector<1x32xf32>
    %cst_120 = arith.constant dense<0.000000e+00> : vector<8xf32>
    %350 = vector.multi_reduction <add>, %347, %cst_120 [1] : vector<8x32xf32> to vector<8xf32>
    %351 = vector.shape_cast %350 : vector<8xf32> to vector<8x1xf32>
    %cst_121 = arith.constant 3.200000e+01 : f32
    %352 = vector.broadcast %cst_121 : f32 to vector<8x1xf32>
    %353 = arith.divf %351, %352 : vector<8x1xf32>
    %354 = vector.broadcast %353 : vector<8x1xf32> to vector<8x32xf32>
    %355 = arith.subf %347, %354 : vector<8x32xf32>
    %356 = arith.mulf %355, %355 : vector<8x32xf32>
    %cst_122 = arith.constant dense<0.000000e+00> : vector<8xf32>
    %357 = vector.multi_reduction <add>, %356, %cst_122 [1] : vector<8x32xf32> to vector<8xf32>
    %358 = vector.shape_cast %357 : vector<8xf32> to vector<8x1xf32>
    %cst_123 = arith.constant 3.200000e+01 : f32
    %359 = vector.broadcast %cst_123 : f32 to vector<8x1xf32>
    %360 = arith.divf %358, %359 : vector<8x1xf32>
    %cst_124 = arith.constant 9.99999996E-13 : f32
    %361 = vector.broadcast %cst_124 : f32 to vector<8x1xf32>
    %362 = arith.addf %360, %361 : vector<8x1xf32>
    %363 = math.rsqrt %362 : vector<8x1xf32>
    %364 = vector.broadcast %363 : vector<8x1xf32> to vector<8x32xf32>
    %365 = arith.mulf %355, %364 : vector<8x32xf32>
    %366 = vector.broadcast %348 : vector<1x32xf32> to vector<8x32xf32>
    %367 = arith.mulf %365, %366 : vector<8x32xf32>
    %368 = vector.broadcast %349 : vector<1x32xf32> to vector<8x32xf32>
    %369 = arith.addf %367, %368 : vector<8x32xf32>
    %c120_125 = arith.constant 120 : index
    %c0_126 = arith.constant 0 : index
    %370 = vector.load %arg2[%c120_125, %c0_126] : memref<160x96xf32, #tpu.memory_space<vmem>>, vector<32x64xf32>
    %cst_127 = arith.constant dense<0.000000e+00> : vector<8x64xf32>
    %371 = tpu.matmul %369, %370, %cst_127 {dimension_numbers = #tpu.dot_dimension_numbers<[1], [0], [0], [1], [0, 0, 1, 1], [], []>} : vector<8x32xf32>, vector<32x64xf32>, vector<8x64xf32> -> vector<8x64xf32>
    %c152_128 = arith.constant 152 : index
    %c0_129 = arith.constant 0 : index
    %372 = vector.load %arg2[%c152_128, %c0_129] : memref<160x96xf32, #tpu.memory_space<vmem>>, vector<1x64xf32>
    %373 = vector.broadcast %372 : vector<1x64xf32> to vector<8x64xf32>
    %374 = arith.addf %371, %373 : vector<8x64xf32>
    %cst_130 = arith.constant 5.000000e-01 : f32
    %375 = vector.broadcast %cst_130 : f32 to vector<8x64xf32>
    %376 = arith.mulf %375, %374 : vector<8x64xf32>
    %cst_131 = arith.constant 0.707106769 : f32
    %377 = vector.broadcast %cst_131 : f32 to vector<8x64xf32>
    %378 = arith.mulf %374, %377 : vector<8x64xf32>
    %cst_132 = arith.constant 0.000000e+00 : f32
    %379 = vector.broadcast %cst_132 : f32 to vector<8x64xf32>
    %380 = arith.cmpf oge, %378, %379 : vector<8x64xf32>
    %cst_133 = arith.constant 1.000000e+00 : f32
    %cst_134 = arith.constant -1.000000e+00 : f32
    %381 = vector.broadcast %cst_133 : f32 to vector<8x64xf32>
    %382 = vector.broadcast %cst_134 : f32 to vector<8x64xf32>
    %383 = arith.select %380, %381, %382 : vector<8x64xi1>, vector<8x64xf32>
    %384 = math.absf %378 : vector<8x64xf32>
    %cst_135 = arith.constant 0.327591091 : f32
    %385 = vector.broadcast %cst_135 : f32 to vector<8x64xf32>
    %386 = arith.mulf %385, %384 : vector<8x64xf32>
    %cst_136 = arith.constant 1.000000e+00 : f32
    %387 = vector.broadcast %cst_136 : f32 to vector<8x64xf32>
    %388 = arith.addf %387, %386 : vector<8x64xf32>
    %389 = tpu.reciprocal %388 : vector<8x64xf32> -> vector<8x64xf32>
    %cst_137 = arith.constant 1.06140542 : f32
    %390 = vector.broadcast %cst_137 : f32 to vector<8x64xf32>
    %391 = arith.mulf %390, %389 : vector<8x64xf32>
    %cst_138 = arith.constant -1.45315206 : f32
    %392 = vector.broadcast %cst_138 : f32 to vector<8x64xf32>
    %393 = arith.addf %391, %392 : vector<8x64xf32>
    %394 = arith.mulf %393, %389 : vector<8x64xf32>
    %cst_139 = arith.constant 1.42141378 : f32
    %395 = vector.broadcast %cst_139 : f32 to vector<8x64xf32>
    %396 = arith.addf %394, %395 : vector<8x64xf32>
    %397 = arith.mulf %396, %389 : vector<8x64xf32>
    %cst_140 = arith.constant -0.284496725 : f32
    %398 = vector.broadcast %cst_140 : f32 to vector<8x64xf32>
    %399 = arith.addf %397, %398 : vector<8x64xf32>
    %400 = arith.mulf %399, %389 : vector<8x64xf32>
    %cst_141 = arith.constant 0.254829586 : f32
    %401 = vector.broadcast %cst_141 : f32 to vector<8x64xf32>
    %402 = arith.addf %400, %401 : vector<8x64xf32>
    %403 = arith.mulf %402, %389 : vector<8x64xf32>
    %cst_142 = arith.constant 0.000000e+00 : f32
    %404 = vector.broadcast %cst_142 : f32 to vector<8x64xf32>
    %405 = arith.subf %404, %384 : vector<8x64xf32>
    %406 = arith.mulf %405, %384 : vector<8x64xf32>
    %407 = math.exp %406 : vector<8x64xf32>
    %408 = arith.mulf %403, %407 : vector<8x64xf32>
    %cst_143 = arith.constant 1.000000e+00 : f32
    %409 = vector.broadcast %cst_143 : f32 to vector<8x64xf32>
    %410 = arith.subf %409, %408 : vector<8x64xf32>
    %411 = arith.mulf %383, %410 : vector<8x64xf32>
    %cst_144 = arith.constant 1.000000e+00 : f32
    %412 = vector.broadcast %cst_144 : f32 to vector<8x64xf32>
    %413 = arith.addf %412, %411 : vector<8x64xf32>
    %414 = arith.mulf %376, %413 : vector<8x64xf32>
    %c512 = arith.constant 512 : index
    %c0_145 = arith.constant 0 : index
    %415 = vector.load %arg1[%c512, %c0_145] : memref<856x32xf32, #tpu.memory_space<vmem>>, vector<64x32xf32>
    %cst_146 = arith.constant dense<0.000000e+00> : vector<8x32xf32>
    %416 = tpu.matmul %414, %415, %cst_146 {dimension_numbers = #tpu.dot_dimension_numbers<[1], [0], [0], [1], [0, 0, 1, 1], [], []>} : vector<8x64xf32>, vector<64x32xf32>, vector<8x32xf32> -> vector<8x32xf32>
    %c576 = arith.constant 576 : index
    %c0_147 = arith.constant 0 : index
    %417 = vector.load %arg1[%c576, %c0_147] : memref<856x32xf32, #tpu.memory_space<vmem>>, vector<1x32xf32>
    %418 = vector.broadcast %417 : vector<1x32xf32> to vector<8x32xf32>
    %419 = arith.addf %416, %418 : vector<8x32xf32>
    %420 = arith.addf %419, %369 : vector<8x32xf32>
    %c584 = arith.constant 584 : index
    %c0_148 = arith.constant 0 : index
    %421 = vector.load %arg1[%c584, %c0_148] : memref<856x32xf32, #tpu.memory_space<vmem>>, vector<1x32xf32>
    %c592 = arith.constant 592 : index
    %c0_149 = arith.constant 0 : index
    %422 = vector.load %arg1[%c592, %c0_149] : memref<856x32xf32, #tpu.memory_space<vmem>>, vector<1x32xf32>
    %cst_150 = arith.constant dense<0.000000e+00> : vector<8xf32>
    %423 = vector.multi_reduction <add>, %420, %cst_150 [1] : vector<8x32xf32> to vector<8xf32>
    %424 = vector.shape_cast %423 : vector<8xf32> to vector<8x1xf32>
    %cst_151 = arith.constant 3.200000e+01 : f32
    %425 = vector.broadcast %cst_151 : f32 to vector<8x1xf32>
    %426 = arith.divf %424, %425 : vector<8x1xf32>
    %427 = vector.broadcast %426 : vector<8x1xf32> to vector<8x32xf32>
    %428 = arith.subf %420, %427 : vector<8x32xf32>
    %429 = arith.mulf %428, %428 : vector<8x32xf32>
    %cst_152 = arith.constant dense<0.000000e+00> : vector<8xf32>
    %430 = vector.multi_reduction <add>, %429, %cst_152 [1] : vector<8x32xf32> to vector<8xf32>
    %431 = vector.shape_cast %430 : vector<8xf32> to vector<8x1xf32>
    %cst_153 = arith.constant 3.200000e+01 : f32
    %432 = vector.broadcast %cst_153 : f32 to vector<8x1xf32>
    %433 = arith.divf %431, %432 : vector<8x1xf32>
    %cst_154 = arith.constant 9.99999996E-13 : f32
    %434 = vector.broadcast %cst_154 : f32 to vector<8x1xf32>
    %435 = arith.addf %433, %434 : vector<8x1xf32>
    %436 = math.rsqrt %435 : vector<8x1xf32>
    %437 = vector.broadcast %436 : vector<8x1xf32> to vector<8x32xf32>
    %438 = arith.mulf %428, %437 : vector<8x32xf32>
    %439 = vector.broadcast %421 : vector<1x32xf32> to vector<8x32xf32>
    %440 = arith.mulf %438, %439 : vector<8x32xf32>
    %441 = vector.broadcast %422 : vector<1x32xf32> to vector<8x32xf32>
    %442 = arith.addf %440, %441 : vector<8x32xf32>
    %c848 = arith.constant 848 : index
    %c0_155 = arith.constant 0 : index
    %443 = vector.load %arg1[%c848, %c0_155] : memref<856x32xf32, #tpu.memory_space<vmem>>, vector<2x8xf32>
    %cst_156 = arith.constant dense<0.000000e+00> : vector<2x32xf32>
    %444 = tpu.matmul %443, %442, %cst_156 {dimension_numbers = #tpu.dot_dimension_numbers<[1], [0], [0], [1], [0, 0, 1, 1], [], []>} : vector<2x8xf32>, vector<8x32xf32>, vector<2x32xf32> -> vector<2x32xf32>
    %c232 = arith.constant 232 : index
    %c0_157 = arith.constant 0 : index
    %445 = vector.load %arg1[%c232, %c0_157] : memref<856x32xf32, #tpu.memory_space<vmem>>, vector<32x32xf32>
    %cst_158 = arith.constant dense<0.000000e+00> : vector<2x32xf32>
    %446 = tpu.matmul %444, %445, %cst_158 {dimension_numbers = #tpu.dot_dimension_numbers<[1], [0], [0], [1], [0, 0, 1, 1], [], []>} : vector<2x32xf32>, vector<32x32xf32>, vector<2x32xf32> -> vector<2x32xf32>
    %c264 = arith.constant 264 : index
    %c0_159 = arith.constant 0 : index
    %447 = vector.load %arg1[%c264, %c0_159] : memref<856x32xf32, #tpu.memory_space<vmem>>, vector<1x32xf32>
    %448 = vector.broadcast %447 : vector<1x32xf32> to vector<2x32xf32>
    %449 = arith.addf %446, %448 : vector<2x32xf32>
    %450 = math.tanh %449 : vector<2x32xf32>
    %c272 = arith.constant 272 : index
    %c0_160 = arith.constant 0 : index
    %451 = vector.load %arg1[%c272, %c0_160] : memref<856x32xf32, #tpu.memory_space<vmem>>, vector<32x2xf32>
    %cst_161 = arith.constant dense<0.000000e+00> : vector<2x2xf32>
    %452 = tpu.matmul %450, %451, %cst_161 {dimension_numbers = #tpu.dot_dimension_numbers<[1], [0], [0], [1], [0, 0, 1, 1], [], []>} : vector<2x32xf32>, vector<32x2xf32>, vector<2x2xf32> -> vector<2x2xf32>
    %c304 = arith.constant 304 : index
    %c0_162 = arith.constant 0 : index
    %453 = vector.load %arg1[%c304, %c0_162] : memref<856x32xf32, #tpu.memory_space<vmem>>, vector<1x2xf32>
    %454 = vector.broadcast %453 : vector<1x2xf32> to vector<2x2xf32>
    %455 = arith.addf %452, %454 : vector<2x2xf32>
    %c0_163 = arith.constant 0 : index
    %c0_164 = arith.constant 0 : index
    %456 = vector.load %arg3[%c0_163, %c0_164] : memref<2x2xf32, #tpu.memory_space<vmem>>, vector<2x2xf32>
    tpu.vector_store %arg3[%c0_163, %c0_164], %455 {strides = array<i32>} : memref<2x2xf32, #tpu.memory_space<vmem>>, vector<2x2xf32>,
    return
  }
}

</mosaic_0001>

<llo_original>
// kernel: forward.1
$region0: #{forward.1}
  #allocation0 [shape = 'u32[]', space=smem, size = 0x4, offset = 0x4, fixed_abs, tag = 'smem constant byte address 0x4 - core index']
  #allocation1 [shape = 'u32[72,128]{1,0:T(1,128)}', space=vmem, size = 0x9000, scoped, tag = 'internal scratch']
  %s0 = inlined_call_operand.vmem [shape: f32[40,32], index: 0, kind: input, shape index: {}]
  %s1 = inlined_call_operand.vmem [shape: f32[856,32], index: 1, kind: input, shape index: {}]
  %s2 = inlined_call_operand.vmem [shape: f32[160,96], index: 2, kind: input, shape index: {}]
  %s3 = inlined_call_operand.hbm [shape: f32[2,2], index: 3, kind: output, shape index: {}]
  %s4 = sld [smem:[#allocation0]]
  $region22: #{forward.1} parent=0
    _
  %s6 = ssub.s32 1, %s4
  %s7 = scalar_select 0, %s6, %s4
  $region1: #{forward.1} parent=0
    #allocation2 [shape = 'u8[1024]{0}', space=vmem, size = 0x400, scoped, tag = 'output window, operand 0, single buffered']
    #allocation3 [shape = 's32[1]{0}', space=sflag, size = 0x4, scoped, tag = 'scoped memory for forward.1']
    %8 = vsyncpa [#allocation3], 0
    // Predicated region
    $region2: #{forward.1} parent=1 // pred_check
      _
    $region3: #{forward.1} parent=1 // pred_check_branch
      %10 = sbr.rel (0) target = $region5
    $region4: #{forward.1} parent=1 // pred_region
      _
    $region5: #{forward.1} parent=1 // pred_fallthru
      _
    // Predicated region
    $region6: #{forward.1} parent=1 // pred_check
      _
    $region7: #{forward.1} parent=1 // pred_check_branch
      %12 = sbr.rel (0) target = $region9
    $region8: #{forward.1} parent=1 // pred_region
      _
    $region9: #{forward.1} parent=1 // pred_fallthru
      _
    // Predicated region
    $region10: #{forward.1} parent=1 // pred_check
      _
    $region11: #{forward.1} parent=1 // pred_check_branch
      %14 = sbr.rel (0) target = $region13
    $region12: #{forward.1} parent=1 // pred_region
      _
    $region13: #{forward.1} parent=1 // pred_fallthru
      _
    %v15 = vld [vmem:[%s0] sm:$0xff]
    %v16 = vld [vmem:[%s0 + $0x8] sm:$0xff]
    %v17 = vld [vmem:[%s0 + $0x10] sm:$0xff]
    %v18 = vld [vmem:[%s0 + $0x18] sm:$0xff]
    %v19 = vld [vmem:[%s0 + $0x20] sm:$0x1]
    %v20 = vlaneseq
    %v21 = vand.u32 %v20, 127
    %v22 = vcvt.s32.f32 %v21
    %24 = vset.pattern.permute.xlu0 0
    %25 = vperm.xlu0 %24, %v15
    %v26 = vpop.permute.xlu0 %25
    %29 = vset.pattern.permute.xlu0 0
    %30 = vperm.xlu0 %29, %v16
    %v31 = vpop.permute.xlu0 %30
    %34 = vset.pattern.permute.xlu0 0
    %35 = vperm.xlu0 %34, %v17
    %v36 = vpop.permute.xlu0 %35
    %39 = vset.pattern.permute.xlu0 0
    %40 = vperm.xlu0 %39, %v18
    %v41 = vpop.permute.xlu0 %40
    %vm43 = vcmp.eq.f32.partialorder %v26, %v22
    %vm44 = vcmp.eq.f32.partialorder %v31, %v22
    %vm45 = vcmp.eq.f32.partialorder %v36, %v22
    %vm46 = vcmp.eq.f32.partialorder %v41, %v22
    %v47 = vsel %vm43, 1, 0
    %v48 = vsel %vm44, 1, 0
    %v49 = vsel %vm45, 1, 0
    %v50 = vsel %vm46, 1, 0
    %v51 = vcvt.s32.f32 %v47
    %v52 = vcvt.s32.f32 %v48
    %v53 = vcvt.s32.f32 %v49
    %v54 = vcvt.s32.f32 %v50
    %v55 = vld [vmem:[%s1] sm:$0xff]
    %v56 = vld [vmem:[%s1 + $0x8] sm:$0xff]
    %v57 = vld [vmem:[%s1 + $0x10] sm:$0xff]
    %v58 = vld [vmem:[%s1 + $0x18] sm:$0xff]
    %v59 = vld [vmem:[%s1 + $0x20] sm:$0xff]
    %v60 = vld [vmem:[%s1 + $0x28] sm:$0xff]
    %v61 = vld [vmem:[%s1 + $0x30] sm:$0xff]
    %v62 = vld [vmem:[%s1 + $0x38] sm:$0xff]
    %v63 = vld [vmem:[%s1 + $0x40] sm:$0xff]
    %v64 = vld [vmem:[%s1 + $0x48] sm:$0xff]
    %v65 = vld [vmem:[%s1 + $0x50] sm:$0xff]
    %v66 = vld [vmem:[%s1 + $0x58] sm:$0xff]
    %v67 = vld [vmem:[%s1 + $0x60] sm:$0xf]
    %vm68 = vcmask 818176
    %v70 = vsel %vm68, %v51, 0
    %v73 = vsel %vm68, %v52, 0
    %v76 = vsel %vm68, %v53, 0
    %v79 = vsel %vm68, %v54, 0
    %vm81 = vcmask 1043456
    %v83 = vsel %vm81, %v67, 0
    %85 = vmatpush.msra.mxu0 0.0
    %86 = vmatpush.msra.mxu0 0.0
    %87 = vmatpush.msra.mxu0 0.0
    %88 = vmatpush.msra.mxu0 %v83
    %89 = vmatpush.msra.mxu0 %v66
    %90 = vmatpush.msra.mxu0 %v65
    %91 = vmatpush.msra.mxu0 %v64
    %92 = vmatpush.msra.mxu0 %v63
    %93 = vmatpush.msra.mxu0 %v62
    %94 = vmatpush.msra.mxu0 %v61
    %95 = vmatpush.msra.mxu0 %v60
    %96 = vmatpush.msra.mxu0 %v59
    %97 = vmatpush.msra.mxu0 %v58
    %98 = vmatpush.msra.mxu0 %v57
    %99 = vmatpush.msra.mxu0 %v56
    %100 = vmatpush.msra.mxu0 %v55
    %101 = vmatmul.f32.gmra.mxu0 %v70
    %v102 = vpop.f32.mrf.mxu0
    %v103 = vadd.f32 0.0, %v102
    %104 = vmatmul.f32.gmra.mxu0 %v73
    %v105 = vpop.f32.mrf.mxu0
    %v106 = vadd.f32 0.0, %v105
    %107 = vmatmul.f32.gmra.mxu0 %v76
    %v108 = vpop.f32.mrf.mxu0
    %v109 = vadd.f32 0.0, %v108
    %110 = vmatmul.f32.gmra.mxu0 %v79
    %v111 = vpop.f32.mrf.mxu0
    %v112 = vadd.f32 0.0, %v111
    %113 = vdwg.mxu0
    %v114 = vld [vmem:[%s1 + $0x68] sm:$0xf]
    %v115 = vld [vmem:[%s1 + $0x258] sm:$0xff]
    %v116 = vld [vmem:[%s1 + $0x260] sm:$0xff]
    %v117 = vld [vmem:[%s1 + $0x268] sm:$0xff]
    %v118 = vld [vmem:[%s1 + $0x270] sm:$0xff]
    %v119 = vld [vmem:[%s1 + $0x278] sm:$0xff]
    %v120 = vld [vmem:[%s1 + $0x280] sm:$0xff]
    %v121 = vld [vmem:[%s1 + $0x288] sm:$0xff]
    %v122 = vld [vmem:[%s1 + $0x290] sm:$0xff]
    %v123 = vld [vmem:[%s1 + $0x298] sm:$0xff]
    %v124 = vld [vmem:[%s1 + $0x2a0] sm:$0xff]
    %v125 = vld [vmem:[%s1 + $0x2a8] sm:$0xff]
    %v126 = vld [vmem:[%s1 + $0x2b0] sm:$0xff]
    %vm127 = vcmask 261120
    %v129 = vsel %vm127, %v115, 0
    %v132 = vsel %vm127, %v116, 0
    %v135 = vsel %vm127, %v117, 0
    %v138 = vsel %vm127, %v118, 0
    %v141 = vsel %vm127, %v119, 0
    %v144 = vsel %vm127, %v120, 0
    %v147 = vsel %vm127, %v121, 0
    %v150 = vsel %vm127, %v122, 0
    %v153 = vsel %vm127, %v123, 0
    %v156 = vsel %vm127, %v124, 0
    %v159 = vsel %vm127, %v125, 0
    %v162 = vsel %vm127, %v126, 0
    %164 = vmatpush.msra.mxu0 0.0
    %165 = vmatpush.msra.mxu0 0.0
    %166 = vmatpush.msra.mxu0 0.0
    %167 = vmatpush.msra.mxu0 0.0
    %168 = vmatpush.msra.mxu0 0.0
    %169 = vmatpush.msra.mxu0 0.0
    %170 = vmatpush.msra.mxu0 0.0
    %171 = vmatpush.msra.mxu0 0.0
    %172 = vmatpush.msra.mxu0 0.0
    %173 = vmatpush.msra.mxu0 0.0
    %174 = vmatpush.msra.mxu0 0.0
    %175 = vmatpush.msra.mxu0 0.0
    %176 = vmatpush.msra.mxu0 %v112
    %177 = vmatpush.msra.mxu0 %v109
    %178 = vmatpush.msra.mxu0 %v106
    %179 = vmatpush.msra.mxu0 %v103
    %180 = vmatmul.f32.gmra.mxu0 %v129
    %v181 = vpop.f32.mrf.mxu0
    %v182 = vadd.f32 0.0, %v181
    %183 = vmatmul.f32.gmra.mxu0 %v132
    %v184 = vpop.f32.mrf.mxu0
    %v185 = vadd.f32 0.0, %v184
    %186 = vmatmul.f32.gmra.mxu0 %v135
    %v187 = vpop.f32.mrf.mxu0
    %v188 = vadd.f32 0.0, %v187
    %189 = vmatmul.f32.gmra.mxu0 %v138
    %v190 = vpop.f32.mrf.mxu0
    %v191 = vadd.f32 0.0, %v190
    %192 = vmatmul.f32.gmra.mxu0 %v141
    %v193 = vpop.f32.mrf.mxu0
    %v194 = vadd.f32 0.0, %v193
    %195 = vmatmul.f32.gmra.mxu0 %v144
    %v196 = vpop.f32.mrf.mxu0
    %v197 = vadd.f32 0.0, %v196
    %198 = vmatmul.f32.gmra.mxu0 %v147
    %v199 = vpop.f32.mrf.mxu0
    %v200 = vadd.f32 0.0, %v199
    %201 = vmatmul.f32.gmra.mxu0 %v150
    %v202 = vpop.f32.mrf.mxu0
    %v203 = vadd.f32 0.0, %v202
    %204 = vmatmul.f32.gmra.mxu0 %v153
    %v205 = vpop.f32.mrf.mxu0
    %v206 = vadd.f32 0.0, %v205
    %207 = vmatmul.f32.gmra.mxu0 %v156
    %v208 = vpop.f32.mrf.mxu0
    %v209 = vadd.f32 0.0, %v208
    %210 = vmatmul.f32.gmra.mxu0 %v159
    %v211 = vpop.f32.mrf.mxu0
    %v212 = vadd.f32 0.0, %v211
    %213 = vmatmul.f32.gmra.mxu0 %v162
    %v214 = vpop.f32.mrf.mxu0
    %v215 = vadd.f32 0.0, %v214
    %216 = vdwg.mxu0
    %v217 = vperm.slane %v114, 0
    %v218 = vmul.f32 %v103, %v217
    %v219 = vmul.f32 %v106, %v217
    %v220 = vmul.f32 %v109, %v217
    %v221 = vmul.f32 %v112, %v217
    %v222 = vperm.slane %v114, 1
    %v223 = vmul.f32 %v182, %v222
    %v224 = vmul.f32 %v185, %v222
    %v225 = vmul.f32 %v188, %v222
    %v226 = vmul.f32 %v191, %v222
    %v227 = vadd.f32 %v218, %v223
    %v228 = vadd.f32 %v219, %v224
    %v229 = vadd.f32 %v220, %v225
    %v230 = vadd.f32 %v221, %v226
    %v231 = vperm.slane %v114, 2
    %v232 = vmul.f32 %v194, %v231
    %v233 = vmul.f32 %v197, %v231
    %v234 = vmul.f32 %v200, %v231
    %v235 = vmul.f32 %v203, %v231
    %v236 = vadd.f32 %v227, %v232
    %v237 = vadd.f32 %v228, %v233
    %v238 = vadd.f32 %v229, %v234
    %v239 = vadd.f32 %v230, %v235
    %v240 = vperm.slane %v114, 3
    %v241 = vmul.f32 %v206, %v240
    %v242 = vmul.f32 %v209, %v240
    %v243 = vmul.f32 %v212, %v240
    %v244 = vmul.f32 %v215, %v240
    %v245 = vadd.f32 %v236, %v241
    %v246 = vadd.f32 %v237, %v242
    %v247 = vadd.f32 %v238, %v243
    %v248 = vadd.f32 %v239, %v244
    %v249 = vld [vmem:[%s1 + $0x70] sm:$0x1]
    %v250 = vperm.slane %v249, 0
    %v251 = vadd.f32 %v245, %v250
    %v252 = vadd.f32 %v246, %v250
    %v253 = vadd.f32 %v247, %v250
    %v254 = vadd.f32 %v248, %v250
    %v255 = vld [vmem:[%s1 + $0x78] sm:$0xff]
    %v256 = vld [vmem:[%s1 + $0x80] sm:$0xff]
    %v257 = vld [vmem:[%s1 + $0x88] sm:$0xff]
    %v258 = vld [vmem:[%s1 + $0x90] sm:$0xff]
    %v259 = vld [vmem:[%s1 + $0x98] sm:$0x1]
    %v260 = vperm.slane %v259, 0
    %v262 = vsel %vm127, %v251, 0
    %v265 = vsel %vm127, %v252, 0
    %v268 = vsel %vm127, %v253, 0
    %v271 = vsel %vm127, %v254, 0
    %273 = vmatpush.msra.mxu0 0.0
    %274 = vmatpush.msra.mxu0 0.0
    %275 = vmatpush.msra.mxu0 0.0
    %276 = vmatpush.msra.mxu0 0.0
    %277 = vmatpush.msra.mxu0 0.0
    %278 = vmatpush.msra.mxu0 0.0
    %279 = vmatpush.msra.mxu0 0.0
    %280 = vmatpush.msra.mxu0 0.0
    %281 = vmatpush.msra.mxu0 0.0
    %282 = vmatpush.msra.mxu0 0.0
    %283 = vmatpush.msra.mxu0 0.0
    %284 = vmatpush.msra.mxu0 0.0
    %285 = vmatpush.msra.mxu0 %v258
    %286 = vmatpush.msra.mxu0 %v257
    %287 = vmatpush.msra.mxu0 %v256
    %288 = vmatpush.msra.mxu0 %v255
    %289 = vmatmul.f32.gmra.mxu0 %v262
    %v290 = vpop.f32.mrf.mxu0
    %v291 = vadd.f32 %v260, %v290
    %292 = vmatmul.f32.gmra.mxu0 %v265
    %v293 = vpop.f32.mrf.mxu0
    %v294 = vadd.f32 %v260, %v293
    %295 = vmatmul.f32.gmra.mxu0 %v268
    %v296 = vpop.f32.mrf.mxu0
    %v297 = vadd.f32 %v260, %v296
    %298 = vmatmul.f32.gmra.mxu0 %v271
    %v299 = vpop.f32.mrf.mxu0
    %v300 = vadd.f32 %v260, %v299
    %301 = vdwg.mxu0
    %302 = vset.pattern.permute.xlu0 1
    %303 = vperm.xlu0 %302, %v15
    %v304 = vpop.permute.xlu0 %303
    %306 = vset.pattern.permute.xlu0 1
    %307 = vperm.xlu0 %306, %v16
    %v308 = vpop.permute.xlu0 %307
    %310 = vset.pattern.permute.xlu0 1
    %311 = vperm.xlu0 %310, %v17
    %v312 = vpop.permute.xlu0 %311
    %314 = vset.pattern.permute.xlu0 1
    %315 = vperm.xlu0 %314, %v18
    %v316 = vpop.permute.xlu0 %315
    %v318 = vmul.f32 %v291, %v304
    %v319 = vmul.f32 %v294, %v308
    %v320 = vmul.f32 %v297, %v312
    %v321 = vmul.f32 %v300, %v316
    %v322 = vld [vmem:[%s1 + $0xa0] sm:$0xff]
    %v323 = vld [vmem:[%s1 + $0xa8] sm:$0xff]
    %v324 = vld [vmem:[%s1 + $0xb0] sm:$0xff]
    %v325 = vld [vmem:[%s1 + $0xb8] sm:$0xff]
    %v326 = vld [vmem:[%s1 + $0xc0] sm:$0x1]
    %v327 = vld [vmem:[%s1 + $0x2b8] sm:$0xff]
    %v328 = vld [vmem:[%s1 + $0x2c0] sm:$0xff]
    %v329 = vld [vmem:[%s1 + $0x2c8] sm:$0xff]
    %v330 = vld [vmem:[%s1 + $0x2d0] sm:$0xff]
    %v331 = vld [vmem:[%s1 + $0x2d8] sm:$0xff]
    %v332 = vld [vmem:[%s1 + $0x2e0] sm:$0xff]
    %v333 = vld [vmem:[%s1 + $0x2e8] sm:$0xff]
    %v334 = vld [vmem:[%s1 + $0x2f0] sm:$0xff]
    %v335 = vld [vmem:[%s1 + $0x2f8] sm:$0xff]
    %v336 = vld [vmem:[%s1 + $0x300] sm:$0xff]
    %v337 = vld [vmem:[%s1 + $0x308] sm:$0xff]
    %v338 = vld [vmem:[%s1 + $0x310] sm:$0xff]
    %v340 = vsel %vm127, %v327, 0
    %v343 = vsel %vm127, %v328, 0
    %v346 = vsel %vm127, %v329, 0
    %v349 = vsel %vm127, %v330, 0
    %v352 = vsel %vm127, %v331, 0
    %v355 = vsel %vm127, %v332, 0
    %v358 = vsel %vm127, %v333, 0
    %v361 = vsel %vm127, %v334, 0
    %v364 = vsel %vm127, %v335, 0
    %v367 = vsel %vm127, %v336, 0
    %v370 = vsel %vm127, %v337, 0
    %v373 = vsel %vm127, %v338, 0
    %375 = vmatpush.msra.mxu0 0.0
    %376 = vmatpush.msra.mxu0 0.0
    %377 = vmatpush.msra.mxu0 0.0
    %378 = vmatpush.msra.mxu0 0.0
    %379 = vmatpush.msra.mxu0 0.0
    %380 = vmatpush.msra.mxu0 0.0
    %381 = vmatpush.msra.mxu0 0.0
    %382 = vmatpush.msra.mxu0 0.0
    %383 = vmatpush.msra.mxu0 0.0
    %384 = vmatpush.msra.mxu0 0.0
    %385 = vmatpush.msra.mxu0 0.0
    %386 = vmatpush.msra.mxu0 0.0
    %387 = vmatpush.msra.mxu0 %v321
    %388 = vmatpush.msra.mxu0 %v320
    %389 = vmatpush.msra.mxu0 %v319
    %390 = vmatpush.msra.mxu0 %v318
    %391 = vmatmul.f32.gmra.mxu0 %v340
    %v392 = vpop.f32.mrf.mxu0
    %v393 = vadd.f32 0.0, %v392
    %394 = vmatmul.f32.gmra.mxu0 %v343
    %v395 = vpop.f32.mrf.mxu0
    %v396 = vadd.f32 0.0, %v395
    %397 = vmatmul.f32.gmra.mxu0 %v346
    %v398 = vpop.f32.mrf.mxu0
    %v399 = vadd.f32 0.0, %v398
    %400 = vmatmul.f32.gmra.mxu0 %v349
    %v401 = vpop.f32.mrf.mxu0
    %v402 = vadd.f32 0.0, %v401
    %403 = vmatmul.f32.gmra.mxu0 %v352
    %v404 = vpop.f32.mrf.mxu0
    %v405 = vadd.f32 0.0, %v404
    %406 = vmatmul.f32.gmra.mxu0 %v355
    %v407 = vpop.f32.mrf.mxu0
    %v408 = vadd.f32 0.0, %v407
    %409 = vmatmul.f32.gmra.mxu0 %v358
    %v410 = vpop.f32.mrf.mxu0
    %v411 = vadd.f32 0.0, %v410
    %412 = vmatmul.f32.gmra.mxu0 %v361
    %v413 = vpop.f32.mrf.mxu0
    %v414 = vadd.f32 0.0, %v413
    %415 = vmatmul.f32.gmra.mxu0 %v364
    %v416 = vpop.f32.mrf.mxu0
    %v417 = vadd.f32 0.0, %v416
    %418 = vmatmul.f32.gmra.mxu0 %v367
    %v419 = vpop.f32.mrf.mxu0
    %v420 = vadd.f32 0.0, %v419
    %421 = vmatmul.f32.gmra.mxu0 %v370
    %v422 = vpop.f32.mrf.mxu0
    %v423 = vadd.f32 0.0, %v422
    %424 = vmatmul.f32.gmra.mxu0 %v373
    %v425 = vpop.f32.mrf.mxu0
    %v426 = vadd.f32 0.0, %v425
    %427 = vdwg.mxu0
    %428 = vrot.lane.b32.xlu0 %v15, 127
    %v429 = vpop.permute.xlu0 %428
    %430 = vrot.lane.b32.xlu0 %v16, 127
    %v431 = vpop.permute.xlu0 %430
    %432 = vrot.lane.b32.xlu0 %v17, 127
    %v433 = vpop.permute.xlu0 %432
    %434 = vrot.lane.b32.xlu0 %v18, 127
    %v435 = vpop.permute.xlu0 %434
    %440 = vmatpush.msra.mxu0 0.0
    %441 = vmatpush.msra.mxu0 0.0
    %442 = vmatpush.msra.mxu0 0.0
    %443 = vmatpush.msra.mxu0 0.0
    %444 = vmatpush.msra.mxu0 0.0
    %445 = vmatpush.msra.mxu0 0.0
    %446 = vmatpush.msra.mxu0 0.0
    %447 = vmatpush.msra.mxu0 0.0
    %448 = vmatpush.msra.mxu0 0.0
    %449 = vmatpush.msra.mxu0 0.0
    %450 = vmatpush.msra.mxu0 0.0
    %451 = vmatpush.msra.mxu0 0.0
    %452 = vmatpush.msra.mxu0 %v435
    %453 = vmatpush.msra.mxu0 %v433
    %454 = vmatpush.msra.mxu0 %v431
    %455 = vmatpush.msra.mxu0 %v429
    %456 = vmatmul.f32.gmra.mxu0 %v340
    %v457 = vpop.f32.mrf.mxu0
    %v458 = vadd.f32 0.0, %v457
    %459 = vmatmul.f32.gmra.mxu0 %v343
    %v460 = vpop.f32.mrf.mxu0
    %v461 = vadd.f32 0.0, %v460
    %462 = vmatmul.f32.gmra.mxu0 %v346
    %v463 = vpop.f32.mrf.mxu0
    %v464 = vadd.f32 0.0, %v463
    %465 = vmatmul.f32.gmra.mxu0 %v349
    %v466 = vpop.f32.mrf.mxu0
    %v467 = vadd.f32 0.0, %v466
    %468 = vmatmul.f32.gmra.mxu0 %v352
    %v469 = vpop.f32.mrf.mxu0
    %v470 = vadd.f32 0.0, %v469
    %471 = vmatmul.f32.gmra.mxu0 %v355
    %v472 = vpop.f32.mrf.mxu0
    %v473 = vadd.f32 0.0, %v472
    %474 = vmatmul.f32.gmra.mxu0 %v358
    %v475 = vpop.f32.mrf.mxu0
    %v476 = vadd.f32 0.0, %v475
    %477 = vmatmul.f32.gmra.mxu0 %v361
    %v478 = vpop.f32.mrf.mxu0
    %v479 = vadd.f32 0.0, %v478
    %480 = vmatmul.f32.gmra.mxu0 %v364
    %v481 = vpop.f32.mrf.mxu0
    %v482 = vadd.f32 0.0, %v481
    %483 = vmatmul.f32.gmra.mxu0 %v367
    %v484 = vpop.f32.mrf.mxu0
    %v485 = vadd.f32 0.0, %v484
    %486 = vmatmul.f32.gmra.mxu0 %v370
    %v487 = vpop.f32.mrf.mxu0
    %v488 = vadd.f32 0.0, %v487
    %489 = vmatmul.f32.gmra.mxu0 %v373
    %v490 = vpop.f32.mrf.mxu0
    %v491 = vadd.f32 0.0, %v490
    %492 = vdwg.mxu0
    %v493 = vmax.f32 %v458, 1.0
    %v494 = vmax.f32 %v461, 1.0
    %v495 = vmax.f32 %v464, 1.0
    %v496 = vmax.f32 %v467, 1.0
    %v497 = vmax.f32 %v470, 1.0
    %v498 = vmax.f32 %v473, 1.0
    %v499 = vmax.f32 %v476, 1.0
    %v500 = vmax.f32 %v479, 1.0
    %v501 = vmax.f32 %v482, 1.0
    %v502 = vmax.f32 %v485, 1.0
    %v503 = vmax.f32 %v488, 1.0
    %v504 = vmax.f32 %v491, 1.0
    %v505 = vrcp.pop %v493
    %v506 = vmul.f32 %v493, %v505
    %v507 = vsub.f32 1.0, %v506
    %v508 = vmul.f32 %v505, %v507
    %v509 = vadd.f32 %v505, %v508
    %vm510 = vweird.f32 %v493
    %vm511 = vweird.f32 %v505
    %vm512 = vmor %vm510, %vm511
    %v513 = vsel %vm512, %v505, %v509
    %v514 = vand.u32 2147483647, %v493
    %vm515 = vcmp.eq.f32.partialorder %v514, 8.507059e+37
    %v516 = vand.u32 %v493, 2147483648
    %v517 = vor.u32 1.1754944e-38, %v516
    %v518 = vsel %vm515, %v517, %v513
    %v519 = vrcp.pop %v494
    %v520 = vmul.f32 %v494, %v519
    %v521 = vsub.f32 1.0, %v520
    %v522 = vmul.f32 %v519, %v521
    %v523 = vadd.f32 %v519, %v522
    %vm524 = vweird.f32 %v494
    %vm525 = vweird.f32 %v519
    %vm526 = vmor %vm524, %vm525
    %v527 = vsel %vm526, %v519, %v523
    %v528 = vand.u32 2147483647, %v494
    %vm529 = vcmp.eq.f32.partialorder %v528, 8.507059e+37
    %v530 = vand.u32 %v494, 2147483648
    %v531 = vor.u32 1.1754944e-38, %v530
    %v532 = vsel %vm529, %v531, %v527
    %v533 = vrcp.pop %v495
    %v534 = vmul.f32 %v495, %v533
    %v535 = vsub.f32 1.0, %v534
    %v536 = vmul.f32 %v533, %v535
    %v537 = vadd.f32 %v533, %v536
    %vm538 = vweird.f32 %v495
    %vm539 = vweird.f32 %v533
    %vm540 = vmor %vm538, %vm539
    %v541 = vsel %vm540, %v533, %v537
    %v542 = vand.u32 2147483647, %v495
    %vm543 = vcmp.eq.f32.partialorder %v542, 8.507059e+37
    %v544 = vand.u32 %v495, 2147483648
    %v545 = vor.u32 1.1754944e-38, %v544
    %v546 = vsel %vm543, %v545, %v541
    %v547 = vrcp.pop %v496
    %v548 = vmul.f32 %v496, %v547
    %v549 = vsub.f32 1.0, %v548
    %v550 = vmul.f32 %v547, %v549
    %v551 = vadd.f32 %v547, %v550
    %vm552 = vweird.f32 %v496
    %vm553 = vweird.f32 %v547
    %vm554 = vmor %vm552, %vm553
    %v555 = vsel %vm554, %v547, %v551
    %v556 = vand.u32 2147483647, %v496
    %vm557 = vcmp.eq.f32.partialorder %v556, 8.507059e+37
    %v558 = vand.u32 %v496, 2147483648
    %v559 = vor.u32 1.1754944e-38, %v558
    %v560 = vsel %vm557, %v559, %v555
    %v561 = vrcp.pop %v497
    %v562 = vmul.f32 %v497, %v561
    %v563 = vsub.f32 1.0, %v562
    %v564 = vmul.f32 %v561, %v563
    %v565 = vadd.f32 %v561, %v564
    %vm566 = vweird.f32 %v497
    %vm567 = vweird.f32 %v561
    %vm568 = vmor %vm566, %vm567
    %v569 = vsel %vm568, %v561, %v565
    %v570 = vand.u32 2147483647, %v497
    %vm571 = vcmp.eq.f32.partialorder %v570, 8.507059e+37
    %v572 = vand.u32 %v497, 2147483648
    %v573 = vor.u32 1.1754944e-38, %v572
    %v574 = vsel %vm571, %v573, %v569
    %v575 = vrcp.pop %v498
    %v576 = vmul.f32 %v498, %v575
    %v577 = vsub.f32 1.0, %v576
    %v578 = vmul.f32 %v575, %v577
    %v579 = vadd.f32 %v575, %v578
    %vm580 = vweird.f32 %v498
    %vm581 = vweird.f32 %v575
    %vm582 = vmor %vm580, %vm581
    %v583 = vsel %vm582, %v575, %v579
    %v584 = vand.u32 2147483647, %v498
    %vm585 = vcmp.eq.f32.partialorder %v584, 8.507059e+37
    %v586 = vand.u32 %v498, 2147483648
    %v587 = vor.u32 1.1754944e-38, %v586
    %v588 = vsel %vm585, %v587, %v583
    %v589 = vrcp.pop %v499
    %v590 = vmul.f32 %v499, %v589
    %v591 = vsub.f32 1.0, %v590
    %v592 = vmul.f32 %v589, %v591
    %v593 = vadd.f32 %v589, %v592
    %vm594 = vweird.f32 %v499
    %vm595 = vweird.f32 %v589
    %vm596 = vmor %vm594, %vm595
    %v597 = vsel %vm596, %v589, %v593
    %v598 = vand.u32 2147483647, %v499
    %vm599 = vcmp.eq.f32.partialorder %v598, 8.507059e+37
    %v600 = vand.u32 %v499, 2147483648
    %v601 = vor.u32 1.1754944e-38, %v600
    %v602 = vsel %vm599, %v601, %v597
    %v603 = vrcp.pop %v500
    %v604 = vmul.f32 %v500, %v603
    %v605 = vsub.f32 1.0, %v604
    %v606 = vmul.f32 %v603, %v605
    %v607 = vadd.f32 %v603, %v606
    %vm608 = vweird.f32 %v500
    %vm609 = vweird.f32 %v603
    %vm610 = vmor %vm608, %vm609
    %v611 = vsel %vm610, %v603, %v607
    %v612 = vand.u32 2147483647, %v500
    %vm613 = vcmp.eq.f32.partialorder %v612, 8.507059e+37
    %v614 = vand.u32 %v500, 2147483648
    %v615 = vor.u32 1.1754944e-38, %v614
    %v616 = vsel %vm613, %v615, %v611
    %v617 = vrcp.pop %v501
    %v618 = vmul.f32 %v501, %v617
    %v619 = vsub.f32 1.0, %v618
    %v620 = vmul.f32 %v617, %v619
    %v621 = vadd.f32 %v617, %v620
    %vm622 = vweird.f32 %v501
    %vm623 = vweird.f32 %v617
    %vm624 = vmor %vm622, %vm623
    %v625 = vsel %vm624, %v617, %v621
    %v626 = vand.u32 2147483647, %v501
    %vm627 = vcmp.eq.f32.partialorder %v626, 8.507059e+37
    %v628 = vand.u32 %v501, 2147483648
    %v629 = vor.u32 1.1754944e-38, %v628
    %v630 = vsel %vm627, %v629, %v625
    %v631 = vrcp.pop %v502
    %v632 = vmul.f32 %v502, %v631
    %v633 = vsub.f32 1.0, %v632
    %v634 = vmul.f32 %v631, %v633
    %v635 = vadd.f32 %v631, %v634
    %vm636 = vweird.f32 %v502
    %vm637 = vweird.f32 %v631
    %vm638 = vmor %vm636, %vm637
    %v639 = vsel %vm638, %v631, %v635
    %v640 = vand.u32 2147483647, %v502
    %vm641 = vcmp.eq.f32.partialorder %v640, 8.507059e+37
    %v642 = vand.u32 %v502, 2147483648
    %v643 = vor.u32 1.1754944e-38, %v642
    %v644 = vsel %vm641, %v643, %v639
    %v645 = vrcp.pop %v503
    %v646 = vmul.f32 %v503, %v645
    %v647 = vsub.f32 1.0, %v646
    %v648 = vmul.f32 %v645, %v647
    %v649 = vadd.f32 %v645, %v648
    %vm650 = vweird.f32 %v503
    %vm651 = vweird.f32 %v645
    %vm652 = vmor %vm650, %vm651
    %v653 = vsel %vm652, %v645, %v649
    %v654 = vand.u32 2147483647, %v503
    %vm655 = vcmp.eq.f32.partialorder %v654, 8.507059e+37
    %v656 = vand.u32 %v503, 2147483648
    %v657 = vor.u32 1.1754944e-38, %v656
    %v658 = vsel %vm655, %v657, %v653
    %v659 = vrcp.pop %v504
    %v660 = vmul.f32 %v504, %v659
    %v661 = vsub.f32 1.0, %v660
    %v662 = vmul.f32 %v659, %v661
    %v663 = vadd.f32 %v659, %v662
    %vm664 = vweird.f32 %v504
    %vm665 = vweird.f32 %v659
    %vm666 = vmor %vm664, %vm665
    %v667 = vsel %vm666, %v659, %v663
    %v668 = vand.u32 2147483647, %v504
    %vm669 = vcmp.eq.f32.partialorder %v668, 8.507059e+37
    %v670 = vand.u32 %v504, 2147483648
    %v671 = vor.u32 1.1754944e-38, %v670
    %v672 = vsel %vm669, %v671, %v667
    %vm673 = vcmp.gt.f32.partialorder %v458, 0.0
    %vm674 = vcmp.gt.f32.partialorder %v461, 0.0
    %vm675 = vcmp.gt.f32.partialorder %v464, 0.0
    %vm676 = vcmp.gt.f32.partialorder %v467, 0.0
    %vm677 = vcmp.gt.f32.partialorder %v470, 0.0
    %vm678 = vcmp.gt.f32.partialorder %v473, 0.0
    %vm679 = vcmp.gt.f32.partialorder %v476, 0.0
    %vm680 = vcmp.gt.f32.partialorder %v479, 0.0
    %vm681 = vcmp.gt.f32.partialorder %v482, 0.0
    %vm682 = vcmp.gt.f32.partialorder %v485, 0.0
    %vm683 = vcmp.gt.f32.partialorder %v488, 0.0
    %vm684 = vcmp.gt.f32.partialorder %v491, 0.0
    %686 = vset.pattern.permute.xlu0 0
    %687 = vperm.xlu0 %686, %v518
    %v688 = vpop.permute.xlu0 %687
    %691 = vset.pattern.permute.xlu0 0
    %692 = vperm.xlu0 %691, %v532
    %v693 = vpop.permute.xlu0 %692
    %696 = vset.pattern.permute.xlu0 0
    %697 = vperm.xlu0 %696, %v546
    %v698 = vpop.permute.xlu0 %697
    %701 = vset.pattern.permute.xlu0 0
    %702 = vperm.xlu0 %701, %v560
    %v703 = vpop.permute.xlu0 %702
    %706 = vset.pattern.permute.xlu0 0
    %707 = vperm.xlu0 %706, %v574
    %v708 = vpop.permute.xlu0 %707
    %711 = vset.pattern.permute.xlu0 0
    %712 = vperm.xlu0 %711, %v588
    %v713 = vpop.permute.xlu0 %712
    %716 = vset.pattern.permute.xlu0 0
    %717 = vperm.xlu0 %716, %v602
    %v718 = vpop.permute.xlu0 %717
    %721 = vset.pattern.permute.xlu0 0
    %722 = vperm.xlu0 %721, %v616
    %v723 = vpop.permute.xlu0 %722
    %726 = vset.pattern.permute.xlu0 0
    %727 = vperm.xlu0 %726, %v630
    %v728 = vpop.permute.xlu0 %727
    %731 = vset.pattern.permute.xlu0 0
    %732 = vperm.xlu0 %731, %v644
    %v733 = vpop.permute.xlu0 %732
    %736 = vset.pattern.permute.xlu0 0
    %737 = vperm.xlu0 %736, %v658
    %v738 = vpop.permute.xlu0 %737
    %741 = vset.pattern.permute.xlu0 0
    %742 = vperm.xlu0 %741, %v672
    %v743 = vpop.permute.xlu0 %742
    %v745 = vmul.f32 %v393, %v688
    %v746 = vmul.f32 %v396, %v693
    %v747 = vmul.f32 %v399, %v698
    %v748 = vmul.f32 %v402, %v703
    %v749 = vmul.f32 %v405, %v708
    %v750 = vmul.f32 %v408, %v713
    %v751 = vmul.f32 %v411, %v718
    %v752 = vmul.f32 %v414, %v723
    %v753 = vmul.f32 %v417, %v728
    %v754 = vmul.f32 %v420, %v733
    %v755 = vmul.f32 %v423, %v738
    %v756 = vmul.f32 %v426, %v743
    %v757 = vsel %vm673, 1, 0
    %v758 = vsel %vm674, 1, 0
    %v759 = vsel %vm675, 1, 0
    %v760 = vsel %vm676, 1, 0
    %v761 = vsel %vm677, 1, 0
    %v762 = vsel %vm678, 1, 0
    %v763 = vsel %vm679, 1, 0
    %v764 = vsel %vm680, 1, 0
    %v765 = vsel %vm681, 1, 0
    %v766 = vsel %vm682, 1, 0
    %v767 = vsel %vm683, 1, 0
    %v768 = vsel %vm684, 1, 0
    %769 = vset.pattern.permute.xlu0 0
    %770 = vperm.xlu0 %769, %v757
    %v771 = vpop.permute.xlu0 %770
    %772 = vset.pattern.permute.xlu0 0
    %773 = vperm.xlu0 %772, %v758
    %v774 = vpop.permute.xlu0 %773
    %775 = vset.pattern.permute.xlu0 0
    %776 = vperm.xlu0 %775, %v759
    %v777 = vpop.permute.xlu0 %776
    %778 = vset.pattern.permute.xlu0 0
    %779 = vperm.xlu0 %778, %v760
    %v780 = vpop.permute.xlu0 %779
    %781 = vset.pattern.permute.xlu0 0
    %782 = vperm.xlu0 %781, %v761
    %v783 = vpop.permute.xlu0 %782
    %784 = vset.pattern.permute.xlu0 0
    %785 = vperm.xlu0 %784, %v762
    %v786 = vpop.permute.xlu0 %785
    %787 = vset.pattern.permute.xlu0 0
    %788 = vperm.xlu0 %787, %v763
    %v789 = vpop.permute.xlu0 %788
    %790 = vset.pattern.permute.xlu0 0
    %791 = vperm.xlu0 %790, %v764
    %v792 = vpop.permute.xlu0 %791
    %793 = vset.pattern.permute.xlu0 0
    %794 = vperm.xlu0 %793, %v765
    %v795 = vpop.permute.xlu0 %794
    %796 = vset.pattern.permute.xlu0 0
    %797 = vperm.xlu0 %796, %v766
    %v798 = vpop.permute.xlu0 %797
    %799 = vset.pattern.permute.xlu0 0
    %800 = vperm.xlu0 %799, %v767
    %v801 = vpop.permute.xlu0 %800
    %802 = vset.pattern.permute.xlu0 0
    %803 = vperm.xlu0 %802, %v768
    %v804 = vpop.permute.xlu0 %803
    %vm805 = vcmp.eq.s32.totalorder %v771, 1
    %vm806 = vcmp.eq.s32.totalorder %v774, 1
    %vm807 = vcmp.eq.s32.totalorder %v777, 1
    %vm808 = vcmp.eq.s32.totalorder %v780, 1
    %vm809 = vcmp.eq.s32.totalorder %v783, 1
    %vm810 = vcmp.eq.s32.totalorder %v786, 1
    %vm811 = vcmp.eq.s32.totalorder %v789, 1
    %vm812 = vcmp.eq.s32.totalorder %v792, 1
    %vm813 = vcmp.eq.s32.totalorder %v795, 1
    %vm814 = vcmp.eq.s32.totalorder %v798, 1
    %vm815 = vcmp.eq.s32.totalorder %v801, 1
    %vm816 = vcmp.eq.s32.totalorder %v804, 1
    %v817 = vsel %vm805, %v745, 0.0
    %v818 = vsel %vm806, %v746, 0.0
    %v819 = vsel %vm807, %v747, 0.0
    %v820 = vsel %vm808, %v748, 0.0
    %v821 = vsel %vm809, %v749, 0.0
    %v822 = vsel %vm810, %v750, 0.0
    %v823 = vsel %vm811, %v751, 0.0
    %v824 = vsel %vm812, %v752, 0.0
    %v825 = vsel %vm813, %v753, 0.0
    %v826 = vsel %vm814, %v754, 0.0
    %v827 = vsel %vm815, %v755, 0.0
    %v828 = vsel %vm816, %v756, 0.0
    %v829 = vperm.slane %v326, 0
    %v831 = vsel %vm127, %v817, 0
    %v834 = vsel %vm127, %v818, 0
    %v837 = vsel %vm127, %v819, 0
    %v840 = vsel %vm127, %v820, 0
    %v843 = vsel %vm127, %v821, 0
    %v846 = vsel %vm127, %v822, 0
    %v849 = vsel %vm127, %v823, 0
    %v852 = vsel %vm127, %v824, 0
    %v855 = vsel %vm127, %v825, 0
    %v858 = vsel %vm127, %v826, 0
    %v861 = vsel %vm127, %v827, 0
    %v864 = vsel %vm127, %v828, 0
    %866 = vmatpush.msra.mxu0 0.0
    %867 = vmatpush.msra.mxu0 0.0
    %868 = vmatpush.msra.mxu0 0.0
    %869 = vmatpush.msra.mxu0 0.0
    %870 = vmatpush.msra.mxu0 0.0
    %871 = vmatpush.msra.mxu0 0.0
    %872 = vmatpush.msra.mxu0 0.0
    %873 = vmatpush.msra.mxu0 0.0
    %874 = vmatpush.msra.mxu0 0.0
    %875 = vmatpush.msra.mxu0 0.0
    %876 = vmatpush.msra.mxu0 0.0
    %877 = vmatpush.msra.mxu0 0.0
    %878 = vmatpush.msra.mxu0 %v325
    %879 = vmatpush.msra.mxu0 %v324
    %880 = vmatpush.msra.mxu0 %v323
    %881 = vmatpush.msra.mxu0 %v322
    %882 = vmatmul.f32.gmra.mxu0 %v831
    %v883 = vpop.f32.mrf.mxu0
    %v884 = vadd.f32 %v829, %v883
    %885 = vmatmul.f32.gmra.mxu0 %v834
    %v886 = vpop.f32.mrf.mxu0
    %v887 = vadd.f32 %v829, %v886
    %888 = vmatmul.f32.gmra.mxu0 %v837
    %v889 = vpop.f32.mrf.mxu0
    %v890 = vadd.f32 %v829, %v889
    %891 = vmatmul.f32.gmra.mxu0 %v840
    %v892 = vpop.f32.mrf.mxu0
    %v893 = vadd.f32 %v829, %v892
    %894 = vmatmul.f32.gmra.mxu0 %v843
    %v895 = vpop.f32.mrf.mxu0
    %v896 = vadd.f32 %v829, %v895
    %897 = vmatmul.f32.gmra.mxu0 %v846
    %v898 = vpop.f32.mrf.mxu0
    %v899 = vadd.f32 %v829, %v898
    %900 = vmatmul.f32.gmra.mxu0 %v849
    %v901 = vpop.f32.mrf.mxu0
    %v902 = vadd.f32 %v829, %v901
    %903 = vmatmul.f32.gmra.mxu0 %v852
    %v904 = vpop.f32.mrf.mxu0
    %v905 = vadd.f32 %v829, %v904
    %906 = vmatmul.f32.gmra.mxu0 %v855
    %v907 = vpop.f32.mrf.mxu0
    %v908 = vadd.f32 %v829, %v907
    %909 = vmatmul.f32.gmra.mxu0 %v858
    %v910 = vpop.f32.mrf.mxu0
    %v911 = vadd.f32 %v829, %v910
    %912 = vmatmul.f32.gmra.mxu0 %v861
    %v913 = vpop.f32.mrf.mxu0
    %v914 = vadd.f32 %v829, %v913
    %915 = vmatmul.f32.gmra.mxu0 %v864
    %v916 = vpop.f32.mrf.mxu0
    %v917 = vadd.f32 %v829, %v916
    %918 = vdwg.mxu0
    %v919 = vsel %vm673, %v884, -3.4028235e+38
    %v920 = vsel %vm674, %v887, -3.4028235e+38
    %v921 = vsel %vm675, %v890, -3.4028235e+38
    %v922 = vsel %vm676, %v893, -3.4028235e+38
    %v923 = vsel %vm677, %v896, -3.4028235e+38
    %v924 = vsel %vm678, %v899, -3.4028235e+38
    %v925 = vsel %vm679, %v902, -3.4028235e+38
    %v926 = vsel %vm680, %v905, -3.4028235e+38
    %v927 = vsel %vm681, %v908, -3.4028235e+38
    %v928 = vsel %vm682, %v911, -3.4028235e+38
    %v929 = vsel %vm683, %v914, -3.4028235e+38
    %v930 = vsel %vm684, %v917, -3.4028235e+38
    %v932 = vsel %vm127, %v318, 0
    %v935 = vsel %vm127, %v319, 0
    %v938 = vsel %vm127, %v320, 0
    %v941 = vsel %vm127, %v321, 0
    %943 = vmatpush.msra.mxu0 0.0
    %944 = vmatpush.msra.mxu0 0.0
    %945 = vmatpush.msra.mxu0 0.0
    %946 = vmatpush.msra.mxu0 0.0
    %947 = vmatpush.msra.mxu0 0.0
    %948 = vmatpush.msra.mxu0 0.0
    %949 = vmatpush.msra.mxu0 0.0
    %950 = vmatpush.msra.mxu0 0.0
    %951 = vmatpush.msra.mxu0 0.0
    %952 = vmatpush.msra.mxu0 0.0
    %953 = vmatpush.msra.mxu0 0.0
    %954 = vmatpush.msra.mxu0 0.0
    %955 = vmatpush.msra.mxu0 %v325
    %956 = vmatpush.msra.mxu0 %v324
    %957 = vmatpush.msra.mxu0 %v323
    %958 = vmatpush.msra.mxu0 %v322
    %959 = vmatmul.f32.gmra.mxu0 %v932
    %v960 = vpop.f32.mrf.mxu0
    %v961 = vadd.f32 %v829, %v960
    %962 = vmatmul.f32.gmra.mxu0 %v935
    %v963 = vpop.f32.mrf.mxu0
    %v964 = vadd.f32 %v829, %v963
    %965 = vmatmul.f32.gmra.mxu0 %v938
    %v966 = vpop.f32.mrf.mxu0
    %v967 = vadd.f32 %v829, %v966
    %968 = vmatmul.f32.gmra.mxu0 %v941
    %v969 = vpop.f32.mrf.mxu0
    %v970 = vadd.f32 %v829, %v969
    %971 = vdwg.mxu0
    %vm972 = vcmp.gt.f32.partialorder %v15, 0.0
    %vm973 = vcmp.gt.f32.partialorder %v16, 0.0
    %vm974 = vcmp.gt.f32.partialorder %v17, 0.0
    %vm975 = vcmp.gt.f32.partialorder %v18, 0.0
    %980 = vrot.lane.b32.xlu0 %v961, 1
    %v981 = vpop.permute.xlu0 %980
    %982 = vrot.lane.b32.xlu0 %v964, 1
    %v983 = vpop.permute.xlu0 %982
    %984 = vrot.lane.b32.xlu0 %v967, 1
    %v985 = vpop.permute.xlu0 %984
    %986 = vrot.lane.b32.xlu0 %v970, 1
    %v987 = vpop.permute.xlu0 %986
    %v992 = vsel %vm972, %v981, -3.4028235e+38
    %v993 = vsel %vm973, %v983, -3.4028235e+38
    %v994 = vsel %vm974, %v985, -3.4028235e+38
    %v995 = vsel %vm975, %v987, -3.4028235e+38
    %1000 = vrot.lane.b32.xlu0 %v992, 127
    %v1001 = vpop.permute.xlu0 %1000
    %1002 = vrot.lane.b32.xlu0 %v993, 127
    %v1003 = vpop.permute.xlu0 %1002
    %1004 = vrot.lane.b32.xlu0 %v994, 127
    %v1005 = vpop.permute.xlu0 %1004
    %1006 = vrot.lane.b32.xlu0 %v995, 127
    %v1007 = vpop.permute.xlu0 %1006
    %1016 = vrot.lane.b32.xlu0 %v919, 1
    %v1017 = vpop.permute.xlu0 %1016
    %1018 = vrot.lane.b32.xlu0 %v920, 1
    %v1019 = vpop.permute.xlu0 %1018
    %1020 = vrot.lane.b32.xlu0 %v921, 1
    %v1021 = vpop.permute.xlu0 %1020
    %1022 = vrot.lane.b32.xlu0 %v922, 1
    %v1023 = vpop.permute.xlu0 %1022
    %1032 = vrot.lane.b32.xlu0 %v923, 2
    %v1033 = vpop.permute.xlu0 %1032
    %1034 = vrot.lane.b32.xlu0 %v924, 2
    %v1035 = vpop.permute.xlu0 %1034
    %1036 = vrot.lane.b32.xlu0 %v925, 2
    %v1037 = vpop.permute.xlu0 %1036
    %1038 = vrot.lane.b32.xlu0 %v926, 2
    %v1039 = vpop.permute.xlu0 %1038
    %1048 = vrot.lane.b32.xlu0 %v927, 3
    %v1049 = vpop.permute.xlu0 %1048
    %1050 = vrot.lane.b32.xlu0 %v928, 3
    %v1051 = vpop.permute.xlu0 %1050
    %1052 = vrot.lane.b32.xlu0 %v929, 3
    %v1053 = vpop.permute.xlu0 %1052
    %1054 = vrot.lane.b32.xlu0 %v930, 3
    %v1055 = vpop.permute.xlu0 %1054
    %vm1060 = vcmask 7168
    %v1061 = vsel %vm1060, %v1001, %v1017
    %v1062 = vsel %vm1060, %v1003, %v1019
    %v1063 = vsel %vm1060, %v1005, %v1021
    %v1064 = vsel %vm1060, %v1007, %v1023
    %vm1065 = vcmask 15360
    %v1066 = vsel %vm1065, %v1061, %v1033
    %v1067 = vsel %vm1065, %v1062, %v1035
    %v1068 = vsel %vm1065, %v1063, %v1037
    %v1069 = vsel %vm1065, %v1064, %v1039
    %vm1070 = vcmask 23552
    %v1071 = vsel %vm1070, %v1066, %v1049
    %v1072 = vsel %vm1070, %v1067, %v1051
    %v1073 = vsel %vm1070, %v1068, %v1053
    %v1074 = vsel %vm1070, %v1069, %v1055
    %vm1075 = vcmask 31744
    %v1076 = vsel %vm1075, %v1071, -inf
    %1077 = vmax.xlane.f32.xlu0 %v1076
    %v1078 = vpop.xlane.xlu0 %1077
    %v1079 = vsel %vm1075, %v1072, -inf
    %1080 = vmax.xlane.f32.xlu0 %v1079
    %v1081 = vpop.xlane.xlu0 %1080
    %v1082 = vsel %vm1075, %v1073, -inf
    %1083 = vmax.xlane.f32.xlu0 %v1082
    %v1084 = vpop.xlane.xlu0 %1083
    %v1085 = vsel %vm1075, %v1074, -inf
    %1086 = vmax.xlane.f32.xlu0 %v1085
    %v1087 = vpop.xlane.xlu0 %1086
    %v1088 = vsub.f32 %v1071, %v1078
    %v1089 = vsub.f32 %v1072, %v1081
    %v1090 = vsub.f32 %v1073, %v1084
    %v1091 = vsub.f32 %v1074, %v1087
    %v1092 = vmul.f32 %v1088, 1.442695
    %v1093 = vpow.pop %v1092
    %v1094 = vmul.f32 %v1089, 1.442695
    %v1095 = vpow.pop %v1094
    %v1096 = vmul.f32 %v1090, 1.442695
    %v1097 = vpow.pop %v1096
    %v1098 = vmul.f32 %v1091, 1.442695
    %v1099 = vpow.pop %v1098
    %v1100 = vsel %vm1075, %v1093, 0.0
    %1101 = vadd.xlane.f32.xlu0 %v1100
    %v1102 = vpop.xlane.xlu0 %1101
    %v1103 = vsel %vm1075, %v1095, 0.0
    %1104 = vadd.xlane.f32.xlu0 %v1103
    %v1105 = vpop.xlane.xlu0 %1104
    %v1106 = vsel %vm1075, %v1097, 0.0
    %1107 = vadd.xlane.f32.xlu0 %v1106
    %v1108 = vpop.xlane.xlu0 %1107
    %v1109 = vsel %vm1075, %v1099, 0.0
    %1110 = vadd.xlane.f32.xlu0 %v1109
    %v1111 = vpop.xlane.xlu0 %1110
    %v1112 = vrcp.pop %v1102
    %v1113 = vmul.f32 %v1102, %v1112
    %v1114 = vsub.f32 1.0, %v1113
    %v1115 = vmul.f32 %v1112, %v1114
    %v1116 = vadd.f32 %v1112, %v1115
    %vm1117 = vweird.f32 %v1102
    %vm1118 = vweird.f32 %v1112
    %vm1119 = vmor %vm1117, %vm1118
    %v1120 = vsel %vm1119, %v1112, %v1116
    %v1121 = vand.u32 2147483647, %v1102
    %vm1122 = vcmp.eq.f32.partialorder %v1121, 8.507059e+37
    %v1123 = vand.u32 %v1102, 2147483648
    %v1124 = vor.u32 1.1754944e-38, %v1123
    %v1125 = vsel %vm1122, %v1124, %v1120
    %v1126 = vrcp.pop %v1105
    %v1127 = vmul.f32 %v1105, %v1126
    %v1128 = vsub.f32 1.0, %v1127
    %v1129 = vmul.f32 %v1126, %v1128
    %v1130 = vadd.f32 %v1126, %v1129
    %vm1131 = vweird.f32 %v1105
    %vm1132 = vweird.f32 %v1126
    %vm1133 = vmor %vm1131, %vm1132
    %v1134 = vsel %vm1133, %v1126, %v1130
    %v1135 = vand.u32 2147483647, %v1105
    %vm1136 = vcmp.eq.f32.partialorder %v1135, 8.507059e+37
    %v1137 = vand.u32 %v1105, 2147483648
    %v1138 = vor.u32 1.1754944e-38, %v1137
    %v1139 = vsel %vm1136, %v1138, %v1134
    %v1140 = vrcp.pop %v1108
    %v1141 = vmul.f32 %v1108, %v1140
    %v1142 = vsub.f32 1.0, %v1141
    %v1143 = vmul.f32 %v1140, %v1142
    %v1144 = vadd.f32 %v1140, %v1143
    %vm1145 = vweird.f32 %v1108
    %vm1146 = vweird.f32 %v1140
    %vm1147 = vmor %vm1145, %vm1146
    %v1148 = vsel %vm1147, %v1140, %v1144
    %v1149 = vand.u32 2147483647, %v1108
    %vm1150 = vcmp.eq.f32.partialorder %v1149, 8.507059e+37
    %v1151 = vand.u32 %v1108, 2147483648
    %v1152 = vor.u32 1.1754944e-38, %v1151
    %v1153 = vsel %vm1150, %v1152, %v1148
    %v1154 = vrcp.pop %v1111
    %v1155 = vmul.f32 %v1111, %v1154
    %v1156 = vsub.f32 1.0, %v1155
    %v1157 = vmul.f32 %v1154, %v1156
    %v1158 = vadd.f32 %v1154, %v1157
    %vm1159 = vweird.f32 %v1111
    %vm1160 = vweird.f32 %v1154
    %vm1161 = vmor %vm1159, %vm1160
    %v1162 = vsel %vm1161, %v1154, %v1158
    %v1163 = vand.u32 2147483647, %v1111
    %vm1164 = vcmp.eq.f32.partialorder %v1163, 8.507059e+37
    %v1165 = vand.u32 %v1111, 2147483648
    %v1166 = vor.u32 1.1754944e-38, %v1165
    %v1167 = vsel %vm1164, %v1166, %v1162
    %v1168 = vmul.f32 %v1093, %v1125
    %v1169 = vmul.f32 %v1095, %v1139
    %v1170 = vmul.f32 %v1097, %v1153
    %v1171 = vmul.f32 %v1099, %v1167
    %v1173 = vsel %vm1075, %v1168, 0
    %v1176 = vsel %vm1075, %v1169, 0
    %v1179 = vsel %vm1075, %v1170, 0
    %v1182 = vsel %vm1075, %v1171, 0
    %1184 = vmatpush.xpose.msra.mxu0 0.0
    %1185 = vmatpush.xpose.msra.mxu0 0.0
    %1186 = vmatpush.xpose.msra.mxu0 0.0
    %1187 = vmatpush.xpose.msra.mxu0 0.0
    %1188 = vmatpush.xpose.msra.mxu0 0.0
    %1189 = vmatpush.xpose.msra.mxu0 0.0
    %1190 = vmatpush.xpose.msra.mxu0 0.0
    %1191 = vmatpush.xpose.msra.mxu0 0.0
    %1192 = vmatpush.xpose.msra.mxu0 0.0
    %1193 = vmatpush.xpose.msra.mxu0 0.0
    %1194 = vmatpush.xpose.msra.mxu0 0.0
    %1195 = vmatpush.xpose.msra.mxu0 0.0
    %1196 = vmatpush.xpose.msra.mxu0 %v1182
    %1197 = vmatpush.xpose.msra.mxu0 %v1179
    %1198 = vmatpush.xpose.msra.mxu0 %v1176
    %1199 = vmatpush.xpose.msra.mxu0 %v1173
    %1200 = vmatmul.f32.gmra.mxu0 %v1173
    %v1201 = vpop.f32.mrf.mxu0
    %v1202 = vadd.f32 0.0, %v1201
    %1203 = vmatmul.f32.gmra.mxu0 %v1176
    %v1204 = vpop.f32.mrf.mxu0
    %v1205 = vadd.f32 0.0, %v1204
    %1206 = vmatmul.f32.gmra.mxu0 %v1179
    %v1207 = vpop.f32.mrf.mxu0
    %v1208 = vadd.f32 0.0, %v1207
    %1209 = vmatmul.f32.gmra.mxu0 %v1182
    %v1210 = vpop.f32.mrf.mxu0
    %v1211 = vadd.f32 0.0, %v1210
    %1212 = vdwg.mxu0
    %v1213 = vperm.slane %v19, 0
    %v1214 = vmul.f32 %v304, %v1213
    %v1215 = vmul.f32 %v308, %v1213
    %v1216 = vmul.f32 %v312, %v1213
    %v1217 = vmul.f32 %v316, %v1213
    %vm1218 = vcmp.gt.f32.partialorder %v1214, 0.0
    %vm1219 = vcmp.gt.f32.partialorder %v1215, 0.0
    %vm1220 = vcmp.gt.f32.partialorder %v1216, 0.0
    %vm1221 = vcmp.gt.f32.partialorder %v1217, 0.0
    %v1222 = vsel %vm1218, %v1202, -3.4028235e+38
    %v1223 = vsel %vm1219, %v1205, -3.4028235e+38
    %v1224 = vsel %vm1220, %v1208, -3.4028235e+38
    %v1225 = vsel %vm1221, %v1211, -3.4028235e+38
    %v1226 = vld [vmem:[%s1 + $0x318] sm:$0xff]
    %v1227 = vld [vmem:[%s1 + $0x320] sm:$0xff]
    %v1228 = vld [vmem:[%s1 + $0x328] sm:$0xff]
    %v1229 = vld [vmem:[%s1 + $0x330] sm:$0xff]
    %vm1230 = vcmp.gt.f32.partialorder %v1226, 0.0
    %vm1231 = vcmp.gt.f32.partialorder %v1227, 0.0
    %vm1232 = vcmp.gt.f32.partialorder %v1228, 0.0
    %vm1233 = vcmp.gt.f32.partialorder %v1229, 0.0
    %v1234 = vsel %vm1230, %v1222, -inf
    %v1235 = vsel %vm1231, %v1223, -inf
    %v1236 = vsel %vm1232, %v1224, -inf
    %v1237 = vsel %vm1233, %v1225, -inf
    %v1238 = vsel %vm127, %v1234, -inf
    %1239 = vmax.xlane.f32.xlu0 %v1238
    %v1240 = vpop.xlane.xlu0 %1239
    %v1241 = vsel %vm127, %v1235, -inf
    %1242 = vmax.xlane.f32.xlu0 %v1241
    %v1243 = vpop.xlane.xlu0 %1242
    %v1244 = vsel %vm127, %v1236, -inf
    %1245 = vmax.xlane.f32.xlu0 %v1244
    %v1246 = vpop.xlane.xlu0 %1245
    %v1247 = vsel %vm127, %v1237, -inf
    %1248 = vmax.xlane.f32.xlu0 %v1247
    %v1249 = vpop.xlane.xlu0 %1248
    %v1250 = vsub.f32 %v1234, %v1240
    %v1251 = vsub.f32 %v1235, %v1243
    %v1252 = vsub.f32 %v1236, %v1246
    %v1253 = vsub.f32 %v1237, %v1249
    %v1254 = vmul.f32 %v1250, 1.442695
    %v1255 = vpow.pop %v1254
    %v1256 = vmul.f32 %v1251, 1.442695
    %v1257 = vpow.pop %v1256
    %v1258 = vmul.f32 %v1252, 1.442695
    %v1259 = vpow.pop %v1258
    %v1260 = vmul.f32 %v1253, 1.442695
    %v1261 = vpow.pop %v1260
    %v1262 = vsel %vm127, %v1255, 0.0
    %1263 = vadd.xlane.f32.xlu0 %v1262
    %v1264 = vpop.xlane.xlu0 %1263
    %v1265 = vsel %vm127, %v1257, 0.0
    %1266 = vadd.xlane.f32.xlu0 %v1265
    %v1267 = vpop.xlane.xlu0 %1266
    %v1268 = vsel %vm127, %v1259, 0.0
    %1269 = vadd.xlane.f32.xlu0 %v1268
    %v1270 = vpop.xlane.xlu0 %1269
    %v1271 = vsel %vm127, %v1261, 0.0
    %1272 = vadd.xlane.f32.xlu0 %v1271
    %v1273 = vpop.xlane.xlu0 %1272
    %v1274 = vrcp.pop %v1264
    %v1275 = vmul.f32 %v1264, %v1274
    %v1276 = vsub.f32 1.0, %v1275
    %v1277 = vmul.f32 %v1274, %v1276
    %v1278 = vadd.f32 %v1274, %v1277
    %vm1279 = vweird.f32 %v1264
    %vm1280 = vweird.f32 %v1274
    %vm1281 = vmor %vm1279, %vm1280
    %v1282 = vsel %vm1281, %v1274, %v1278
    %v1283 = vand.u32 2147483647, %v1264
    %vm1284 = vcmp.eq.f32.partialorder %v1283, 8.507059e+37
    %v1285 = vand.u32 %v1264, 2147483648
    %v1286 = vor.u32 1.1754944e-38, %v1285
    %v1287 = vsel %vm1284, %v1286, %v1282
    %v1288 = vrcp.pop %v1267
    %v1289 = vmul.f32 %v1267, %v1288
    %v1290 = vsub.f32 1.0, %v1289
    %v1291 = vmul.f32 %v1288, %v1290
    %v1292 = vadd.f32 %v1288, %v1291
    %vm1293 = vweird.f32 %v1267
    %vm1294 = vweird.f32 %v1288
    %vm1295 = vmor %vm1293, %vm1294
    %v1296 = vsel %vm1295, %v1288, %v1292
    %v1297 = vand.u32 2147483647, %v1267
    %vm1298 = vcmp.eq.f32.partialorder %v1297, 8.507059e+37
    %v1299 = vand.u32 %v1267, 2147483648
    %v1300 = vor.u32 1.1754944e-38, %v1299
    %v1301 = vsel %vm1298, %v1300, %v1296
    %v1302 = vrcp.pop %v1270
    %v1303 = vmul.f32 %v1270, %v1302
    %v1304 = vsub.f32 1.0, %v1303
    %v1305 = vmul.f32 %v1302, %v1304
    %v1306 = vadd.f32 %v1302, %v1305
    %vm1307 = vweird.f32 %v1270
    %vm1308 = vweird.f32 %v1302
    %vm1309 = vmor %vm1307, %vm1308
    %v1310 = vsel %vm1309, %v1302, %v1306
    %v1311 = vand.u32 2147483647, %v1270
    %vm1312 = vcmp.eq.f32.partialorder %v1311, 8.507059e+37
    %v1313 = vand.u32 %v1270, 2147483648
    %v1314 = vor.u32 1.1754944e-38, %v1313
    %v1315 = vsel %vm1312, %v1314, %v1310
    %v1316 = vrcp.pop %v1273
    %v1317 = vmul.f32 %v1273, %v1316
    %v1318 = vsub.f32 1.0, %v1317
    %v1319 = vmul.f32 %v1316, %v1318
    %v1320 = vadd.f32 %v1316, %v1319
    %vm1321 = vweird.f32 %v1273
    %vm1322 = vweird.f32 %v1316
    %vm1323 = vmor %vm1321, %vm1322
    %v1324 = vsel %vm1323, %v1316, %v1320
    %v1325 = vand.u32 2147483647, %v1273
    %vm1326 = vcmp.eq.f32.partialorder %v1325, 8.507059e+37
    %v1327 = vand.u32 %v1273, 2147483648
    %v1328 = vor.u32 1.1754944e-38, %v1327
    %v1329 = vsel %vm1326, %v1328, %v1324
    %v1330 = vmul.f32 %v1255, %v1287
    %v1331 = vmul.f32 %v1257, %v1301
    %v1332 = vmul.f32 %v1259, %v1315
    %v1333 = vmul.f32 %v1261, %v1329
    %v1335 = vsel %vm127, %v1330, 0
    %v1338 = vsel %vm127, %v1331, 0
    %v1341 = vsel %vm127, %v1332, 0
    %v1344 = vsel %vm127, %v1333, 0
    %1346 = vmatpush.msra.mxu0 0.0
    %1347 = vmatpush.msra.mxu0 0.0
    %1348 = vmatpush.msra.mxu0 0.0
    %1349 = vmatpush.msra.mxu0 0.0
    %1350 = vmatpush.msra.mxu0 0.0
    %1351 = vmatpush.msra.mxu0 0.0
    %1352 = vmatpush.msra.mxu0 0.0
    %1353 = vmatpush.msra.mxu0 0.0
    %1354 = vmatpush.msra.mxu0 0.0
    %1355 = vmatpush.msra.mxu0 0.0
    %1356 = vmatpush.msra.mxu0 0.0
    %1357 = vmatpush.msra.mxu0 0.0
    %1358 = vmatpush.msra.mxu0 %v1171
    %1359 = vmatpush.msra.mxu0 %v1170
    %1360 = vmatpush.msra.mxu0 %v1169
    %1361 = vmatpush.msra.mxu0 %v1168
    %1362 = vmatmul.f32.gmra.mxu0 %v1335
    %v1363 = vpop.f32.mrf.mxu0
    %v1364 = vadd.f32 0.0, %v1363
    %1365 = vmatmul.f32.gmra.mxu0 %v1338
    %v1366 = vpop.f32.mrf.mxu0
    %v1367 = vadd.f32 0.0, %v1366
    %1368 = vmatmul.f32.gmra.mxu0 %v1341
    %v1369 = vpop.f32.mrf.mxu0
    %v1370 = vadd.f32 0.0, %v1369
    %1371 = vmatmul.f32.gmra.mxu0 %v1344
    %v1372 = vpop.f32.mrf.mxu0
    %v1373 = vadd.f32 0.0, %v1372
    %1374 = vdwg.mxu0
    %1376 = vset.pattern.permute.xlu0 0
    %1377 = vperm.xlu0 %1376, %v1364
    %v1378 = vpop.permute.xlu0 %1377
    %1381 = vset.pattern.permute.xlu0 0
    %1382 = vperm.xlu0 %1381, %v1367
    %v1383 = vpop.permute.xlu0 %1382
    %1386 = vset.pattern.permute.xlu0 0
    %1387 = vperm.xlu0 %1386, %v1370
    %v1388 = vpop.permute.xlu0 %1387
    %1391 = vset.pattern.permute.xlu0 0
    %1392 = vperm.xlu0 %1391, %v1373
    %v1393 = vpop.permute.xlu0 %1392
    %v1395 = vmul.f32 %v318, %v1378
    %v1396 = vmul.f32 %v319, %v1383
    %v1397 = vmul.f32 %v320, %v1388
    %v1398 = vmul.f32 %v321, %v1393
    %1399 = vset.pattern.permute.xlu0 1
    %1400 = vperm.xlu0 %1399, %v1364
    %v1401 = vpop.permute.xlu0 %1400
    %1403 = vset.pattern.permute.xlu0 1
    %1404 = vperm.xlu0 %1403, %v1367
    %v1405 = vpop.permute.xlu0 %1404
    %1407 = vset.pattern.permute.xlu0 1
    %1408 = vperm.xlu0 %1407, %v1370
    %v1409 = vpop.permute.xlu0 %1408
    %1411 = vset.pattern.permute.xlu0 1
    %1412 = vperm.xlu0 %1411, %v1373
    %v1413 = vpop.permute.xlu0 %1412
    %v1415 = vmul.f32 %v817, %v1401
    %v1416 = vmul.f32 %v818, %v1405
    %v1417 = vmul.f32 %v819, %v1409
    %v1418 = vmul.f32 %v820, %v1413
    %v1419 = vadd.f32 %v1395, %v1415
    %v1420 = vadd.f32 %v1396, %v1416
    %v1421 = vadd.f32 %v1397, %v1417
    %v1422 = vadd.f32 %v1398, %v1418
    %1423 = vset.pattern.permute.xlu0 2
    %1424 = vperm.xlu0 %1423, %v1364
    %v1425 = vpop.permute.xlu0 %1424
    %1427 = vset.pattern.permute.xlu0 2
    %1428 = vperm.xlu0 %1427, %v1367
    %v1429 = vpop.permute.xlu0 %1428
    %1431 = vset.pattern.permute.xlu0 2
    %1432 = vperm.xlu0 %1431, %v1370
    %v1433 = vpop.permute.xlu0 %1432
    %1435 = vset.pattern.permute.xlu0 2
    %1436 = vperm.xlu0 %1435, %v1373
    %v1437 = vpop.permute.xlu0 %1436
    %v1439 = vmul.f32 %v821, %v1425
    %v1440 = vmul.f32 %v822, %v1429
    %v1441 = vmul.f32 %v823, %v1433
    %v1442 = vmul.f32 %v824, %v1437
    %v1443 = vadd.f32 %v1419, %v1439
    %v1444 = vadd.f32 %v1420, %v1440
    %v1445 = vadd.f32 %v1421, %v1441
    %v1446 = vadd.f32 %v1422, %v1442
    %1447 = vset.pattern.permute.xlu0 3
    %1448 = vperm.xlu0 %1447, %v1364
    %v1449 = vpop.permute.xlu0 %1448
    %1451 = vset.pattern.permute.xlu0 3
    %1452 = vperm.xlu0 %1451, %v1367
    %v1453 = vpop.permute.xlu0 %1452
    %1455 = vset.pattern.permute.xlu0 3
    %1456 = vperm.xlu0 %1455, %v1370
    %v1457 = vpop.permute.xlu0 %1456
    %1459 = vset.pattern.permute.xlu0 3
    %1460 = vperm.xlu0 %1459, %v1373
    %v1461 = vpop.permute.xlu0 %1460
    %v1463 = vmul.f32 %v825, %v1449
    %v1464 = vmul.f32 %v826, %v1453
    %v1465 = vmul.f32 %v827, %v1457
    %v1466 = vmul.f32 %v828, %v1461
    %v1467 = vadd.f32 %v1443, %v1463
    %v1468 = vadd.f32 %v1444, %v1464
    %v1469 = vadd.f32 %v1445, %v1465
    %v1470 = vadd.f32 %v1446, %v1466
    %v1471 = vld [vmem:[%s1 + $0x338] sm:$0xff]
    %v1473 = vsel %vm127, %v1471, 0
    %1475 = vmatpush.msra.mxu0 0.0
    %1476 = vmatpush.msra.mxu0 0.0
    %1477 = vmatpush.msra.mxu0 0.0
    %1478 = vmatpush.msra.mxu0 0.0
    %1479 = vmatpush.msra.mxu0 0.0
    %1480 = vmatpush.msra.mxu0 0.0
    %1481 = vmatpush.msra.mxu0 0.0
    %1482 = vmatpush.msra.mxu0 0.0
    %1483 = vmatpush.msra.mxu0 0.0
    %1484 = vmatpush.msra.mxu0 0.0
    %1485 = vmatpush.msra.mxu0 0.0
    %1486 = vmatpush.msra.mxu0 0.0
    %1487 = vmatpush.msra.mxu0 %v1470
    %1488 = vmatpush.msra.mxu0 %v1469
    %1489 = vmatpush.msra.mxu0 %v1468
    %1490 = vmatpush.msra.mxu0 %v1467
    %1491 = vmatmul.f32.gmra.mxu0 %v1473
    %v1492 = vpop.f32.mrf.mxu0
    %v1493 = vadd.f32 0.0, %v1492
    %1494 = vdwg.mxu0
    %v1495 = vmul.f32 %v1493, 0.25
    %v1497 = vsel %vm127, %v19, 0
    %1499 = vmatpush.xpose.msra.mxu0 0.0
    %1500 = vmatpush.xpose.msra.mxu0 0.0
    %1501 = vmatpush.xpose.msra.mxu0 0.0
    %1502 = vmatpush.xpose.msra.mxu0 0.0
    %1503 = vmatpush.xpose.msra.mxu0 0.0
    %1504 = vmatpush.xpose.msra.mxu0 0.0
    %1505 = vmatpush.xpose.msra.mxu0 0.0
    %1506 = vmatpush.xpose.msra.mxu0 0.0
    %1507 = vmatpush.xpose.msra.mxu0 0.0
    %1508 = vmatpush.xpose.msra.mxu0 0.0
    %1509 = vmatpush.xpose.msra.mxu0 0.0
    %1510 = vmatpush.xpose.msra.mxu0 0.0
    %1511 = vmatpush.xpose.msra.mxu0 0.0
    %1512 = vmatpush.xpose.msra.mxu0 0.0
    %1513 = vmatpush.xpose.msra.mxu0 0.0
    %1514 = vmatpush.xpose.msra.mxu0 %v1473
    %1515 = vmatmul.f32.gmra.mxu0 %v1497
    %v1516 = vpop.f32.mrf.mxu0
    %v1517 = vadd.f32 0.0, %v1516
    %1518 = vdwg.mxu0
    %vm1519 = vcmp.gt.f32.partialorder %v1517, 0.0
    %v1520 = vsel %vm1519, 0.0, -3.4028235e+38
    %1522 = vrot.lane.b32.xlu0 %v1520, 8
    %v1523 = vpop.permute.xlu0 %1522
    %vm1525 = vcmask 64512
    %v1526 = vsel %vm1525, %v1520, %v1523
    %v1527 = vld [vmem:[%s1 + $0xc8] sm:$0xff]
    %v1528 = vadd.f32 %v1495, %v1527
    %v1529 = vld [vmem:[%s1 + $0xd0] sm:$0x1]
    %v1530 = vperm.slane %v1529, 0
    %v1531 = vadd.f32 %v1528, %v1530
    %v1532 = vld [vmem:[%s1 + $0xd8] sm:$0x1]
    %v1533 = vld [vmem:[%s1 + $0xe0] sm:$0x1]
    %v1534 = vsel %vm127, %v1531, 0.0
    %1535 = vadd.xlane.f32.xlu0 %v1534
    %v1536 = vpop.xlane.xlu0 %1535
    %v1537 = vrcp.pop 32.0
    %v1538 = vmul.f32 32.0, %v1537
    %v1539 = vsub.f32 1.0, %v1538
    %v1540 = vmul.f32 %v1537, %v1539
    %v1541 = vadd.f32 %v1537, %v1540
    %vm1542 = vweird.f32 %v1537
    %v1543 = vsel %vm1542, %v1537, %v1541
    %v1544 = vmul.f32 %v1536, %v1543
    %v1545 = vsub.f32 %v1531, %v1544
    %v1546 = vmul.f32 %v1545, %v1545
    %v1547 = vsel %vm127, %v1546, 0.0
    %1548 = vadd.xlane.f32.xlu0 %v1547
    %v1549 = vpop.xlane.xlu0 %1548
    %v1550 = vmul.f32 %v1549, %v1543
    %v1551 = vadd.f32 %v1550, 1e-12
    %v1552 = vrsqrt.pop %v1551
    %v1553 = vmul.f32 %v1552, %v1551
    %v1554 = vmul.f32 %v1553, %v1552
    %v1555 = vmul.f32 0.5, %v1554
    %v1556 = vsub.f32 1.5, %v1555
    %v1557 = vmul.f32 %v1552, %v1556
    %vm1558 = vweird.f32 %v1551
    %vm1559 = vweird.f32 %v1552
    %vm1560 = vmor %vm1558, %vm1559
    %v1561 = vsel %vm1560, %v1552, %v1557
    %v1562 = vmul.f32 %v1545, %v1561
    %v1563 = vperm.slane %v1532, 0
    %v1564 = vmul.f32 %v1562, %v1563
    %v1565 = vperm.slane %v1533, 0
    %v1566 = vadd.f32 %v1564, %v1565
    %v1567 = vld [vmem:[%s1 + $0x340] sm:$0xff]
    %v1568 = vld [vmem:[%s1 + $0x348] sm:$0xff]
    %v1569 = vld [vmem:[%s2] sm:$0xff]
    %v1570 = vld [vmem:[%s2 + $0x8] sm:$0xff]
    %v1571 = vld [vmem:[%s2 + $0x10] sm:$0xff]
    %v1572 = vld [vmem:[%s2 + $0x18] sm:$0xff]
    %v1573 = vld [vmem:[%s2 + $0x20] sm:$0x1]
    %v1574 = vperm.slane %v1573, 0
    %v1576 = vsel %vm127, %v1566, 0
    %1578 = vmatpush.msra.mxu0 0.0
    %1579 = vmatpush.msra.mxu0 0.0
    %1580 = vmatpush.msra.mxu0 0.0
    %1581 = vmatpush.msra.mxu0 0.0
    %1582 = vmatpush.msra.mxu0 0.0
    %1583 = vmatpush.msra.mxu0 0.0
    %1584 = vmatpush.msra.mxu0 0.0
    %1585 = vmatpush.msra.mxu0 0.0
    %1586 = vmatpush.msra.mxu0 0.0
    %1587 = vmatpush.msra.mxu0 0.0
    %1588 = vmatpush.msra.mxu0 0.0
    %1589 = vmatpush.msra.mxu0 0.0
    %1590 = vmatpush.msra.mxu0 %v1572
    %1591 = vmatpush.msra.mxu0 %v1571
    %1592 = vmatpush.msra.mxu0 %v1570
    %1593 = vmatpush.msra.mxu0 %v1569
    %1594 = vmatmul.f32.gmra.mxu0 %v1576
    %v1595 = vpop.f32.mrf.mxu0
    %v1596 = vadd.f32 %v1574, %v1595
    %1597 = vdwg.mxu0
    %1599 = vrot.lane.b32.xlu0 %v1596, 112
    %v1600 = vpop.permute.xlu0 %1599
    %1601 = vrot.lane.b32.xlu0 %v1596, 96
    %v1602 = vpop.permute.xlu0 %1601
    %1603 = vrot.lane.b32.xlu0 %v1600, 96
    %v1604 = vpop.permute.xlu0 %1603
    %vm1605 = vcmask 130048
    %v1606 = vsel %vm1605, %v1596, 0
    %v1608 = vsel %vm1605, %v1600, 0
    %v1610 = vsel %vm1605, %v1602, 0
    %v1612 = vsel %vm1605, %v1604, 0
    %1614 = vmatpush.xpose.msra.mxu0 0.0
    %1615 = vmatpush.xpose.msra.mxu0 0.0
    %1616 = vmatpush.xpose.msra.mxu0 0.0
    %1617 = vmatpush.xpose.msra.mxu0 0.0
    %1618 = vmatpush.xpose.msra.mxu0 0.0
    %1619 = vmatpush.xpose.msra.mxu0 0.0
    %1620 = vmatpush.xpose.msra.mxu0 0.0
    %1621 = vmatpush.xpose.msra.mxu0 0.0
    %1622 = vmatpush.xpose.msra.mxu0 0.0
    %1623 = vmatpush.xpose.msra.mxu0 0.0
    %1624 = vmatpush.xpose.msra.mxu0 0.0
    %1625 = vmatpush.xpose.msra.mxu0 0.0
    %1626 = vmatpush.xpose.msra.mxu0 0.0
    %1627 = vmatpush.xpose.msra.mxu0 0.0
    %1628 = vmatpush.xpose.msra.mxu0 %v1612
    %1629 = vmatpush.xpose.msra.mxu0 %v1610
    %1630 = vmatmul.f32.gmra.mxu0 %v1606
    %v1631 = vpop.f32.mrf.mxu0
    %v1632 = vadd.f32 0.0, %v1631
    %1633 = vmatmul.f32.gmra.mxu0 %v1608
    %v1634 = vpop.f32.mrf.mxu0
    %v1635 = vadd.f32 0.0, %v1634
    %1636 = vdwg.mxu0
    %v1637 = vmul.f32 %v1632, 0.25
    %v1638 = vmul.f32 %v1635, 0.25
    %v1639 = vperm.slane %v1526, 0
    %v1640 = vadd.f32 %v1637, %v1639
    %v1641 = vadd.f32 %v1638, %v1639
    %vm1642 = vcmp.gt.f32.partialorder %v1567, 0.0
    %vm1643 = vcmp.gt.f32.partialorder %v1568, 0.0
    %v1644 = vsel %vm1642, %v1640, -inf
    %v1645 = vsel %vm1643, %v1641, -inf
    %v1646 = vsel %vm1605, %v1644, -inf
    %1647 = vmax.xlane.f32.xlu0 %v1646
    %v1648 = vpop.xlane.xlu0 %1647
    %v1649 = vsel %vm1605, %v1645, -inf
    %1650 = vmax.xlane.f32.xlu0 %v1649
    %v1651 = vpop.xlane.xlu0 %1650
    %v1652 = vsub.f32 %v1644, %v1648
    %v1653 = vsub.f32 %v1645, %v1651
    %v1654 = vmul.f32 %v1652, 1.442695
    %v1655 = vpow.pop %v1654
    %v1656 = vmul.f32 %v1653, 1.442695
    %v1657 = vpow.pop %v1656
    %v1658 = vsel %vm1605, %v1655, 0.0
    %1659 = vadd.xlane.f32.xlu0 %v1658
    %v1660 = vpop.xlane.xlu0 %1659
    %v1661 = vsel %vm1605, %v1657, 0.0
    %1662 = vadd.xlane.f32.xlu0 %v1661
    %v1663 = vpop.xlane.xlu0 %1662
    %v1664 = vrcp.pop %v1660
    %v1665 = vmul.f32 %v1660, %v1664
    %v1666 = vsub.f32 1.0, %v1665
    %v1667 = vmul.f32 %v1664, %v1666
    %v1668 = vadd.f32 %v1664, %v1667
    %vm1669 = vweird.f32 %v1660
    %vm1670 = vweird.f32 %v1664
    %vm1671 = vmor %vm1669, %vm1670
    %v1672 = vsel %vm1671, %v1664, %v1668
    %v1673 = vand.u32 2147483647, %v1660
    %vm1674 = vcmp.eq.f32.partialorder %v1673, 8.507059e+37
    %v1675 = vand.u32 %v1660, 2147483648
    %v1676 = vor.u32 1.1754944e-38, %v1675
    %v1677 = vsel %vm1674, %v1676, %v1672
    %v1678 = vrcp.pop %v1663
    %v1679 = vmul.f32 %v1663, %v1678
    %v1680 = vsub.f32 1.0, %v1679
    %v1681 = vmul.f32 %v1678, %v1680
    %v1682 = vadd.f32 %v1678, %v1681
    %vm1683 = vweird.f32 %v1663
    %vm1684 = vweird.f32 %v1678
    %vm1685 = vmor %vm1683, %vm1684
    %v1686 = vsel %vm1685, %v1678, %v1682
    %v1687 = vand.u32 2147483647, %v1663
    %vm1688 = vcmp.eq.f32.partialorder %v1687, 8.507059e+37
    %v1689 = vand.u32 %v1663, 2147483648
    %v1690 = vor.u32 1.1754944e-38, %v1689
    %v1691 = vsel %vm1688, %v1690, %v1686
    %v1692 = vmul.f32 %v1655, %v1677
    %v1693 = vmul.f32 %v1657, %v1691
    %1694 = vrot.lane.b32.xlu0 %v1596, 64
    %v1695 = vpop.permute.xlu0 %1694
    %1696 = vrot.lane.b32.xlu0 %v1600, 64
    %v1697 = vpop.permute.xlu0 %1696
    %v1701 = vsel %vm1605, %v1692, 0
    %v1704 = vsel %vm1605, %v1693, 0
    %1706 = vmatpush.msra.mxu0 0.0
    %1707 = vmatpush.msra.mxu0 0.0
    %1708 = vmatpush.msra.mxu0 0.0
    %1709 = vmatpush.msra.mxu0 0.0
    %1710 = vmatpush.msra.mxu0 0.0
    %1711 = vmatpush.msra.mxu0 0.0
    %1712 = vmatpush.msra.mxu0 0.0
    %1713 = vmatpush.msra.mxu0 0.0
    %1714 = vmatpush.msra.mxu0 0.0
    %1715 = vmatpush.msra.mxu0 0.0
    %1716 = vmatpush.msra.mxu0 0.0
    %1717 = vmatpush.msra.mxu0 0.0
    %1718 = vmatpush.msra.mxu0 0.0
    %1719 = vmatpush.msra.mxu0 0.0
    %1720 = vmatpush.msra.mxu0 %v1697
    %1721 = vmatpush.msra.mxu0 %v1695
    %1722 = vmatmul.f32.gmra.mxu0 %v1701
    %v1723 = vpop.f32.mrf.mxu0
    %v1724 = vadd.f32 0.0, %v1723
    %1725 = vmatmul.f32.gmra.mxu0 %v1704
    %v1726 = vpop.f32.mrf.mxu0
    %v1727 = vadd.f32 0.0, %v1726
    %1728 = vdwg.mxu0
    %1730 = vrot.lane.b32.xlu0 %v1727, 16
    %v1731 = vpop.permute.xlu0 %1730
    %v1733 = vsel %vm1605, %v1724, %v1731
    %v1734 = vld [vmem:[%s1 + $0x138] sm:$0xff]
    %v1735 = vld [vmem:[%s1 + $0x140] sm:$0xff]
    %v1736 = vld [vmem:[%s1 + $0x148] sm:$0xff]
    %v1737 = vld [vmem:[%s1 + $0x150] sm:$0xff]
    %v1738 = vld [vmem:[%s1 + $0x158] sm:$0x1]
    %v1739 = vperm.slane %v1738, 0
    %v1741 = vsel %vm127, %v1733, 0
    %1743 = vmatpush.msra.mxu0 0.0
    %1744 = vmatpush.msra.mxu0 0.0
    %1745 = vmatpush.msra.mxu0 0.0
    %1746 = vmatpush.msra.mxu0 0.0
    %1747 = vmatpush.msra.mxu0 0.0
    %1748 = vmatpush.msra.mxu0 0.0
    %1749 = vmatpush.msra.mxu0 0.0
    %1750 = vmatpush.msra.mxu0 0.0
    %1751 = vmatpush.msra.mxu0 0.0
    %1752 = vmatpush.msra.mxu0 0.0
    %1753 = vmatpush.msra.mxu0 0.0
    %1754 = vmatpush.msra.mxu0 0.0
    %1755 = vmatpush.msra.mxu0 %v1737
    %1756 = vmatpush.msra.mxu0 %v1736
    %1757 = vmatpush.msra.mxu0 %v1735
    %1758 = vmatpush.msra.mxu0 %v1734
    %1759 = vmatmul.f32.gmra.mxu0 %v1741
    %v1760 = vpop.f32.mrf.mxu0
    %v1761 = vadd.f32 %v1739, %v1760
    %1762 = vdwg.mxu0
    %v1763 = vadd.f32 %v1761, %v1566
    %v1764 = vld [vmem:[%s1 + $0x160] sm:$0x1]
    %v1765 = vld [vmem:[%s1 + $0x168] sm:$0x1]
    %v1766 = vsel %vm127, %v1763, 0.0
    %1767 = vadd.xlane.f32.xlu0 %v1766
    %v1768 = vpop.xlane.xlu0 %1767
    %v1769 = vmul.f32 %v1768, %v1543
    %v1770 = vsub.f32 %v1763, %v1769
    %v1771 = vmul.f32 %v1770, %v1770
    %v1772 = vsel %vm127, %v1771, 0.0
    %1773 = vadd.xlane.f32.xlu0 %v1772
    %v1774 = vpop.xlane.xlu0 %1773
    %v1775 = vmul.f32 %v1774, %v1543
    %v1776 = vadd.f32 %v1775, 1e-12
    %v1777 = vrsqrt.pop %v1776
    %v1778 = vmul.f32 %v1777, %v1776
    %v1779 = vmul.f32 %v1778, %v1777
    %v1780 = vmul.f32 0.5, %v1779
    %v1781 = vsub.f32 1.5, %v1780
    %v1782 = vmul.f32 %v1777, %v1781
    %vm1783 = vweird.f32 %v1776
    %vm1784 = vweird.f32 %v1777
    %vm1785 = vmor %vm1783, %vm1784
    %v1786 = vsel %vm1785, %v1777, %v1782
    %v1787 = vmul.f32 %v1770, %v1786
    %v1788 = vperm.slane %v1764, 0
    %v1789 = vmul.f32 %v1787, %v1788
    %v1790 = vperm.slane %v1765, 0
    %v1791 = vadd.f32 %v1789, %v1790
    %v1792 = vld [vmem:[%s2 + $0x28] sm:$0xff]
    %v1793 = vld [vmem:[%s2 + $0x30] sm:$0xff]
    %v1794 = vld [vmem:[%s2 + $0x38] sm:$0xff]
    %v1795 = vld [vmem:[%s2 + $0x40] sm:$0xff]
    %v1796 = vld [vmem:[%s2 + $0x48] sm:$0x1]
    %v1797 = vperm.slane %v1796, 0
    %v1799 = vsel %vm127, %v1791, 0
    %1801 = vmatpush.msra.mxu0 0.0
    %1802 = vmatpush.msra.mxu0 0.0
    %1803 = vmatpush.msra.mxu0 0.0
    %1804 = vmatpush.msra.mxu0 0.0
    %1805 = vmatpush.msra.mxu0 0.0
    %1806 = vmatpush.msra.mxu0 0.0
    %1807 = vmatpush.msra.mxu0 0.0
    %1808 = vmatpush.msra.mxu0 0.0
    %1809 = vmatpush.msra.mxu0 0.0
    %1810 = vmatpush.msra.mxu0 0.0
    %1811 = vmatpush.msra.mxu0 0.0
    %1812 = vmatpush.msra.mxu0 0.0
    %1813 = vmatpush.msra.mxu0 %v1795
    %1814 = vmatpush.msra.mxu0 %v1794
    %1815 = vmatpush.msra.mxu0 %v1793
    %1816 = vmatpush.msra.mxu0 %v1792
    %1817 = vmatmul.f32.gmra.mxu0 %v1799
    %v1818 = vpop.f32.mrf.mxu0
    %v1819 = vadd.f32 %v1797, %v1818
    %1820 = vdwg.mxu0
    %v1821 = vmul.f32 %v1819, 0.5
    %v1822 = vmul.f32 %v1819, 0.70710677
    %vm1823 = vcmp.ge.f32.partialorder %v1822, 0.0
    %v1824 = vsel %vm1823, 1.0, -1.0
    %v1825 = vand.u32 2147483647, %v1822
    %v1826 = vmul.f32 %v1825, 0.3275911
    %v1827 = vadd.f32 %v1826, 1.0
    %v1828 = vrcp.pop %v1827
    %v1829 = vmul.f32 %v1827, %v1828
    %v1830 = vsub.f32 1.0, %v1829
    %v1831 = vmul.f32 %v1828, %v1830
    %v1832 = vadd.f32 %v1828, %v1831
    %vm1833 = vweird.f32 %v1827
    %vm1834 = vweird.f32 %v1828
    %vm1835 = vmor %vm1833, %vm1834
    %v1836 = vsel %vm1835, %v1828, %v1832
    %v1837 = vand.u32 2147483647, %v1827
    %vm1838 = vcmp.eq.f32.partialorder %v1837, 8.507059e+37
    %v1839 = vand.u32 %v1827, 2147483648
    %v1840 = vor.u32 1.1754944e-38, %v1839
    %v1841 = vsel %vm1838, %v1840, %v1836
    %v1842 = vmul.f32 %v1841, 1.0614054
    %v1843 = vadd.f32 %v1842, -1.4531521
    %v1844 = vmul.f32 %v1843, %v1841
    %v1845 = vadd.f32 %v1844, 1.4214138
    %v1846 = vmul.f32 %v1845, %v1841
    %v1847 = vadd.f32 %v1846, -0.28449672
    %v1848 = vmul.f32 %v1847, %v1841
    %v1849 = vadd.f32 %v1848, 0.2548296
    %v1850 = vmul.f32 %v1849, %v1841
    %v1851 = vsub.f32 0.0, %v1825
    %v1852 = vmul.f32 %v1851, %v1825
    %v1853 = vmul.f32 %v1852, 1.442695
    %v1854 = vpow.pop %v1853
    %v1855 = vmul.f32 %v1850, %v1854
    %v1856 = vsub.f32 1.0, %v1855
    %v1857 = vmul.f32 %v1824, %v1856
    %v1858 = vadd.f32 %v1857, 1.0
    %v1859 = vmul.f32 %v1821, %v1858
    %v1860 = vld [vmem:[%s1 + $0x170] sm:$0xff]
    %v1861 = vld [vmem:[%s1 + $0x178] sm:$0xff]
    %v1862 = vld [vmem:[%s1 + $0x180] sm:$0xff]
    %v1863 = vld [vmem:[%s1 + $0x188] sm:$0xff]
    %v1864 = vld [vmem:[%s1 + $0x190] sm:$0xff]
    %v1865 = vld [vmem:[%s1 + $0x198] sm:$0xff]
    %v1866 = vld [vmem:[%s1 + $0x1a0] sm:$0xff]
    %v1867 = vld [vmem:[%s1 + $0x1a8] sm:$0xff]
    %v1868 = vld [vmem:[%s1 + $0x1b0] sm:$0x1]
    %v1869 = vperm.slane %v1868, 0
    %vm1870 = vcmask 523264
    %v1872 = vsel %vm1870, %v1859, 0
    %1874 = vmatpush.msra.mxu0 0.0
    %1875 = vmatpush.msra.mxu0 0.0
    %1876 = vmatpush.msra.mxu0 0.0
    %1877 = vmatpush.msra.mxu0 0.0
    %1878 = vmatpush.msra.mxu0 0.0
    %1879 = vmatpush.msra.mxu0 0.0
    %1880 = vmatpush.msra.mxu0 0.0
    %1881 = vmatpush.msra.mxu0 0.0
    %1882 = vmatpush.msra.mxu0 %v1867
    %1883 = vmatpush.msra.mxu0 %v1866
    %1884 = vmatpush.msra.mxu0 %v1865
    %1885 = vmatpush.msra.mxu0 %v1864
    %1886 = vmatpush.msra.mxu0 %v1863
    %1887 = vmatpush.msra.mxu0 %v1862
    %1888 = vmatpush.msra.mxu0 %v1861
    %1889 = vmatpush.msra.mxu0 %v1860
    %1890 = vmatmul.f32.gmra.mxu0 %v1872
    %v1891 = vpop.f32.mrf.mxu0
    %v1892 = vadd.f32 %v1869, %v1891
    %1893 = vdwg.mxu0
    %v1894 = vadd.f32 %v1892, %v1791
    %v1895 = vld [vmem:[%s1 + $0x1b8] sm:$0x1]
    %v1896 = vld [vmem:[%s1 + $0x1c0] sm:$0x1]
    %v1897 = vsel %vm127, %v1894, 0.0
    %1898 = vadd.xlane.f32.xlu0 %v1897
    %v1899 = vpop.xlane.xlu0 %1898
    %v1900 = vmul.f32 %v1899, %v1543
    %v1901 = vsub.f32 %v1894, %v1900
    %v1902 = vmul.f32 %v1901, %v1901
    %v1903 = vsel %vm127, %v1902, 0.0
    %1904 = vadd.xlane.f32.xlu0 %v1903
    %v1905 = vpop.xlane.xlu0 %1904
    %v1906 = vmul.f32 %v1905, %v1543
    %v1907 = vadd.f32 %v1906, 1e-12
    %v1908 = vrsqrt.pop %v1907
    %v1909 = vmul.f32 %v1908, %v1907
    %v1910 = vmul.f32 %v1909, %v1908
    %v1911 = vmul.f32 0.5, %v1910
    %v1912 = vsub.f32 1.5, %v1911
    %v1913 = vmul.f32 %v1908, %v1912
    %vm1914 = vweird.f32 %v1907
    %vm1915 = vweird.f32 %v1908
    %vm1916 = vmor %vm1914, %vm1915
    %v1917 = vsel %vm1916, %v1908, %v1913
    %v1918 = vmul.f32 %v1901, %v1917
    %v1919 = vperm.slane %v1895, 0
    %v1920 = vmul.f32 %v1918, %v1919
    %v1921 = vperm.slane %v1896, 0
    %v1922 = vadd.f32 %v1920, %v1921
    %v1923 = vld [vmem:[%s2 + $0x50] sm:$0xff]
    %v1924 = vld [vmem:[%s2 + $0x58] sm:$0xff]
    %v1925 = vld [vmem:[%s2 + $0x60] sm:$0xff]
    %v1926 = vld [vmem:[%s2 + $0x68] sm:$0xff]
    %v1927 = vld [vmem:[%s2 + $0x70] sm:$0x1]
    %v1928 = vperm.slane %v1927, 0
    %v1930 = vsel %vm127, %v1922, 0
    %1932 = vmatpush.msra.mxu0 0.0
    %1933 = vmatpush.msra.mxu0 0.0
    %1934 = vmatpush.msra.mxu0 0.0
    %1935 = vmatpush.msra.mxu0 0.0
    %1936 = vmatpush.msra.mxu0 0.0
    %1937 = vmatpush.msra.mxu0 0.0
    %1938 = vmatpush.msra.mxu0 0.0
    %1939 = vmatpush.msra.mxu0 0.0
    %1940 = vmatpush.msra.mxu0 0.0
    %1941 = vmatpush.msra.mxu0 0.0
    %1942 = vmatpush.msra.mxu0 0.0
    %1943 = vmatpush.msra.mxu0 0.0
    %1944 = vmatpush.msra.mxu0 %v1926
    %1945 = vmatpush.msra.mxu0 %v1925
    %1946 = vmatpush.msra.mxu0 %v1924
    %1947 = vmatpush.msra.mxu0 %v1923
    %1948 = vmatmul.f32.gmra.mxu0 %v1930
    %v1949 = vpop.f32.mrf.mxu0
    %v1950 = vadd.f32 %v1928, %v1949
    %1951 = vdwg.mxu0
    %1953 = vrot.lane.b32.xlu0 %v1950, 112
    %v1954 = vpop.permute.xlu0 %1953
    %1955 = vrot.lane.b32.xlu0 %v1950, 96
    %v1956 = vpop.permute.xlu0 %1955
    %1957 = vrot.lane.b32.xlu0 %v1954, 96
    %v1958 = vpop.permute.xlu0 %1957
    %v1959 = vsel %vm1605, %v1950, 0
    %v1961 = vsel %vm1605, %v1954, 0
    %v1963 = vsel %vm1605, %v1956, 0
    %v1965 = vsel %vm1605, %v1958, 0
    %1967 = vmatpush.xpose.msra.mxu0 0.0
    %1968 = vmatpush.xpose.msra.mxu0 0.0
    %1969 = vmatpush.xpose.msra.mxu0 0.0
    %1970 = vmatpush.xpose.msra.mxu0 0.0
    %1971 = vmatpush.xpose.msra.mxu0 0.0
    %1972 = vmatpush.xpose.msra.mxu0 0.0
    %1973 = vmatpush.xpose.msra.mxu0 0.0
    %1974 = vmatpush.xpose.msra.mxu0 0.0
    %1975 = vmatpush.xpose.msra.mxu0 0.0
    %1976 = vmatpush.xpose.msra.mxu0 0.0
    %1977 = vmatpush.xpose.msra.mxu0 0.0
    %1978 = vmatpush.xpose.msra.mxu0 0.0
    %1979 = vmatpush.xpose.msra.mxu0 0.0
    %1980 = vmatpush.xpose.msra.mxu0 0.0
    %1981 = vmatpush.xpose.msra.mxu0 %v1965
    %1982 = vmatpush.xpose.msra.mxu0 %v1963
    %1983 = vmatmul.f32.gmra.mxu0 %v1959
    %v1984 = vpop.f32.mrf.mxu0
    %v1985 = vadd.f32 0.0, %v1984
    %1986 = vmatmul.f32.gmra.mxu0 %v1961
    %v1987 = vpop.f32.mrf.mxu0
    %v1988 = vadd.f32 0.0, %v1987
    %1989 = vdwg.mxu0
    %v1990 = vmul.f32 %v1985, 0.25
    %v1991 = vmul.f32 %v1988, 0.25
    %v1992 = vadd.f32 %v1990, %v1639
    %v1993 = vadd.f32 %v1991, %v1639
    %v1994 = vsel %vm1642, %v1992, -inf
    %v1995 = vsel %vm1643, %v1993, -inf
    %v1996 = vsel %vm1605, %v1994, -inf
    %1997 = vmax.xlane.f32.xlu0 %v1996
    %v1998 = vpop.xlane.xlu0 %1997
    %v1999 = vsel %vm1605, %v1995, -inf
    %2000 = vmax.xlane.f32.xlu0 %v1999
    %v2001 = vpop.xlane.xlu0 %2000
    %v2002 = vsub.f32 %v1994, %v1998
    %v2003 = vsub.f32 %v1995, %v2001
    %v2004 = vmul.f32 %v2002, 1.442695
    %v2005 = vpow.pop %v2004
    %v2006 = vmul.f32 %v2003, 1.442695
    %v2007 = vpow.pop %v2006
    %v2008 = vsel %vm1605, %v2005, 0.0
    %2009 = vadd.xlane.f32.xlu0 %v2008
    %v2010 = vpop.xlane.xlu0 %2009
    %v2011 = vsel %vm1605, %v2007, 0.0
    %2012 = vadd.xlane.f32.xlu0 %v2011
    %v2013 = vpop.xlane.xlu0 %2012
    %v2014 = vrcp.pop %v2010
    %v2015 = vmul.f32 %v2010, %v2014
    %v2016 = vsub.f32 1.0, %v2015
    %v2017 = vmul.f32 %v2014, %v2016
    %v2018 = vadd.f32 %v2014, %v2017
    %vm2019 = vweird.f32 %v2010
    %vm2020 = vweird.f32 %v2014
    %vm2021 = vmor %vm2019, %vm2020
    %v2022 = vsel %vm2021, %v2014, %v2018
    %v2023 = vand.u32 2147483647, %v2010
    %vm2024 = vcmp.eq.f32.partialorder %v2023, 8.507059e+37
    %v2025 = vand.u32 %v2010, 2147483648
    %v2026 = vor.u32 1.1754944e-38, %v2025
    %v2027 = vsel %vm2024, %v2026, %v2022
    %v2028 = vrcp.pop %v2013
    %v2029 = vmul.f32 %v2013, %v2028
    %v2030 = vsub.f32 1.0, %v2029
    %v2031 = vmul.f32 %v2028, %v2030
    %v2032 = vadd.f32 %v2028, %v2031
    %vm2033 = vweird.f32 %v2013
    %vm2034 = vweird.f32 %v2028
    %vm2035 = vmor %vm2033, %vm2034
    %v2036 = vsel %vm2035, %v2028, %v2032
    %v2037 = vand.u32 2147483647, %v2013
    %vm2038 = vcmp.eq.f32.partialorder %v2037, 8.507059e+37
    %v2039 = vand.u32 %v2013, 2147483648
    %v2040 = vor.u32 1.1754944e-38, %v2039
    %v2041 = vsel %vm2038, %v2040, %v2036
    %v2042 = vmul.f32 %v2005, %v2027
    %v2043 = vmul.f32 %v2007, %v2041
    %2044 = vrot.lane.b32.xlu0 %v1950, 64
    %v2045 = vpop.permute.xlu0 %2044
    %2046 = vrot.lane.b32.xlu0 %v1954, 64
    %v2047 = vpop.permute.xlu0 %2046
    %v2051 = vsel %vm1605, %v2042, 0
    %v2054 = vsel %vm1605, %v2043, 0
    %2056 = vmatpush.msra.mxu0 0.0
    %2057 = vmatpush.msra.mxu0 0.0
    %2058 = vmatpush.msra.mxu0 0.0
    %2059 = vmatpush.msra.mxu0 0.0
    %2060 = vmatpush.msra.mxu0 0.0
    %2061 = vmatpush.msra.mxu0 0.0
    %2062 = vmatpush.msra.mxu0 0.0
    %2063 = vmatpush.msra.mxu0 0.0
    %2064 = vmatpush.msra.mxu0 0.0
    %2065 = vmatpush.msra.mxu0 0.0
    %2066 = vmatpush.msra.mxu0 0.0
    %2067 = vmatpush.msra.mxu0 0.0
    %2068 = vmatpush.msra.mxu0 0.0
    %2069 = vmatpush.msra.mxu0 0.0
    %2070 = vmatpush.msra.mxu0 %v2047
    %2071 = vmatpush.msra.mxu0 %v2045
    %2072 = vmatmul.f32.gmra.mxu0 %v2051
    %v2073 = vpop.f32.mrf.mxu0
    %v2074 = vadd.f32 0.0, %v2073
    %2075 = vmatmul.f32.gmra.mxu0 %v2054
    %v2076 = vpop.f32.mrf.mxu0
    %v2077 = vadd.f32 0.0, %v2076
    %2078 = vdwg.mxu0
    %2080 = vrot.lane.b32.xlu0 %v2077, 16
    %v2081 = vpop.permute.xlu0 %2080
    %v2083 = vsel %vm1605, %v2074, %v2081
    %v2084 = vld [vmem:[%s1 + $0x1c8] sm:$0xff]
    %v2085 = vld [vmem:[%s1 + $0x1d0] sm:$0xff]
    %v2086 = vld [vmem:[%s1 + $0x1d8] sm:$0xff]
    %v2087 = vld [vmem:[%s1 + $0x1e0] sm:$0xff]
    %v2088 = vld [vmem:[%s1 + $0x1e8] sm:$0x1]
    %v2089 = vperm.slane %v2088, 0
    %v2091 = vsel %vm127, %v2083, 0
    %2093 = vmatpush.msra.mxu0 0.0
    %2094 = vmatpush.msra.mxu0 0.0
    %2095 = vmatpush.msra.mxu0 0.0
    %2096 = vmatpush.msra.mxu0 0.0
    %2097 = vmatpush.msra.mxu0 0.0
    %2098 = vmatpush.msra.mxu0 0.0
    %2099 = vmatpush.msra.mxu0 0.0
    %2100 = vmatpush.msra.mxu0 0.0
    %2101 = vmatpush.msra.mxu0 0.0
    %2102 = vmatpush.msra.mxu0 0.0
    %2103 = vmatpush.msra.mxu0 0.0
    %2104 = vmatpush.msra.mxu0 0.0
    %2105 = vmatpush.msra.mxu0 %v2087
    %2106 = vmatpush.msra.mxu0 %v2086
    %2107 = vmatpush.msra.mxu0 %v2085
    %2108 = vmatpush.msra.mxu0 %v2084
    %2109 = vmatmul.f32.gmra.mxu0 %v2091
    %v2110 = vpop.f32.mrf.mxu0
    %v2111 = vadd.f32 %v2089, %v2110
    %2112 = vdwg.mxu0
    %v2113 = vadd.f32 %v2111, %v1922
    %v2114 = vld [vmem:[%s1 + $0x1f0] sm:$0x1]
    %v2115 = vld [vmem:[%s1 + $0x1f8] sm:$0x1]
    %v2116 = vsel %vm127, %v2113, 0.0
    %2117 = vadd.xlane.f32.xlu0 %v2116
    %v2118 = vpop.xlane.xlu0 %2117
    %v2119 = vmul.f32 %v2118, %v1543
    %v2120 = vsub.f32 %v2113, %v2119
    %v2121 = vmul.f32 %v2120, %v2120
    %v2122 = vsel %vm127, %v2121, 0.0
    %2123 = vadd.xlane.f32.xlu0 %v2122
    %v2124 = vpop.xlane.xlu0 %2123
    %v2125 = vmul.f32 %v2124, %v1543
    %v2126 = vadd.f32 %v2125, 1e-12
    %v2127 = vrsqrt.pop %v2126
    %v2128 = vmul.f32 %v2127, %v2126
    %v2129 = vmul.f32 %v2128, %v2127
    %v2130 = vmul.f32 0.5, %v2129
    %v2131 = vsub.f32 1.5, %v2130
    %v2132 = vmul.f32 %v2127, %v2131
    %vm2133 = vweird.f32 %v2126
    %vm2134 = vweird.f32 %v2127
    %vm2135 = vmor %vm2133, %vm2134
    %v2136 = vsel %vm2135, %v2127, %v2132
    %v2137 = vmul.f32 %v2120, %v2136
    %v2138 = vperm.slane %v2114, 0
    %v2139 = vmul.f32 %v2137, %v2138
    %v2140 = vperm.slane %v2115, 0
    %v2141 = vadd.f32 %v2139, %v2140
    %v2142 = vld [vmem:[%s2 + $0x78] sm:$0xff]
    %v2143 = vld [vmem:[%s2 + $0x80] sm:$0xff]
    %v2144 = vld [vmem:[%s2 + $0x88] sm:$0xff]
    %v2145 = vld [vmem:[%s2 + $0x90] sm:$0xff]
    %v2146 = vld [vmem:[%s2 + $0x98] sm:$0x1]
    %v2147 = vperm.slane %v2146, 0
    %v2149 = vsel %vm127, %v2141, 0
    %2151 = vmatpush.msra.mxu0 0.0
    %2152 = vmatpush.msra.mxu0 0.0
    %2153 = vmatpush.msra.mxu0 0.0
    %2154 = vmatpush.msra.mxu0 0.0
    %2155 = vmatpush.msra.mxu0 0.0
    %2156 = vmatpush.msra.mxu0 0.0
    %2157 = vmatpush.msra.mxu0 0.0
    %2158 = vmatpush.msra.mxu0 0.0
    %2159 = vmatpush.msra.mxu0 0.0
    %2160 = vmatpush.msra.mxu0 0.0
    %2161 = vmatpush.msra.mxu0 0.0
    %2162 = vmatpush.msra.mxu0 0.0
    %2163 = vmatpush.msra.mxu0 %v2145
    %2164 = vmatpush.msra.mxu0 %v2144
    %2165 = vmatpush.msra.mxu0 %v2143
    %2166 = vmatpush.msra.mxu0 %v2142
    %2167 = vmatmul.f32.gmra.mxu0 %v2149
    %v2168 = vpop.f32.mrf.mxu0
    %v2169 = vadd.f32 %v2147, %v2168
    %2170 = vdwg.mxu0
    %v2171 = vmul.f32 %v2169, 0.5
    %v2172 = vmul.f32 %v2169, 0.70710677
    %vm2173 = vcmp.ge.f32.partialorder %v2172, 0.0
    %v2174 = vsel %vm2173, 1.0, -1.0
    %v2175 = vand.u32 2147483647, %v2172
    %v2176 = vmul.f32 %v2175, 0.3275911
    %v2177 = vadd.f32 %v2176, 1.0
    %v2178 = vrcp.pop %v2177
    %v2179 = vmul.f32 %v2177, %v2178
    %v2180 = vsub.f32 1.0, %v2179
    %v2181 = vmul.f32 %v2178, %v2180
    %v2182 = vadd.f32 %v2178, %v2181
    %vm2183 = vweird.f32 %v2177
    %vm2184 = vweird.f32 %v2178
    %vm2185 = vmor %vm2183, %vm2184
    %v2186 = vsel %vm2185, %v2178, %v2182
    %v2187 = vand.u32 2147483647, %v2177
    %vm2188 = vcmp.eq.f32.partialorder %v2187, 8.507059e+37
    %v2189 = vand.u32 %v2177, 2147483648
    %v2190 = vor.u32 1.1754944e-38, %v2189
    %v2191 = vsel %vm2188, %v2190, %v2186
    %v2192 = vmul.f32 %v2191, 1.0614054
    %v2193 = vadd.f32 %v2192, -1.4531521
    %v2194 = vmul.f32 %v2193, %v2191
    %v2195 = vadd.f32 %v2194, 1.4214138
    %v2196 = vmul.f32 %v2195, %v2191
    %v2197 = vadd.f32 %v2196, -0.28449672
    %v2198 = vmul.f32 %v2197, %v2191
    %v2199 = vadd.f32 %v2198, 0.2548296
    %v2200 = vmul.f32 %v2199, %v2191
    %v2201 = vsub.f32 0.0, %v2175
    %v2202 = vmul.f32 %v2201, %v2175
    %v2203 = vmul.f32 %v2202, 1.442695
    %v2204 = vpow.pop %v2203
    %v2205 = vmul.f32 %v2200, %v2204
    %v2206 = vsub.f32 1.0, %v2205
    %v2207 = vmul.f32 %v2174, %v2206
    %v2208 = vadd.f32 %v2207, 1.0
    %v2209 = vmul.f32 %v2171, %v2208
    %v2210 = vld [vmem:[%s1 + $0x200] sm:$0xff]
    %v2211 = vld [vmem:[%s1 + $0x208] sm:$0xff]
    %v2212 = vld [vmem:[%s1 + $0x210] sm:$0xff]
    %v2213 = vld [vmem:[%s1 + $0x218] sm:$0xff]
    %v2214 = vld [vmem:[%s1 + $0x220] sm:$0xff]
    %v2215 = vld [vmem:[%s1 + $0x228] sm:$0xff]
    %v2216 = vld [vmem:[%s1 + $0x230] sm:$0xff]
    %v2217 = vld [vmem:[%s1 + $0x238] sm:$0xff]
    %v2218 = vld [vmem:[%s1 + $0x240] sm:$0x1]
    %v2219 = vperm.slane %v2218, 0
    %v2221 = vsel %vm1870, %v2209, 0
    %2223 = vmatpush.msra.mxu0 0.0
    %2224 = vmatpush.msra.mxu0 0.0
    %2225 = vmatpush.msra.mxu0 0.0
    %2226 = vmatpush.msra.mxu0 0.0
    %2227 = vmatpush.msra.mxu0 0.0
    %2228 = vmatpush.msra.mxu0 0.0
    %2229 = vmatpush.msra.mxu0 0.0
    %2230 = vmatpush.msra.mxu0 0.0
    %2231 = vmatpush.msra.mxu0 %v2217
    %2232 = vmatpush.msra.mxu0 %v2216
    %2233 = vmatpush.msra.mxu0 %v2215
    %2234 = vmatpush.msra.mxu0 %v2214
    %2235 = vmatpush.msra.mxu0 %v2213
    %2236 = vmatpush.msra.mxu0 %v2212
    %2237 = vmatpush.msra.mxu0 %v2211
    %2238 = vmatpush.msra.mxu0 %v2210
    %2239 = vmatmul.f32.gmra.mxu0 %v2221
    %v2240 = vpop.f32.mrf.mxu0
    %v2241 = vadd.f32 %v2219, %v2240
    %2242 = vdwg.mxu0
    %v2243 = vadd.f32 %v2241, %v2141
    %v2244 = vld [vmem:[%s1 + $0x248] sm:$0x1]
    %v2245 = vld [vmem:[%s1 + $0x250] sm:$0x1]
    %v2246 = vsel %vm127, %v2243, 0.0
    %2247 = vadd.xlane.f32.xlu0 %v2246
    %v2248 = vpop.xlane.xlu0 %2247
    %v2249 = vmul.f32 %v2248, %v1543
    %v2250 = vsub.f32 %v2243, %v2249
    %v2251 = vmul.f32 %v2250, %v2250
    %v2252 = vsel %vm127, %v2251, 0.0
    %2253 = vadd.xlane.f32.xlu0 %v2252
    %v2254 = vpop.xlane.xlu0 %2253
    %v2255 = vmul.f32 %v2254, %v1543
    %v2256 = vadd.f32 %v2255, 1e-12
    %v2257 = vrsqrt.pop %v2256
    %v2258 = vmul.f32 %v2257, %v2256
    %v2259 = vmul.f32 %v2258, %v2257
    %v2260 = vmul.f32 0.5, %v2259
    %v2261 = vsub.f32 1.5, %v2260
    %v2262 = vmul.f32 %v2257, %v2261
    %vm2263 = vweird.f32 %v2256
    %vm2264 = vweird.f32 %v2257
    %vm2265 = vmor %vm2263, %vm2264
    %v2266 = vsel %vm2265, %v2257, %v2262
    %v2267 = vmul.f32 %v2250, %v2266
    %v2268 = vperm.slane %v2244, 0
    %v2269 = vmul.f32 %v2267, %v2268
    %v2270 = vperm.slane %v2245, 0
    %v2271 = vadd.f32 %v2269, %v2270
    %v2272 = vld [vmem:[%s1 + $0x350] sm:$0x3]
    %v2274 = vsel %vm1525, %v2272, 0
    %2276 = vmatpush.msra.mxu0 0.0
    %2277 = vmatpush.msra.mxu0 0.0
    %2278 = vmatpush.msra.mxu0 0.0
    %2279 = vmatpush.msra.mxu0 0.0
    %2280 = vmatpush.msra.mxu0 0.0
    %2281 = vmatpush.msra.mxu0 0.0
    %2282 = vmatpush.msra.mxu0 0.0
    %2283 = vmatpush.msra.mxu0 0.0
    %2284 = vmatpush.msra.mxu0 0.0
    %2285 = vmatpush.msra.mxu0 0.0
    %2286 = vmatpush.msra.mxu0 0.0
    %2287 = vmatpush.msra.mxu0 0.0
    %2288 = vmatpush.msra.mxu0 0.0
    %2289 = vmatpush.msra.mxu0 0.0
    %2290 = vmatpush.msra.mxu0 0.0
    %2291 = vmatpush.msra.mxu0 %v2271
    %2292 = vmatmul.f32.gmra.mxu0 %v2274
    %v2293 = vpop.f32.mrf.mxu0
    %v2294 = vadd.f32 0.0, %v2293
    %2295 = vdwg.mxu0
    %v2296 = vld [vmem:[%s1 + $0xe8] sm:$0xff]
    %v2297 = vld [vmem:[%s1 + $0xf0] sm:$0xff]
    %v2298 = vld [vmem:[%s1 + $0xf8] sm:$0xff]
    %v2299 = vld [vmem:[%s1 + $0x100] sm:$0xff]
    %v2300 = vld [vmem:[%s1 + $0x108] sm:$0x1]
    %v2301 = vperm.slane %v2300, 0
    %v2303 = vsel %vm127, %v2294, 0
    %2305 = vmatpush.msra.mxu0 0.0
    %2306 = vmatpush.msra.mxu0 0.0
    %2307 = vmatpush.msra.mxu0 0.0
    %2308 = vmatpush.msra.mxu0 0.0
    %2309 = vmatpush.msra.mxu0 0.0
    %2310 = vmatpush.msra.mxu0 0.0
    %2311 = vmatpush.msra.mxu0 0.0
    %2312 = vmatpush.msra.mxu0 0.0
    %2313 = vmatpush.msra.mxu0 0.0
    %2314 = vmatpush.msra.mxu0 0.0
    %2315 = vmatpush.msra.mxu0 0.0
    %2316 = vmatpush.msra.mxu0 0.0
    %2317 = vmatpush.msra.mxu0 %v2299
    %2318 = vmatpush.msra.mxu0 %v2298
    %2319 = vmatpush.msra.mxu0 %v2297
    %2320 = vmatpush.msra.mxu0 %v2296
    %2321 = vmatmul.f32.gmra.mxu0 %v2303
    %v2322 = vpop.f32.mrf.mxu0
    %v2323 = vadd.f32 %v2301, %v2322
    %2324 = vdwg.mxu0
    %v2325 = vtanh.pop %v2323
    %v2326 = vld [vmem:[%s1 + $0x110] sm:$0xff]
    %v2327 = vld [vmem:[%s1 + $0x118] sm:$0xff]
    %v2328 = vld [vmem:[%s1 + $0x120] sm:$0xff]
    %v2329 = vld [vmem:[%s1 + $0x128] sm:$0xff]
    %v2330 = vld [vmem:[%s1 + $0x130] sm:$0x1]
    %v2331 = vperm.slane %v2330, 0
    %v2333 = vsel %vm127, %v2325, 0
    %2335 = vmatpush.msra.mxu0 0.0
    %2336 = vmatpush.msra.mxu0 0.0
    %2337 = vmatpush.msra.mxu0 0.0
    %2338 = vmatpush.msra.mxu0 0.0
    %2339 = vmatpush.msra.mxu0 0.0
    %2340 = vmatpush.msra.mxu0 0.0
    %2341 = vmatpush.msra.mxu0 0.0
    %2342 = vmatpush.msra.mxu0 0.0
    %2343 = vmatpush.msra.mxu0 0.0
    %2344 = vmatpush.msra.mxu0 0.0
    %2345 = vmatpush.msra.mxu0 0.0
    %2346 = vmatpush.msra.mxu0 0.0
    %2347 = vmatpush.msra.mxu0 %v2329
    %2348 = vmatpush.msra.mxu0 %v2328
    %2349 = vmatpush.msra.mxu0 %v2327
    %2350 = vmatpush.msra.mxu0 %v2326
    %2351 = vmatmul.f32.gmra.mxu0 %v2333
    %v2352 = vpop.f32.mrf.mxu0
    %v2353 = vadd.f32 %v2331, %v2352
    %2354 = vdwg.mxu0
    %vm2355 = vcmask 9216
    %2356 = vst.msk [vmem:[#allocation2] sm:$0x3] %vm2355, %v2353
    // Predicated region
    $region14: #{forward.1} parent=1 // pred_check
      _
    $region15: #{forward.1} parent=1 // pred_check_branch
      %2358 = sbr.rel (0) target = $region17
    $region16: #{forward.1} parent=1 // pred_region
      %2360 = vsyncadd [#allocation3], 0
      %s2362 = sshll.u32 [#allocation2], 4
      %s2363 = int_to_ptr.vmem [resolvable:$true] %s2362
      %s2364 = sshll.u32 %s3, 4
      %s2365 = int_to_ptr.hbm [resolvable:$true] %s2364
      %2367 = dma.vmem_to_hbm [thread:$0]  %s2363, 32, %s2365, [#allocation3]
    $region17: #{forward.1} parent=1 // pred_fallthru
      _
    // Predicated region
    $region18: #{forward.1} parent=1 // pred_check
      _
    $region19: #{forward.1} parent=1 // pred_check_branch
      %2369 = sbr.rel (0) target = $region21
    $region20: #{forward.1} parent=1 // pred_region
      %2371 = dma.done [#allocation3], 32
    $region21: #{forward.1} parent=1 // pred_fallthru
      _
    %2372 = vsyncpa [#allocation3], 1

</llo_original>
